<compile_context>
chip_gen: v7x
topology: tpu7x:2x2x1
jax: 0.10.0
libtpu: 0.0.40
codegen_flags: <defaults>
</compile_context>

<pallas_src>
import math

import jax
import jax.numpy as jnp
from jax.experimental import pallas as pl
from jax.experimental.pallas import tpu as pltpu


# ----------------------------------------------------------------------------
# Config (the fields the PyTorch Model reads from `configs`)
# ----------------------------------------------------------------------------
CFG = dict(
    task_name="forecast",
    seq_len=16,
    pred_len=8,
    patch_len=4,      # stride == patch_len in the module
    d_model=32,
    d_ff=64,
    e_layers=2,
    n_heads=4,
    dropout=0.0,      # eval mode -> dropout is a no-op
)


# ----------------------------------------------------------------------------
# Single fused kernel: instance-norm + patch-embed + encoder + head + denorm
# ----------------------------------------------------------------------------
def _make_fused_kernel(cfg, BN, P):
    D = cfg["d_model"]
    H = cfg["n_heads"]
    hd = D // H
    Dff = cfg["d_ff"]
    L = cfg["seq_len"]
    pred = cfg["pred_len"]
    n_layers = cfg["e_layers"]
    N = BN * P                      # total rows, patch-major: row = p*BN + bn

    def _layer_norm(x, g, b):
        mu = jnp.mean(x, axis=-1, keepdims=True)
        var = jnp.mean((x - mu) ** 2, axis=-1, keepdims=True)
        return (x - mu) * jax.lax.rsqrt(var + 1e-5) * g + b

    def kernel(xseq_ref, emb_ref, wa_ref, wb_ref, vec_ref, head_ref, o_ref):
        xs = xseq_ref[...].astype(jnp.float32)            # (BN, L)

        # ---- RevIN-style stats (two-pass variance, matches torch.var unbiased=False)
        mean_s = jnp.mean(xs, axis=1, keepdims=True)      # (BN, 1)
        cen = xs - mean_s
        var_s = jnp.mean(cen * cen, axis=1, keepdims=True)
        inv_std = jax.lax.rsqrt(var_s + 1e-5)             # (BN, 1), EUP rsqrt
        xn = cen * inv_std                                # (BN, L)

        # ---- patchify (replication pad + unfold) + value embedding fused as ONE matmul
        # emb_ref rows 0..L-1 hold the composite patchify+embed matrix, row L the
        # concatenated positional embeddings.
        emb_flat = jnp.dot(xn, emb_ref[0:L, :],
                           preferred_element_type=jnp.float32)          # (BN, P*D)
        emb_flat = emb_flat + emb_ref[L:L + 1, :]

        # ---- re-block to patch-major rows (row = p*BN + bn); all slices tile-aligned
        x = jnp.concatenate([emb_flat[:, p * D:(p + 1) * D] for p in range(P)],
                            axis=0)                                     # (N, D)

        # ---- block-diagonal (same-sequence) additive attention mask ----
        ri = jax.lax.broadcasted_iota(jnp.int32, (N, N), 0)
        ci = jax.lax.broadcasted_iota(jnp.int32, (N, N), 1)
        if BN & (BN - 1) == 0:
            same = (ri & (BN - 1)) == (ci & (BN - 1))
        else:
            same = (ri % BN) == (ci % BN)
        mask_bias = jnp.where(same, 0.0, -1e30).astype(jnp.float32)     # (N, N)

        for l in range(n_layers):
            wa = wa_ref[l]                                 # (D, 3D + D + Dff)
            wqkv = wa[:, 0:3 * D]                          # (D, 3D)  (Q cols pre-scaled)
            wo = wa[:, 3 * D:4 * D]                        # (D, D)
            w1 = wa[:, 4 * D:4 * D + Dff]                  # (D, Dff)
            w2 = wb_ref[l]                                 # (Dff, D)
            vec = vec_ref[l]                               # (8, 128)
            bqkv = vec[0:1, 0:3 * D]
            bo = vec[1:2, 0:D]
            b1 = vec[2:3, 0:Dff]
            b2 = vec[3:4, 0:D]
            g1, bt1 = vec[4:5, 0:D], vec[5:6, 0:D]
            g2, bt2 = vec[6:7, 0:D], vec[7:8, 0:D]

            # -------- multi-head self-attention: single dense QKV matmul --------
            qkv = jnp.dot(x, wqkv, preferred_element_type=jnp.float32) + bqkv  # (N, 3D)

            ctx = []
            for h in range(H):
                qh = qkv[:, h * hd:(h + 1) * hd]                        # (N, hd)
                kh = qkv[:, D + h * hd:D + (h + 1) * hd]
                vh = qkv[:, 2 * D + h * hd:2 * D + (h + 1) * hd]
                s = jax.lax.dot_general(qh, kh, (((1,), (1,)), ((), ())),
                                        preferred_element_type=jnp.float32)  # (N, N)
                s = s + mask_bias
                s = s - jnp.max(s, axis=-1, keepdims=True)
                e = jnp.exp(s)
                inv = 1.0 / jnp.sum(e, axis=-1, keepdims=True)          # exact, (N,1)
                ctx.append(jnp.dot(e * inv, vh,
                                   preferred_element_type=jnp.float32))  # (N, hd)
            attn = jnp.dot(jnp.concatenate(ctx, axis=-1), wo,
                           preferred_element_type=jnp.float32) + bo      # (N, D)

            x = _layer_norm(x + attn, g1, bt1)

            # -------- position-wise FFN (conv1d kernel_size=1 == linear) --------
            y = jnp.dot(x, w1, preferred_element_type=jnp.float32) + b1
            y = jax.nn.gelu(y)    # TODO(synk): tanh-approx GELU; PyTorch F.gelu is erf
            y = jnp.dot(y, w2, preferred_element_type=jnp.float32) + b2
            x = _layer_norm(x + y, g2, bt2)

        # ---- final encoder LayerNorm ----
        gf = head_ref[P * D + 1:P * D + 2, 0:D]
        bf = head_ref[P * D + 2:P * D + 3, 0:D]
        x = _layer_norm(x, gf, bf)

        # ---- flatten head: one (BN, P*D)x(P*D, pred) matmul fused with de-norm ----
        xflat = jnp.concatenate([x[p * BN:(p + 1) * BN, :] for p in range(P)],
                                axis=1)                                  # (BN, P*D)
        wh = head_ref[0:P * D, 0:pred]
        bh = head_ref[P * D:P * D + 1, 0:pred]
        dec = jnp.dot(xflat, wh, preferred_element_type=jnp.float32) + bh  # (BN, pred)

        std_s = (var_s + 1e-5) * inv_std                 # == sqrt(var + eps), no sqrt op
        o_ref[...] = (dec * std_s + mean_s).astype(o_ref.dtype)

    return kernel


# ----------------------------------------------------------------------------
# Parameter init (canonical / PyTorch-like layouts)
# ----------------------------------------------------------------------------
def sinusoidal_pos_emb(P, d_model):
    pos = jnp.arange(P, dtype=jnp.float32)[:, None]
    idx = jnp.arange(0, d_model, 2, dtype=jnp.float32)
    div = jnp.exp(idx * (-math.log(10000.0) / d_model))
    pe = jnp.zeros((P, d_model), jnp.float32)
    pe = pe.at[:, 0::2].set(jnp.sin(pos * div))
    pe = pe.at[:, 1::2].set(jnp.cos(pos * div))
    return pe


def init_params(key, cfg, num_patches):
    D, Dff, PLn = cfg["d_model"], cfg["d_ff"], cfg["patch_len"]
    pred = cfg["pred_len"]
    keys = iter(jax.random.split(key, 64))

    def w(shape):
        return 0.02 * jax.random.normal(next(keys), shape, jnp.float32)

    params = {
        "w_emb": w((PLn, D)),
        "pos_emb": sinusoidal_pos_emb(num_patches, D),
        "ln_f_g": jnp.ones((D,), jnp.float32),
        "ln_f_b": jnp.zeros((D,), jnp.float32),
        "w_head": w((D * num_patches, pred)),     # PyTorch flatten order: row = d*P + p
        "b_head": w((pred,)),
        "layers": [],
    }
    for _ in range(cfg["e_layers"]):
        params["layers"].append({
            "wqkv": w((D, 3 * D)),                # columns: [Q | K | V], head-major
            "bqkv": w((3 * D,)),
            "wo": w((D, D)),
            "bo": w((D,)),
            "w1": w((D, Dff)),
            "b1": w((Dff,)),
            "w2": w((Dff, D)),
            "b2": w((D,)),
            "ln1_g": jnp.ones((D,), jnp.float32),
            "ln1_b": jnp.zeros((D,), jnp.float32),
            "ln2_g": jnp.ones((D,), jnp.float32),
            "ln2_b": jnp.zeros((D,), jnp.float32),
        })
    return params


# ----------------------------------------------------------------------------
# Offline packing: 19 tensors -> 6 DMA-friendly slabs in kernel-native layout
# ----------------------------------------------------------------------------
def pack_params_for_kernel(params, cfg, num_patches):
    D, H, Dff = cfg["d_model"], cfg["n_heads"], cfg["d_ff"]
    hd = D // H
    L, PLn = cfg["seq_len"], cfg["patch_len"]
    stride = PLn
    pred = cfg["pred_len"]
    P = num_patches
    scale = 1.0 / math.sqrt(hd)

    # -- emb slab (L+1, P*D): composite patchify+value-embed matrix + pos row --
    w_emb = params["w_emb"]                                   # (patch_len, D)
    W = jnp.zeros((L, P * D), jnp.float32)
    for p in range(P - 1):                                    # non-padded patches
        W = W.at[p * stride:p * stride + PLn, p * D:(p + 1) * D].set(w_emb)
    # replication-padded last patch: all patch_len taps read x[L-1]
    W = W.at[L - 1, (P - 1) * D:P * D].set(jnp.sum(w_emb, axis=0))
    pos_flat = params["pos_emb"].reshape(1, P * D)
    emb_slab = jnp.concatenate([W, pos_flat], axis=0)         # (L+1, P*D)

    # -- per-layer weight slabs --
    wa_list, wb_list, vec_list = [], [], []
    for lp in params["layers"]:
        wqkv = lp["wqkv"].at[:, :D].multiply(scale)           # bake 1/sqrt(hd) into Q
        bqkv = lp["bqkv"].at[:D].multiply(scale)
        wa_list.append(jnp.concatenate([wqkv, lp["wo"], lp["w1"]], axis=1))
        wb_list.append(lp["w2"])

        def row(v):
            r = jnp.zeros((128,), jnp.float32)
            return r.at[:v.shape[0]].set(v)

        vec_list.append(jnp.stack([
            row(bqkv), row(lp["bo"]), row(lp["b1"]), row(lp["b2"]),
            row(lp["ln1_g"]), row(lp["ln1_b"]), row(lp["ln2_g"]), row(lp["ln2_b"]),
        ]))
    wa = jnp.stack(wa_list)                                   # (layers, D, 3D+D+Dff)
    wb = jnp.stack(wb_list)                                   # (layers, Dff, D)
    vec = jnp.stack(vec_list)                                 # (layers, 8, 128)

    # -- head slab (P*D+3, D): re-permuted flatten-head weight + bias + final LN --
    # PyTorch flatten order row = d*P + p  ->  kernel order row = p*D + d
    wh = params["w_head"].reshape(D, P, pred).transpose(1, 0, 2).reshape(P * D, pred)
    width = max(D, pred)
    wh_pad = jnp.zeros((P * D, width), jnp.float32).at[:, :pred].set(wh)

    def hrow(v):
        r = jnp.zeros((width,), jnp.float32)
        return r.at[:v.shape[0]].set(v)

    head_slab = jnp.concatenate([
        wh_pad,
        hrow(params["b_head"])[None, :],
        hrow(params["ln_f_g"])[None, :],
        hrow(params["ln_f_b"])[None, :],
    ], axis=0)                                                # (P*D+3, 32)

    return {"emb": emb_slab, "wa": wa, "wb": wb, "vec": vec, "head": head_slab}


# ----------------------------------------------------------------------------
# Forward pass: wrapper does only one tiny transpose before and after the call;
# all other work (stats, patchify, embed, encoder, head, de-norm) is one kernel.
# ----------------------------------------------------------------------------
def model_forward(packed, x_enc, x_mark_enc=None, x_dec=None, x_mark_dec=None,
                  mask=None):
    cfg = CFG
    assert cfg["task_name"] == "forecast"
    B, L, C = x_enc.shape
    stride = cfg["patch_len"]
    pred = cfg["pred_len"]
    BN = B * C
    P = L // stride + 1                      # replication pad adds one patch

    # (B, L, C) -> (B*C, L): one small layout op; everything else is in-kernel.
    xseq = jnp.transpose(x_enc, (0, 2, 1)).reshape(BN, L)

    kernel = _make_fused_kernel(cfg, BN=BN, P=P)
    args = (xseq, packed["emb"], packed["wa"], packed["wb"],
            packed["vec"], packed["head"])

    dec = pl.pallas_call(
        kernel,
        out_shape=jax.ShapeDtypeStruct((BN, pred), jnp.float32),
        in_specs=[pl.BlockSpec(memory_space=pltpu.MemorySpace.VMEM) for _ in args],
        out_specs=pl.BlockSpec(memory_space=pltpu.MemorySpace.VMEM),
    )(*args)                                                   # (BN, pred)

    # (B*C, pred) -> (B, pred_len, C), matching dec_out.permute(0, 2, 1)
    return jnp.transpose(dec.reshape(B, C, pred), (0, 2, 1))


if __name__ == "__main__":
    key = jax.random.PRNGKey(0)
    k_x, k_p = jax.random.split(key)

    B, C = 2, 4
    L, pred_len = CFG["seq_len"], CFG["pred_len"]
    x_enc = jax.random.normal(k_x, (B, L, C), jnp.float32)
    x_mark_enc = jnp.zeros((B, L, 3), jnp.float32)         # unused in forecast path
    x_mark_dec = jnp.zeros((B, pred_len, 3), jnp.float32)  # unused
    x_dec = jnp.zeros((B, pred_len, C), jnp.float32)       # unused

    num_patches = L // CFG["patch_len"] + 1                # replication pad adds 1
    params = init_params(k_p, CFG, num_patches)
    packed = pack_params_for_kernel(params, CFG, num_patches)

    fwd = jax.jit(model_forward)
    out = fwd(packed, x_enc, x_mark_enc, x_dec, x_mark_dec)
    out = jax.block_until_ready(out)

    assert out.shape == (B, pred_len, C), out.shape
    assert bool(jnp.all(jnp.isfinite(out)))
    print("KERNEL_OK")
</pallas_src>

<mosaic_0001>
module attributes {stable_mosaic.version = 11 : i64} {
  func.func @kernel(%arg0: memref<8x16xf32, #tpu.memory_space<vmem>>, %arg1: memref<17x160xf32, #tpu.memory_space<vmem>>, %arg2: memref<2x32x192xf32, #tpu.memory_space<vmem>>, %arg3: memref<2x64x32xf32, #tpu.memory_space<vmem>>, %arg4: memref<2x8x128xf32, #tpu.memory_space<vmem>>, %arg5: memref<163x32xf32, #tpu.memory_space<vmem>>, %arg6: memref<8x8xf32, #tpu.memory_space<vmem>>) attributes {dimension_semantics = [], scalar_prefetch = 0 : i64, scratch_operands = 0 : i64, tpu.core_type = #tpu.core_type<tc>} {
    %c0 = arith.constant 0 : index
    %c0_0 = arith.constant 0 : index
    %0 = vector.load %arg0[%c0, %c0_0] : memref<8x16xf32, #tpu.memory_space<vmem>>, vector<8x16xf32>
    %cst = arith.constant dense<0.000000e+00> : vector<8xf32>
    %1 = vector.multi_reduction <add>, %0, %cst [1] : vector<8x16xf32> to vector<8xf32>
    %2 = vector.shape_cast %1 : vector<8xf32> to vector<8x1xf32>
    %cst_1 = arith.constant 1.600000e+01 : f32
    %3 = vector.broadcast %cst_1 : f32 to vector<8x1xf32>
    %4 = arith.divf %2, %3 : vector<8x1xf32>
    %5 = vector.broadcast %4 : vector<8x1xf32> to vector<8x16xf32>
    %6 = arith.subf %0, %5 : vector<8x16xf32>
    %7 = arith.mulf %6, %6 : vector<8x16xf32>
    %cst_2 = arith.constant dense<0.000000e+00> : vector<8xf32>
    %8 = vector.multi_reduction <add>, %7, %cst_2 [1] : vector<8x16xf32> to vector<8xf32>
    %9 = vector.shape_cast %8 : vector<8xf32> to vector<8x1xf32>
    %cst_3 = arith.constant 1.600000e+01 : f32
    %10 = vector.broadcast %cst_3 : f32 to vector<8x1xf32>
    %11 = arith.divf %9, %10 : vector<8x1xf32>
    %cst_4 = arith.constant 9.99999974E-6 : f32
    %12 = vector.broadcast %cst_4 : f32 to vector<8x1xf32>
    %13 = arith.addf %11, %12 : vector<8x1xf32>
    %14 = math.rsqrt %13 : vector<8x1xf32>
    %15 = vector.broadcast %14 : vector<8x1xf32> to vector<8x16xf32>
    %16 = arith.mulf %6, %15 : vector<8x16xf32>
    %c0_5 = arith.constant 0 : index
    %c0_6 = arith.constant 0 : index
    %17 = vector.load %arg1[%c0_5, %c0_6] : memref<17x160xf32, #tpu.memory_space<vmem>>, vector<16x160xf32>
    %cst_7 = arith.constant dense<0.000000e+00> : vector<8x160xf32>
    %18 = tpu.matmul %16, %17, %cst_7 {dimension_numbers = #tpu.dot_dimension_numbers<[1], [0], [0], [1], [0, 0, 1, 1], [], []>} : vector<8x16xf32>, vector<16x160xf32>, vector<8x160xf32> -> vector<8x160xf32>
    %c16 = arith.constant 16 : index
    %c0_8 = arith.constant 0 : index
    %19 = vector.load %arg1[%c16, %c0_8] : memref<17x160xf32, #tpu.memory_space<vmem>>, vector<1x160xf32>
    %20 = vector.broadcast %19 : vector<1x160xf32> to vector<8x160xf32>
    %21 = arith.addf %18, %20 : vector<8x160xf32>
    %22 = vector.extract_strided_slice %21 {offsets = [0, 0], sizes = [8, 32], strides = [1, 1]} : vector<8x160xf32> to vector<8x32xf32>
    %23 = vector.extract_strided_slice %21 {offsets = [0, 32], sizes = [8, 32], strides = [1, 1]} : vector<8x160xf32> to vector<8x32xf32>
    %24 = vector.extract_strided_slice %21 {offsets = [0, 64], sizes = [8, 32], strides = [1, 1]} : vector<8x160xf32> to vector<8x32xf32>
    %25 = vector.extract_strided_slice %21 {offsets = [0, 96], sizes = [8, 32], strides = [1, 1]} : vector<8x160xf32> to vector<8x32xf32>
    %26 = vector.extract_strided_slice %21 {offsets = [0, 128], sizes = [8, 32], strides = [1, 1]} : vector<8x160xf32> to vector<8x32xf32>
    %27 = tpu.concatenate %22, %23, %24, %25, %26 in 0 : vector<8x32xf32>, vector<8x32xf32>, vector<8x32xf32>, vector<8x32xf32>, vector<8x32xf32> -> vector<40x32xf32>
    %28 = tpu.iota {dimensions = array<i32: 0>} : vector<40x40xi32>
    %29 = tpu.iota {dimensions = array<i32: 1>} : vector<40x40xi32>
    %c7_i32 = arith.constant 7 : i32
    %30 = vector.broadcast %c7_i32 : i32 to vector<40x40xi32>
    %31 = arith.andi %28, %30 : vector<40x40xi32>
    %c7_i32_9 = arith.constant 7 : i32
    %32 = vector.broadcast %c7_i32_9 : i32 to vector<40x40xi32>
    %33 = arith.andi %29, %32 : vector<40x40xi32>
    %34 = arith.cmpi eq, %31, %33 : vector<40x40xi32>
    %cst_10 = arith.constant 0.000000e+00 : f32
    %cst_11 = arith.constant -1.000000e+30 : f32
    %35 = vector.broadcast %cst_10 : f32 to vector<40x40xf32>
    %36 = vector.broadcast %cst_11 : f32 to vector<40x40xf32>
    %37 = arith.select %34, %35, %36 : vector<40x40xi1>, vector<40x40xf32>
    %c0_12 = arith.constant 0 : index
    %c0_13 = arith.constant 0 : index
    %c0_14 = arith.constant 0 : index
    %38 = vector.load %arg2[%c0_12, %c0_13, %c0_14] : memref<2x32x192xf32, #tpu.memory_space<vmem>>, vector<1x32x192xf32>
    %39 = vector.shape_cast %38 : vector<1x32x192xf32> to vector<32x192xf32>
    %40 = vector.extract_strided_slice %39 {offsets = [0, 0], sizes = [32, 96], strides = [1, 1]} : vector<32x192xf32> to vector<32x96xf32>
    %41 = vector.extract_strided_slice %39 {offsets = [0, 96], sizes = [32, 32], strides = [1, 1]} : vector<32x192xf32> to vector<32x32xf32>
    %42 = vector.extract_strided_slice %39 {offsets = [0, 128], sizes = [32, 64], strides = [1, 1]} : vector<32x192xf32> to vector<32x64xf32>
    %c0_15 = arith.constant 0 : index
    %c0_16 = arith.constant 0 : index
    %c0_17 = arith.constant 0 : index
    %43 = vector.load %arg3[%c0_15, %c0_16, %c0_17] : memref<2x64x32xf32, #tpu.memory_space<vmem>>, vector<1x64x32xf32>
    %44 = vector.shape_cast %43 : vector<1x64x32xf32> to vector<64x32xf32>
    %c0_18 = arith.constant 0 : index
    %c0_19 = arith.constant 0 : index
    %c0_20 = arith.constant 0 : index
    %45 = vector.load %arg4[%c0_18, %c0_19, %c0_20] : memref<2x8x128xf32, #tpu.memory_space<vmem>>, vector<1x8x128xf32>
    %46 = vector.shape_cast %45 : vector<1x8x128xf32> to vector<8x128xf32>
    %47 = vector.extract_strided_slice %46 {offsets = [0, 0], sizes = [1, 96], strides = [1, 1]} : vector<8x128xf32> to vector<1x96xf32>
    %48 = vector.extract_strided_slice %46 {offsets = [1, 0], sizes = [1, 32], strides = [1, 1]} : vector<8x128xf32> to vector<1x32xf32>
    %49 = vector.extract_strided_slice %46 {offsets = [2, 0], sizes = [1, 64], strides = [1, 1]} : vector<8x128xf32> to vector<1x64xf32>
    %50 = vector.extract_strided_slice %46 {offsets = [3, 0], sizes = [1, 32], strides = [1, 1]} : vector<8x128xf32> to vector<1x32xf32>
    %51 = vector.extract_strided_slice %46 {offsets = [4, 0], sizes = [1, 32], strides = [1, 1]} : vector<8x128xf32> to vector<1x32xf32>
    %52 = vector.extract_strided_slice %46 {offsets = [5, 0], sizes = [1, 32], strides = [1, 1]} : vector<8x128xf32> to vector<1x32xf32>
    %53 = vector.extract_strided_slice %46 {offsets = [6, 0], sizes = [1, 32], strides = [1, 1]} : vector<8x128xf32> to vector<1x32xf32>
    %54 = vector.extract_strided_slice %46 {offsets = [7, 0], sizes = [1, 32], strides = [1, 1]} : vector<8x128xf32> to vector<1x32xf32>
    %cst_21 = arith.constant dense<0.000000e+00> : vector<40x96xf32>
    %55 = tpu.matmul %27, %40, %cst_21 {dimension_numbers = #tpu.dot_dimension_numbers<[1], [0], [0], [1], [0, 0, 1, 1], [], []>} : vector<40x32xf32>, vector<32x96xf32>, vector<40x96xf32> -> vector<40x96xf32>
    %56 = vector.broadcast %47 : vector<1x96xf32> to vector<40x96xf32>
    %57 = arith.addf %55, %56 : vector<40x96xf32>
    %58 = vector.extract_strided_slice %57 {offsets = [0, 0], sizes = [40, 8], strides = [1, 1]} : vector<40x96xf32> to vector<40x8xf32>
    %59 = vector.extract_strided_slice %57 {offsets = [0, 32], sizes = [40, 8], strides = [1, 1]} : vector<40x96xf32> to vector<40x8xf32>
    %60 = vector.extract_strided_slice %57 {offsets = [0, 64], sizes = [40, 8], strides = [1, 1]} : vector<40x96xf32> to vector<40x8xf32>
    %cst_22 = arith.constant dense<0.000000e+00> : vector<40x40xf32>
    %61 = tpu.matmul %58, %59, %cst_22 {dimension_numbers = #tpu.dot_dimension_numbers<[1], [1], [0], [0], [0, 0, 1, 0], [], []>} : vector<40x8xf32>, vector<40x8xf32>, vector<40x40xf32> -> vector<40x40xf32>
    %62 = arith.addf %61, %37 : vector<40x40xf32>
    %cst_23 = arith.constant dense<0xFF800000> : vector<40xf32>
    %63 = vector.multi_reduction <maximumf>, %62, %cst_23 [1] : vector<40x40xf32> to vector<40xf32>
    %64 = vector.shape_cast %63 : vector<40xf32> to vector<40x1xf32>
    %65 = vector.broadcast %64 : vector<40x1xf32> to vector<40x40xf32>
    %66 = arith.subf %62, %65 : vector<40x40xf32>
    %67 = math.exp %66 : vector<40x40xf32>
    %cst_24 = arith.constant dense<0.000000e+00> : vector<40xf32>
    %68 = vector.multi_reduction <add>, %67, %cst_24 [1] : vector<40x40xf32> to vector<40xf32>
    %69 = vector.shape_cast %68 : vector<40xf32> to vector<40x1xf32>
    %cst_25 = arith.constant 1.000000e+00 : f32
    %70 = vector.broadcast %cst_25 : f32 to vector<40x1xf32>
    %71 = arith.divf %70, %69 : vector<40x1xf32>
    %72 = vector.broadcast %71 : vector<40x1xf32> to vector<40x40xf32>
    %73 = arith.mulf %67, %72 : vector<40x40xf32>
    %cst_26 = arith.constant dense<0.000000e+00> : vector<40x8xf32>
    %74 = tpu.matmul %73, %60, %cst_26 {dimension_numbers = #tpu.dot_dimension_numbers<[1], [0], [0], [1], [0, 0, 1, 1], [], []>} : vector<40x40xf32>, vector<40x8xf32>, vector<40x8xf32> -> vector<40x8xf32>
    %75 = vector.extract_strided_slice %57 {offsets = [0, 8], sizes = [40, 8], strides = [1, 1]} : vector<40x96xf32> to vector<40x8xf32>
    %76 = vector.extract_strided_slice %57 {offsets = [0, 40], sizes = [40, 8], strides = [1, 1]} : vector<40x96xf32> to vector<40x8xf32>
    %77 = vector.extract_strided_slice %57 {offsets = [0, 72], sizes = [40, 8], strides = [1, 1]} : vector<40x96xf32> to vector<40x8xf32>
    %cst_27 = arith.constant dense<0.000000e+00> : vector<40x40xf32>
    %78 = tpu.matmul %75, %76, %cst_27 {dimension_numbers = #tpu.dot_dimension_numbers<[1], [1], [0], [0], [0, 0, 1, 0], [], []>} : vector<40x8xf32>, vector<40x8xf32>, vector<40x40xf32> -> vector<40x40xf32>
    %79 = arith.addf %78, %37 : vector<40x40xf32>
    %cst_28 = arith.constant dense<0xFF800000> : vector<40xf32>
    %80 = vector.multi_reduction <maximumf>, %79, %cst_28 [1] : vector<40x40xf32> to vector<40xf32>
    %81 = vector.shape_cast %80 : vector<40xf32> to vector<40x1xf32>
    %82 = vector.broadcast %81 : vector<40x1xf32> to vector<40x40xf32>
    %83 = arith.subf %79, %82 : vector<40x40xf32>
    %84 = math.exp %83 : vector<40x40xf32>
    %cst_29 = arith.constant dense<0.000000e+00> : vector<40xf32>
    %85 = vector.multi_reduction <add>, %84, %cst_29 [1] : vector<40x40xf32> to vector<40xf32>
    %86 = vector.shape_cast %85 : vector<40xf32> to vector<40x1xf32>
    %cst_30 = arith.constant 1.000000e+00 : f32
    %87 = vector.broadcast %cst_30 : f32 to vector<40x1xf32>
    %88 = arith.divf %87, %86 : vector<40x1xf32>
    %89 = vector.broadcast %88 : vector<40x1xf32> to vector<40x40xf32>
    %90 = arith.mulf %84, %89 : vector<40x40xf32>
    %cst_31 = arith.constant dense<0.000000e+00> : vector<40x8xf32>
    %91 = tpu.matmul %90, %77, %cst_31 {dimension_numbers = #tpu.dot_dimension_numbers<[1], [0], [0], [1], [0, 0, 1, 1], [], []>} : vector<40x40xf32>, vector<40x8xf32>, vector<40x8xf32> -> vector<40x8xf32>
    %92 = vector.extract_strided_slice %57 {offsets = [0, 16], sizes = [40, 8], strides = [1, 1]} : vector<40x96xf32> to vector<40x8xf32>
    %93 = vector.extract_strided_slice %57 {offsets = [0, 48], sizes = [40, 8], strides = [1, 1]} : vector<40x96xf32> to vector<40x8xf32>
    %94 = vector.extract_strided_slice %57 {offsets = [0, 80], sizes = [40, 8], strides = [1, 1]} : vector<40x96xf32> to vector<40x8xf32>
    %cst_32 = arith.constant dense<0.000000e+00> : vector<40x40xf32>
    %95 = tpu.matmul %92, %93, %cst_32 {dimension_numbers = #tpu.dot_dimension_numbers<[1], [1], [0], [0], [0, 0, 1, 0], [], []>} : vector<40x8xf32>, vector<40x8xf32>, vector<40x40xf32> -> vector<40x40xf32>
    %96 = arith.addf %95, %37 : vector<40x40xf32>
    %cst_33 = arith.constant dense<0xFF800000> : vector<40xf32>
    %97 = vector.multi_reduction <maximumf>, %96, %cst_33 [1] : vector<40x40xf32> to vector<40xf32>
    %98 = vector.shape_cast %97 : vector<40xf32> to vector<40x1xf32>
    %99 = vector.broadcast %98 : vector<40x1xf32> to vector<40x40xf32>
    %100 = arith.subf %96, %99 : vector<40x40xf32>
    %101 = math.exp %100 : vector<40x40xf32>
    %cst_34 = arith.constant dense<0.000000e+00> : vector<40xf32>
    %102 = vector.multi_reduction <add>, %101, %cst_34 [1] : vector<40x40xf32> to vector<40xf32>
    %103 = vector.shape_cast %102 : vector<40xf32> to vector<40x1xf32>
    %cst_35 = arith.constant 1.000000e+00 : f32
    %104 = vector.broadcast %cst_35 : f32 to vector<40x1xf32>
    %105 = arith.divf %104, %103 : vector<40x1xf32>
    %106 = vector.broadcast %105 : vector<40x1xf32> to vector<40x40xf32>
    %107 = arith.mulf %101, %106 : vector<40x40xf32>
    %cst_36 = arith.constant dense<0.000000e+00> : vector<40x8xf32>
    %108 = tpu.matmul %107, %94, %cst_36 {dimension_numbers = #tpu.dot_dimension_numbers<[1], [0], [0], [1], [0, 0, 1, 1], [], []>} : vector<40x40xf32>, vector<40x8xf32>, vector<40x8xf32> -> vector<40x8xf32>
    %109 = vector.extract_strided_slice %57 {offsets = [0, 24], sizes = [40, 8], strides = [1, 1]} : vector<40x96xf32> to vector<40x8xf32>
    %110 = vector.extract_strided_slice %57 {offsets = [0, 56], sizes = [40, 8], strides = [1, 1]} : vector<40x96xf32> to vector<40x8xf32>
    %111 = vector.extract_strided_slice %57 {offsets = [0, 88], sizes = [40, 8], strides = [1, 1]} : vector<40x96xf32> to vector<40x8xf32>
    %cst_37 = arith.constant dense<0.000000e+00> : vector<40x40xf32>
    %112 = tpu.matmul %109, %110, %cst_37 {dimension_numbers = #tpu.dot_dimension_numbers<[1], [1], [0], [0], [0, 0, 1, 0], [], []>} : vector<40x8xf32>, vector<40x8xf32>, vector<40x40xf32> -> vector<40x40xf32>
    %113 = arith.addf %112, %37 : vector<40x40xf32>
    %cst_38 = arith.constant dense<0xFF800000> : vector<40xf32>
    %114 = vector.multi_reduction <maximumf>, %113, %cst_38 [1] : vector<40x40xf32> to vector<40xf32>
    %115 = vector.shape_cast %114 : vector<40xf32> to vector<40x1xf32>
    %116 = vector.broadcast %115 : vector<40x1xf32> to vector<40x40xf32>
    %117 = arith.subf %113, %116 : vector<40x40xf32>
    %118 = math.exp %117 : vector<40x40xf32>
    %cst_39 = arith.constant dense<0.000000e+00> : vector<40xf32>
    %119 = vector.multi_reduction <add>, %118, %cst_39 [1] : vector<40x40xf32> to vector<40xf32>
    %120 = vector.shape_cast %119 : vector<40xf32> to vector<40x1xf32>
    %cst_40 = arith.constant 1.000000e+00 : f32
    %121 = vector.broadcast %cst_40 : f32 to vector<40x1xf32>
    %122 = arith.divf %121, %120 : vector<40x1xf32>
    %123 = vector.broadcast %122 : vector<40x1xf32> to vector<40x40xf32>
    %124 = arith.mulf %118, %123 : vector<40x40xf32>
    %cst_41 = arith.constant dense<0.000000e+00> : vector<40x8xf32>
    %125 = tpu.matmul %124, %111, %cst_41 {dimension_numbers = #tpu.dot_dimension_numbers<[1], [0], [0], [1], [0, 0, 1, 1], [], []>} : vector<40x40xf32>, vector<40x8xf32>, vector<40x8xf32> -> vector<40x8xf32>
    %126 = tpu.concatenate %74, %91, %108, %125 in 1 : vector<40x8xf32>, vector<40x8xf32>, vector<40x8xf32>, vector<40x8xf32> -> vector<40x32xf32>
    %cst_42 = arith.constant dense<0.000000e+00> : vector<40x32xf32>
    %127 = tpu.matmul %126, %41, %cst_42 {dimension_numbers = #tpu.dot_dimension_numbers<[1], [0], [0], [1], [0, 0, 1, 1], [], []>} : vector<40x32xf32>, vector<32x32xf32>, vector<40x32xf32> -> vector<40x32xf32>
    %128 = vector.broadcast %48 : vector<1x32xf32> to vector<40x32xf32>
    %129 = arith.addf %127, %128 : vector<40x32xf32>
    %130 = arith.addf %27, %129 : vector<40x32xf32>
    %cst_43 = arith.constant dense<0.000000e+00> : vector<40xf32>
    %131 = vector.multi_reduction <add>, %130, %cst_43 [1] : vector<40x32xf32> to vector<40xf32>
    %132 = vector.shape_cast %131 : vector<40xf32> to vector<40x1xf32>
    %cst_44 = arith.constant 3.200000e+01 : f32
    %133 = vector.broadcast %cst_44 : f32 to vector<40x1xf32>
    %134 = arith.divf %132, %133 : vector<40x1xf32>
    %135 = vector.broadcast %134 : vector<40x1xf32> to vector<40x32xf32>
    %136 = arith.subf %130, %135 : vector<40x32xf32>
    %137 = arith.mulf %136, %136 : vector<40x32xf32>
    %cst_45 = arith.constant dense<0.000000e+00> : vector<40xf32>
    %138 = vector.multi_reduction <add>, %137, %cst_45 [1] : vector<40x32xf32> to vector<40xf32>
    %139 = vector.shape_cast %138 : vector<40xf32> to vector<40x1xf32>
    %cst_46 = arith.constant 3.200000e+01 : f32
    %140 = vector.broadcast %cst_46 : f32 to vector<40x1xf32>
    %141 = arith.divf %139, %140 : vector<40x1xf32>
    %142 = vector.broadcast %134 : vector<40x1xf32> to vector<40x32xf32>
    %143 = arith.subf %130, %142 : vector<40x32xf32>
    %cst_47 = arith.constant 9.99999974E-6 : f32
    %144 = vector.broadcast %cst_47 : f32 to vector<40x1xf32>
    %145 = arith.addf %141, %144 : vector<40x1xf32>
    %146 = math.rsqrt %145 : vector<40x1xf32>
    %147 = vector.broadcast %146 : vector<40x1xf32> to vector<40x32xf32>
    %148 = arith.mulf %143, %147 : vector<40x32xf32>
    %149 = vector.broadcast %51 : vector<1x32xf32> to vector<40x32xf32>
    %150 = arith.mulf %148, %149 : vector<40x32xf32>
    %151 = vector.broadcast %52 : vector<1x32xf32> to vector<40x32xf32>
    %152 = arith.addf %150, %151 : vector<40x32xf32>
    %cst_48 = arith.constant dense<0.000000e+00> : vector<40x64xf32>
    %153 = tpu.matmul %152, %42, %cst_48 {dimension_numbers = #tpu.dot_dimension_numbers<[1], [0], [0], [1], [0, 0, 1, 1], [], []>} : vector<40x32xf32>, vector<32x64xf32>, vector<40x64xf32> -> vector<40x64xf32>
    %154 = vector.broadcast %49 : vector<1x64xf32> to vector<40x64xf32>
    %155 = arith.addf %153, %154 : vector<40x64xf32>
    %156 = arith.mulf %155, %155 : vector<40x64xf32>
    %157 = arith.mulf %155, %156 : vector<40x64xf32>
    %cst_49 = arith.constant 4.471500e-02 : f32
    %158 = vector.broadcast %cst_49 : f32 to vector<40x64xf32>
    %159 = arith.mulf %158, %157 : vector<40x64xf32>
    %160 = arith.addf %155, %159 : vector<40x64xf32>
    %cst_50 = arith.constant 0.797884583 : f32
    %161 = vector.broadcast %cst_50 : f32 to vector<40x64xf32>
    %162 = arith.mulf %161, %160 : vector<40x64xf32>
    %163 = math.tanh %162 : vector<40x64xf32>
    %cst_51 = arith.constant 1.000000e+00 : f32
    %164 = vector.broadcast %cst_51 : f32 to vector<40x64xf32>
    %165 = arith.addf %164, %163 : vector<40x64xf32>
    %cst_52 = arith.constant 5.000000e-01 : f32
    %166 = vector.broadcast %cst_52 : f32 to vector<40x64xf32>
    %167 = arith.mulf %166, %165 : vector<40x64xf32>
    %168 = arith.mulf %155, %167 : vector<40x64xf32>
    %cst_53 = arith.constant dense<0.000000e+00> : vector<40x32xf32>
    %169 = tpu.matmul %168, %44, %cst_53 {dimension_numbers = #tpu.dot_dimension_numbers<[1], [0], [0], [1], [0, 0, 1, 1], [], []>} : vector<40x64xf32>, vector<64x32xf32>, vector<40x32xf32> -> vector<40x32xf32>
    %170 = vector.broadcast %50 : vector<1x32xf32> to vector<40x32xf32>
    %171 = arith.addf %169, %170 : vector<40x32xf32>
    %172 = arith.addf %152, %171 : vector<40x32xf32>
    %cst_54 = arith.constant dense<0.000000e+00> : vector<40xf32>
    %173 = vector.multi_reduction <add>, %172, %cst_54 [1] : vector<40x32xf32> to vector<40xf32>
    %174 = vector.shape_cast %173 : vector<40xf32> to vector<40x1xf32>
    %cst_55 = arith.constant 3.200000e+01 : f32
    %175 = vector.broadcast %cst_55 : f32 to vector<40x1xf32>
    %176 = arith.divf %174, %175 : vector<40x1xf32>
    %177 = vector.broadcast %176 : vector<40x1xf32> to vector<40x32xf32>
    %178 = arith.subf %172, %177 : vector<40x32xf32>
    %179 = arith.mulf %178, %178 : vector<40x32xf32>
    %cst_56 = arith.constant dense<0.000000e+00> : vector<40xf32>
    %180 = vector.multi_reduction <add>, %179, %cst_56 [1] : vector<40x32xf32> to vector<40xf32>
    %181 = vector.shape_cast %180 : vector<40xf32> to vector<40x1xf32>
    %cst_57 = arith.constant 3.200000e+01 : f32
    %182 = vector.broadcast %cst_57 : f32 to vector<40x1xf32>
    %183 = arith.divf %181, %182 : vector<40x1xf32>
    %184 = vector.broadcast %176 : vector<40x1xf32> to vector<40x32xf32>
    %185 = arith.subf %172, %184 : vector<40x32xf32>
    %cst_58 = arith.constant 9.99999974E-6 : f32
    %186 = vector.broadcast %cst_58 : f32 to vector<40x1xf32>
    %187 = arith.addf %183, %186 : vector<40x1xf32>
    %188 = math.rsqrt %187 : vector<40x1xf32>
    %189 = vector.broadcast %188 : vector<40x1xf32> to vector<40x32xf32>
    %190 = arith.mulf %185, %189 : vector<40x32xf32>
    %191 = vector.broadcast %53 : vector<1x32xf32> to vector<40x32xf32>
    %192 = arith.mulf %190, %191 : vector<40x32xf32>
    %193 = vector.broadcast %54 : vector<1x32xf32> to vector<40x32xf32>
    %194 = arith.addf %192, %193 : vector<40x32xf32>
    %c1 = arith.constant 1 : index
    %c0_59 = arith.constant 0 : index
    %c0_60 = arith.constant 0 : index
    %195 = vector.load %arg2[%c1, %c0_59, %c0_60] : memref<2x32x192xf32, #tpu.memory_space<vmem>>, vector<1x32x192xf32>
    %196 = vector.shape_cast %195 : vector<1x32x192xf32> to vector<32x192xf32>
    %197 = vector.extract_strided_slice %196 {offsets = [0, 0], sizes = [32, 96], strides = [1, 1]} : vector<32x192xf32> to vector<32x96xf32>
    %198 = vector.extract_strided_slice %196 {offsets = [0, 96], sizes = [32, 32], strides = [1, 1]} : vector<32x192xf32> to vector<32x32xf32>
    %199 = vector.extract_strided_slice %196 {offsets = [0, 128], sizes = [32, 64], strides = [1, 1]} : vector<32x192xf32> to vector<32x64xf32>
    %c1_61 = arith.constant 1 : index
    %c0_62 = arith.constant 0 : index
    %c0_63 = arith.constant 0 : index
    %200 = vector.load %arg3[%c1_61, %c0_62, %c0_63] : memref<2x64x32xf32, #tpu.memory_space<vmem>>, vector<1x64x32xf32>
    %201 = vector.shape_cast %200 : vector<1x64x32xf32> to vector<64x32xf32>
    %c1_64 = arith.constant 1 : index
    %c0_65 = arith.constant 0 : index
    %c0_66 = arith.constant 0 : index
    %202 = vector.load %arg4[%c1_64, %c0_65, %c0_66] : memref<2x8x128xf32, #tpu.memory_space<vmem>>, vector<1x8x128xf32>
    %203 = vector.shape_cast %202 : vector<1x8x128xf32> to vector<8x128xf32>
    %204 = vector.extract_strided_slice %203 {offsets = [0, 0], sizes = [1, 96], strides = [1, 1]} : vector<8x128xf32> to vector<1x96xf32>
    %205 = vector.extract_strided_slice %203 {offsets = [1, 0], sizes = [1, 32], strides = [1, 1]} : vector<8x128xf32> to vector<1x32xf32>
    %206 = vector.extract_strided_slice %203 {offsets = [2, 0], sizes = [1, 64], strides = [1, 1]} : vector<8x128xf32> to vector<1x64xf32>
    %207 = vector.extract_strided_slice %203 {offsets = [3, 0], sizes = [1, 32], strides = [1, 1]} : vector<8x128xf32> to vector<1x32xf32>
    %208 = vector.extract_strided_slice %203 {offsets = [4, 0], sizes = [1, 32], strides = [1, 1]} : vector<8x128xf32> to vector<1x32xf32>
    %209 = vector.extract_strided_slice %203 {offsets = [5, 0], sizes = [1, 32], strides = [1, 1]} : vector<8x128xf32> to vector<1x32xf32>
    %210 = vector.extract_strided_slice %203 {offsets = [6, 0], sizes = [1, 32], strides = [1, 1]} : vector<8x128xf32> to vector<1x32xf32>
    %211 = vector.extract_strided_slice %203 {offsets = [7, 0], sizes = [1, 32], strides = [1, 1]} : vector<8x128xf32> to vector<1x32xf32>
    %cst_67 = arith.constant dense<0.000000e+00> : vector<40x96xf32>
    %212 = tpu.matmul %194, %197, %cst_67 {dimension_numbers = #tpu.dot_dimension_numbers<[1], [0], [0], [1], [0, 0, 1, 1], [], []>} : vector<40x32xf32>, vector<32x96xf32>, vector<40x96xf32> -> vector<40x96xf32>
    %213 = vector.broadcast %204 : vector<1x96xf32> to vector<40x96xf32>
    %214 = arith.addf %212, %213 : vector<40x96xf32>
    %215 = vector.extract_strided_slice %214 {offsets = [0, 0], sizes = [40, 8], strides = [1, 1]} : vector<40x96xf32> to vector<40x8xf32>
    %216 = vector.extract_strided_slice %214 {offsets = [0, 32], sizes = [40, 8], strides = [1, 1]} : vector<40x96xf32> to vector<40x8xf32>
    %217 = vector.extract_strided_slice %214 {offsets = [0, 64], sizes = [40, 8], strides = [1, 1]} : vector<40x96xf32> to vector<40x8xf32>
    %cst_68 = arith.constant dense<0.000000e+00> : vector<40x40xf32>
    %218 = tpu.matmul %215, %216, %cst_68 {dimension_numbers = #tpu.dot_dimension_numbers<[1], [1], [0], [0], [0, 0, 1, 0], [], []>} : vector<40x8xf32>, vector<40x8xf32>, vector<40x40xf32> -> vector<40x40xf32>
    %219 = arith.addf %218, %37 : vector<40x40xf32>
    %cst_69 = arith.constant dense<0xFF800000> : vector<40xf32>
    %220 = vector.multi_reduction <maximumf>, %219, %cst_69 [1] : vector<40x40xf32> to vector<40xf32>
    %221 = vector.shape_cast %220 : vector<40xf32> to vector<40x1xf32>
    %222 = vector.broadcast %221 : vector<40x1xf32> to vector<40x40xf32>
    %223 = arith.subf %219, %222 : vector<40x40xf32>
    %224 = math.exp %223 : vector<40x40xf32>
    %cst_70 = arith.constant dense<0.000000e+00> : vector<40xf32>
    %225 = vector.multi_reduction <add>, %224, %cst_70 [1] : vector<40x40xf32> to vector<40xf32>
    %226 = vector.shape_cast %225 : vector<40xf32> to vector<40x1xf32>
    %cst_71 = arith.constant 1.000000e+00 : f32
    %227 = vector.broadcast %cst_71 : f32 to vector<40x1xf32>
    %228 = arith.divf %227, %226 : vector<40x1xf32>
    %229 = vector.broadcast %228 : vector<40x1xf32> to vector<40x40xf32>
    %230 = arith.mulf %224, %229 : vector<40x40xf32>
    %cst_72 = arith.constant dense<0.000000e+00> : vector<40x8xf32>
    %231 = tpu.matmul %230, %217, %cst_72 {dimension_numbers = #tpu.dot_dimension_numbers<[1], [0], [0], [1], [0, 0, 1, 1], [], []>} : vector<40x40xf32>, vector<40x8xf32>, vector<40x8xf32> -> vector<40x8xf32>
    %232 = vector.extract_strided_slice %214 {offsets = [0, 8], sizes = [40, 8], strides = [1, 1]} : vector<40x96xf32> to vector<40x8xf32>
    %233 = vector.extract_strided_slice %214 {offsets = [0, 40], sizes = [40, 8], strides = [1, 1]} : vector<40x96xf32> to vector<40x8xf32>
    %234 = vector.extract_strided_slice %214 {offsets = [0, 72], sizes = [40, 8], strides = [1, 1]} : vector<40x96xf32> to vector<40x8xf32>
    %cst_73 = arith.constant dense<0.000000e+00> : vector<40x40xf32>
    %235 = tpu.matmul %232, %233, %cst_73 {dimension_numbers = #tpu.dot_dimension_numbers<[1], [1], [0], [0], [0, 0, 1, 0], [], []>} : vector<40x8xf32>, vector<40x8xf32>, vector<40x40xf32> -> vector<40x40xf32>
    %236 = arith.addf %235, %37 : vector<40x40xf32>
    %cst_74 = arith.constant dense<0xFF800000> : vector<40xf32>
    %237 = vector.multi_reduction <maximumf>, %236, %cst_74 [1] : vector<40x40xf32> to vector<40xf32>
    %238 = vector.shape_cast %237 : vector<40xf32> to vector<40x1xf32>
    %239 = vector.broadcast %238 : vector<40x1xf32> to vector<40x40xf32>
    %240 = arith.subf %236, %239 : vector<40x40xf32>
    %241 = math.exp %240 : vector<40x40xf32>
    %cst_75 = arith.constant dense<0.000000e+00> : vector<40xf32>
    %242 = vector.multi_reduction <add>, %241, %cst_75 [1] : vector<40x40xf32> to vector<40xf32>
    %243 = vector.shape_cast %242 : vector<40xf32> to vector<40x1xf32>
    %cst_76 = arith.constant 1.000000e+00 : f32
    %244 = vector.broadcast %cst_76 : f32 to vector<40x1xf32>
    %245 = arith.divf %244, %243 : vector<40x1xf32>
    %246 = vector.broadcast %245 : vector<40x1xf32> to vector<40x40xf32>
    %247 = arith.mulf %241, %246 : vector<40x40xf32>
    %cst_77 = arith.constant dense<0.000000e+00> : vector<40x8xf32>
    %248 = tpu.matmul %247, %234, %cst_77 {dimension_numbers = #tpu.dot_dimension_numbers<[1], [0], [0], [1], [0, 0, 1, 1], [], []>} : vector<40x40xf32>, vector<40x8xf32>, vector<40x8xf32> -> vector<40x8xf32>
    %249 = vector.extract_strided_slice %214 {offsets = [0, 16], sizes = [40, 8], strides = [1, 1]} : vector<40x96xf32> to vector<40x8xf32>
    %250 = vector.extract_strided_slice %214 {offsets = [0, 48], sizes = [40, 8], strides = [1, 1]} : vector<40x96xf32> to vector<40x8xf32>
    %251 = vector.extract_strided_slice %214 {offsets = [0, 80], sizes = [40, 8], strides = [1, 1]} : vector<40x96xf32> to vector<40x8xf32>
    %cst_78 = arith.constant dense<0.000000e+00> : vector<40x40xf32>
    %252 = tpu.matmul %249, %250, %cst_78 {dimension_numbers = #tpu.dot_dimension_numbers<[1], [1], [0], [0], [0, 0, 1, 0], [], []>} : vector<40x8xf32>, vector<40x8xf32>, vector<40x40xf32> -> vector<40x40xf32>
    %253 = arith.addf %252, %37 : vector<40x40xf32>
    %cst_79 = arith.constant dense<0xFF800000> : vector<40xf32>
    %254 = vector.multi_reduction <maximumf>, %253, %cst_79 [1] : vector<40x40xf32> to vector<40xf32>
    %255 = vector.shape_cast %254 : vector<40xf32> to vector<40x1xf32>
    %256 = vector.broadcast %255 : vector<40x1xf32> to vector<40x40xf32>
    %257 = arith.subf %253, %256 : vector<40x40xf32>
    %258 = math.exp %257 : vector<40x40xf32>
    %cst_80 = arith.constant dense<0.000000e+00> : vector<40xf32>
    %259 = vector.multi_reduction <add>, %258, %cst_80 [1] : vector<40x40xf32> to vector<40xf32>
    %260 = vector.shape_cast %259 : vector<40xf32> to vector<40x1xf32>
    %cst_81 = arith.constant 1.000000e+00 : f32
    %261 = vector.broadcast %cst_81 : f32 to vector<40x1xf32>
    %262 = arith.divf %261, %260 : vector<40x1xf32>
    %263 = vector.broadcast %262 : vector<40x1xf32> to vector<40x40xf32>
    %264 = arith.mulf %258, %263 : vector<40x40xf32>
    %cst_82 = arith.constant dense<0.000000e+00> : vector<40x8xf32>
    %265 = tpu.matmul %264, %251, %cst_82 {dimension_numbers = #tpu.dot_dimension_numbers<[1], [0], [0], [1], [0, 0, 1, 1], [], []>} : vector<40x40xf32>, vector<40x8xf32>, vector<40x8xf32> -> vector<40x8xf32>
    %266 = vector.extract_strided_slice %214 {offsets = [0, 24], sizes = [40, 8], strides = [1, 1]} : vector<40x96xf32> to vector<40x8xf32>
    %267 = vector.extract_strided_slice %214 {offsets = [0, 56], sizes = [40, 8], strides = [1, 1]} : vector<40x96xf32> to vector<40x8xf32>
    %268 = vector.extract_strided_slice %214 {offsets = [0, 88], sizes = [40, 8], strides = [1, 1]} : vector<40x96xf32> to vector<40x8xf32>
    %cst_83 = arith.constant dense<0.000000e+00> : vector<40x40xf32>
    %269 = tpu.matmul %266, %267, %cst_83 {dimension_numbers = #tpu.dot_dimension_numbers<[1], [1], [0], [0], [0, 0, 1, 0], [], []>} : vector<40x8xf32>, vector<40x8xf32>, vector<40x40xf32> -> vector<40x40xf32>
    %270 = arith.addf %269, %37 : vector<40x40xf32>
    %cst_84 = arith.constant dense<0xFF800000> : vector<40xf32>
    %271 = vector.multi_reduction <maximumf>, %270, %cst_84 [1] : vector<40x40xf32> to vector<40xf32>
    %272 = vector.shape_cast %271 : vector<40xf32> to vector<40x1xf32>
    %273 = vector.broadcast %272 : vector<40x1xf32> to vector<40x40xf32>
    %274 = arith.subf %270, %273 : vector<40x40xf32>
    %275 = math.exp %274 : vector<40x40xf32>
    %cst_85 = arith.constant dense<0.000000e+00> : vector<40xf32>
    %276 = vector.multi_reduction <add>, %275, %cst_85 [1] : vector<40x40xf32> to vector<40xf32>
    %277 = vector.shape_cast %276 : vector<40xf32> to vector<40x1xf32>
    %cst_86 = arith.constant 1.000000e+00 : f32
    %278 = vector.broadcast %cst_86 : f32 to vector<40x1xf32>
    %279 = arith.divf %278, %277 : vector<40x1xf32>
    %280 = vector.broadcast %279 : vector<40x1xf32> to vector<40x40xf32>
    %281 = arith.mulf %275, %280 : vector<40x40xf32>
    %cst_87 = arith.constant dense<0.000000e+00> : vector<40x8xf32>
    %282 = tpu.matmul %281, %268, %cst_87 {dimension_numbers = #tpu.dot_dimension_numbers<[1], [0], [0], [1], [0, 0, 1, 1], [], []>} : vector<40x40xf32>, vector<40x8xf32>, vector<40x8xf32> -> vector<40x8xf32>
    %283 = tpu.concatenate %231, %248, %265, %282 in 1 : vector<40x8xf32>, vector<40x8xf32>, vector<40x8xf32>, vector<40x8xf32> -> vector<40x32xf32>
    %cst_88 = arith.constant dense<0.000000e+00> : vector<40x32xf32>
    %284 = tpu.matmul %283, %198, %cst_88 {dimension_numbers = #tpu.dot_dimension_numbers<[1], [0], [0], [1], [0, 0, 1, 1], [], []>} : vector<40x32xf32>, vector<32x32xf32>, vector<40x32xf32> -> vector<40x32xf32>
    %285 = vector.broadcast %205 : vector<1x32xf32> to vector<40x32xf32>
    %286 = arith.addf %284, %285 : vector<40x32xf32>
    %287 = arith.addf %194, %286 : vector<40x32xf32>
    %cst_89 = arith.constant dense<0.000000e+00> : vector<40xf32>
    %288 = vector.multi_reduction <add>, %287, %cst_89 [1] : vector<40x32xf32> to vector<40xf32>
    %289 = vector.shape_cast %288 : vector<40xf32> to vector<40x1xf32>
    %cst_90 = arith.constant 3.200000e+01 : f32
    %290 = vector.broadcast %cst_90 : f32 to vector<40x1xf32>
    %291 = arith.divf %289, %290 : vector<40x1xf32>
    %292 = vector.broadcast %291 : vector<40x1xf32> to vector<40x32xf32>
    %293 = arith.subf %287, %292 : vector<40x32xf32>
    %294 = arith.mulf %293, %293 : vector<40x32xf32>
    %cst_91 = arith.constant dense<0.000000e+00> : vector<40xf32>
    %295 = vector.multi_reduction <add>, %294, %cst_91 [1] : vector<40x32xf32> to vector<40xf32>
    %296 = vector.shape_cast %295 : vector<40xf32> to vector<40x1xf32>
    %cst_92 = arith.constant 3.200000e+01 : f32
    %297 = vector.broadcast %cst_92 : f32 to vector<40x1xf32>
    %298 = arith.divf %296, %297 : vector<40x1xf32>
    %299 = vector.broadcast %291 : vector<40x1xf32> to vector<40x32xf32>
    %300 = arith.subf %287, %299 : vector<40x32xf32>
    %cst_93 = arith.constant 9.99999974E-6 : f32
    %301 = vector.broadcast %cst_93 : f32 to vector<40x1xf32>
    %302 = arith.addf %298, %301 : vector<40x1xf32>
    %303 = math.rsqrt %302 : vector<40x1xf32>
    %304 = vector.broadcast %303 : vector<40x1xf32> to vector<40x32xf32>
    %305 = arith.mulf %300, %304 : vector<40x32xf32>
    %306 = vector.broadcast %208 : vector<1x32xf32> to vector<40x32xf32>
    %307 = arith.mulf %305, %306 : vector<40x32xf32>
    %308 = vector.broadcast %209 : vector<1x32xf32> to vector<40x32xf32>
    %309 = arith.addf %307, %308 : vector<40x32xf32>
    %cst_94 = arith.constant dense<0.000000e+00> : vector<40x64xf32>
    %310 = tpu.matmul %309, %199, %cst_94 {dimension_numbers = #tpu.dot_dimension_numbers<[1], [0], [0], [1], [0, 0, 1, 1], [], []>} : vector<40x32xf32>, vector<32x64xf32>, vector<40x64xf32> -> vector<40x64xf32>
    %311 = vector.broadcast %206 : vector<1x64xf32> to vector<40x64xf32>
    %312 = arith.addf %310, %311 : vector<40x64xf32>
    %313 = arith.mulf %312, %312 : vector<40x64xf32>
    %314 = arith.mulf %312, %313 : vector<40x64xf32>
    %cst_95 = arith.constant 4.471500e-02 : f32
    %315 = vector.broadcast %cst_95 : f32 to vector<40x64xf32>
    %316 = arith.mulf %315, %314 : vector<40x64xf32>
    %317 = arith.addf %312, %316 : vector<40x64xf32>
    %cst_96 = arith.constant 0.797884583 : f32
    %318 = vector.broadcast %cst_96 : f32 to vector<40x64xf32>
    %319 = arith.mulf %318, %317 : vector<40x64xf32>
    %320 = math.tanh %319 : vector<40x64xf32>
    %cst_97 = arith.constant 1.000000e+00 : f32
    %321 = vector.broadcast %cst_97 : f32 to vector<40x64xf32>
    %322 = arith.addf %321, %320 : vector<40x64xf32>
    %cst_98 = arith.constant 5.000000e-01 : f32
    %323 = vector.broadcast %cst_98 : f32 to vector<40x64xf32>
    %324 = arith.mulf %323, %322 : vector<40x64xf32>
    %325 = arith.mulf %312, %324 : vector<40x64xf32>
    %cst_99 = arith.constant dense<0.000000e+00> : vector<40x32xf32>
    %326 = tpu.matmul %325, %201, %cst_99 {dimension_numbers = #tpu.dot_dimension_numbers<[1], [0], [0], [1], [0, 0, 1, 1], [], []>} : vector<40x64xf32>, vector<64x32xf32>, vector<40x32xf32> -> vector<40x32xf32>
    %327 = vector.broadcast %207 : vector<1x32xf32> to vector<40x32xf32>
    %328 = arith.addf %326, %327 : vector<40x32xf32>
    %329 = arith.addf %309, %328 : vector<40x32xf32>
    %cst_100 = arith.constant dense<0.000000e+00> : vector<40xf32>
    %330 = vector.multi_reduction <add>, %329, %cst_100 [1] : vector<40x32xf32> to vector<40xf32>
    %331 = vector.shape_cast %330 : vector<40xf32> to vector<40x1xf32>
    %cst_101 = arith.constant 3.200000e+01 : f32
    %332 = vector.broadcast %cst_101 : f32 to vector<40x1xf32>
    %333 = arith.divf %331, %332 : vector<40x1xf32>
    %334 = vector.broadcast %333 : vector<40x1xf32> to vector<40x32xf32>
    %335 = arith.subf %329, %334 : vector<40x32xf32>
    %336 = arith.mulf %335, %335 : vector<40x32xf32>
    %cst_102 = arith.constant dense<0.000000e+00> : vector<40xf32>
    %337 = vector.multi_reduction <add>, %336, %cst_102 [1] : vector<40x32xf32> to vector<40xf32>
    %338 = vector.shape_cast %337 : vector<40xf32> to vector<40x1xf32>
    %cst_103 = arith.constant 3.200000e+01 : f32
    %339 = vector.broadcast %cst_103 : f32 to vector<40x1xf32>
    %340 = arith.divf %338, %339 : vector<40x1xf32>
    %341 = vector.broadcast %333 : vector<40x1xf32> to vector<40x32xf32>
    %342 = arith.subf %329, %341 : vector<40x32xf32>
    %cst_104 = arith.constant 9.99999974E-6 : f32
    %343 = vector.broadcast %cst_104 : f32 to vector<40x1xf32>
    %344 = arith.addf %340, %343 : vector<40x1xf32>
    %345 = math.rsqrt %344 : vector<40x1xf32>
    %346 = vector.broadcast %345 : vector<40x1xf32> to vector<40x32xf32>
    %347 = arith.mulf %342, %346 : vector<40x32xf32>
    %348 = vector.broadcast %210 : vector<1x32xf32> to vector<40x32xf32>
    %349 = arith.mulf %347, %348 : vector<40x32xf32>
    %350 = vector.broadcast %211 : vector<1x32xf32> to vector<40x32xf32>
    %351 = arith.addf %349, %350 : vector<40x32xf32>
    %c161 = arith.constant 161 : index
    %c0_105 = arith.constant 0 : index
    %352 = vector.load %arg5[%c161, %c0_105] : memref<163x32xf32, #tpu.memory_space<vmem>>, vector<1x32xf32>
    %c162 = arith.constant 162 : index
    %c0_106 = arith.constant 0 : index
    %353 = vector.load %arg5[%c162, %c0_106] : memref<163x32xf32, #tpu.memory_space<vmem>>, vector<1x32xf32>
    %cst_107 = arith.constant dense<0.000000e+00> : vector<40xf32>
    %354 = vector.multi_reduction <add>, %351, %cst_107 [1] : vector<40x32xf32> to vector<40xf32>
    %355 = vector.shape_cast %354 : vector<40xf32> to vector<40x1xf32>
    %cst_108 = arith.constant 3.200000e+01 : f32
    %356 = vector.broadcast %cst_108 : f32 to vector<40x1xf32>
    %357 = arith.divf %355, %356 : vector<40x1xf32>
    %358 = vector.broadcast %357 : vector<40x1xf32> to vector<40x32xf32>
    %359 = arith.subf %351, %358 : vector<40x32xf32>
    %360 = arith.mulf %359, %359 : vector<40x32xf32>
    %cst_109 = arith.constant dense<0.000000e+00> : vector<40xf32>
    %361 = vector.multi_reduction <add>, %360, %cst_109 [1] : vector<40x32xf32> to vector<40xf32>
    %362 = vector.shape_cast %361 : vector<40xf32> to vector<40x1xf32>
    %cst_110 = arith.constant 3.200000e+01 : f32
    %363 = vector.broadcast %cst_110 : f32 to vector<40x1xf32>
    %364 = arith.divf %362, %363 : vector<40x1xf32>
    %365 = vector.broadcast %357 : vector<40x1xf32> to vector<40x32xf32>
    %366 = arith.subf %351, %365 : vector<40x32xf32>
    %cst_111 = arith.constant 9.99999974E-6 : f32
    %367 = vector.broadcast %cst_111 : f32 to vector<40x1xf32>
    %368 = arith.addf %364, %367 : vector<40x1xf32>
    %369 = math.rsqrt %368 : vector<40x1xf32>
    %370 = vector.broadcast %369 : vector<40x1xf32> to vector<40x32xf32>
    %371 = arith.mulf %366, %370 : vector<40x32xf32>
    %372 = vector.broadcast %352 : vector<1x32xf32> to vector<40x32xf32>
    %373 = arith.mulf %371, %372 : vector<40x32xf32>
    %374 = vector.broadcast %353 : vector<1x32xf32> to vector<40x32xf32>
    %375 = arith.addf %373, %374 : vector<40x32xf32>
    %376 = vector.extract_strided_slice %375 {offsets = [0, 0], sizes = [8, 32], strides = [1, 1]} : vector<40x32xf32> to vector<8x32xf32>
    %377 = vector.extract_strided_slice %375 {offsets = [8, 0], sizes = [8, 32], strides = [1, 1]} : vector<40x32xf32> to vector<8x32xf32>
    %378 = vector.extract_strided_slice %375 {offsets = [16, 0], sizes = [8, 32], strides = [1, 1]} : vector<40x32xf32> to vector<8x32xf32>
    %379 = vector.extract_strided_slice %375 {offsets = [24, 0], sizes = [8, 32], strides = [1, 1]} : vector<40x32xf32> to vector<8x32xf32>
    %380 = vector.extract_strided_slice %375 {offsets = [32, 0], sizes = [8, 32], strides = [1, 1]} : vector<40x32xf32> to vector<8x32xf32>
    %381 = tpu.concatenate %376, %377, %378, %379, %380 in 1 : vector<8x32xf32>, vector<8x32xf32>, vector<8x32xf32>, vector<8x32xf32>, vector<8x32xf32> -> vector<8x160xf32>
    %c0_112 = arith.constant 0 : index
    %c0_113 = arith.constant 0 : index
    %382 = vector.load %arg5[%c0_112, %c0_113] : memref<163x32xf32, #tpu.memory_space<vmem>>, vector<160x8xf32>
    %c160 = arith.constant 160 : index
    %c0_114 = arith.constant 0 : index
    %383 = vector.load %arg5[%c160, %c0_114] : memref<163x32xf32, #tpu.memory_space<vmem>>, vector<1x8xf32>
    %cst_115 = arith.constant dense<0.000000e+00> : vector<8x8xf32>
    %384 = tpu.matmul %381, %382, %cst_115 {dimension_numbers = #tpu.dot_dimension_numbers<[1], [0], [0], [1], [0, 0, 1, 1], [], []>} : vector<8x160xf32>, vector<160x8xf32>, vector<8x8xf32> -> vector<8x8xf32>
    %385 = vector.broadcast %383 : vector<1x8xf32> to vector<8x8xf32>
    %386 = arith.addf %384, %385 : vector<8x8xf32>
    %cst_116 = arith.constant 9.99999974E-6 : f32
    %387 = vector.broadcast %cst_116 : f32 to vector<8x1xf32>
    %388 = arith.addf %11, %387 : vector<8x1xf32>
    %389 = arith.mulf %388, %14 : vector<8x1xf32>
    %390 = vector.broadcast %389 : vector<8x1xf32> to vector<8x8xf32>
    %391 = arith.mulf %386, %390 : vector<8x8xf32>
    %392 = vector.broadcast %4 : vector<8x1xf32> to vector<8x8xf32>
    %393 = arith.addf %391, %392 : vector<8x8xf32>
    %c0_117 = arith.constant 0 : index
    %c0_118 = arith.constant 0 : index
    %394 = vector.load %arg6[%c0_117, %c0_118] : memref<8x8xf32, #tpu.memory_space<vmem>>, vector<8x8xf32>
    tpu.vector_store %arg6[%c0_117, %c0_118], %393 {strides = array<i32>} : memref<8x8xf32, #tpu.memory_space<vmem>>, vector<8x8xf32>,
    return
  }
}

</mosaic_0001>

<llo_original>
// kernel: model_forward.1
$region0: #{model_forward.1}
  #allocation0 [shape = 'u32[]', space=smem, size = 0x4, offset = 0x4, fixed_abs, tag = 'smem constant byte address 0x4 - core index']
  #allocation1 [shape = 'u32[144,128]{1,0:T(1,128)}', space=vmem, size = 0x12000, scoped, tag = 'internal scratch']
  %s0 = inlined_call_operand.vmem [shape: f32[8,16], index: 0, kind: input, shape index: {}]
  %s1 = inlined_call_operand.vmem [shape: f32[17,160], index: 1, kind: input, shape index: {}]
  %s2 = inlined_call_operand.vmem [shape: f32[2,32,192], index: 2, kind: input, shape index: {}]
  %s3 = inlined_call_operand.vmem [shape: f32[2,64,32], index: 3, kind: input, shape index: {}]
  %s4 = inlined_call_operand.vmem [shape: f32[2,8,128], index: 4, kind: input, shape index: {}]
  %s5 = inlined_call_operand.vmem [shape: f32[163,32], index: 5, kind: input, shape index: {}]
  %s6 = inlined_call_operand.hbm [shape: f32[8,8], index: 6, kind: output, shape index: {}]
  %s7 = sld [smem:[#allocation0]]
  $region34: #{model_forward.1} parent=0
    _
  %s9 = ssub.s32 1, %s7
  %s10 = scalar_select 0, %s9, %s7
  $region1: #{model_forward.1} parent=0
    #allocation2 [shape = 'u8[4096]{0}', space=vmem, size = 0x1000, scoped, tag = 'output window, operand 0, single buffered']
    #allocation3 [shape = 's32[1]{0}', space=sflag, size = 0x4, scoped, tag = 'scoped memory for model_forward.1']
    %11 = vsyncpa [#allocation3], 0
    // Predicated region
    $region2: #{model_forward.1} parent=1 // pred_check
      _
    $region3: #{model_forward.1} parent=1 // pred_check_branch
      %13 = sbr.rel (0) target = $region5
    $region4: #{model_forward.1} parent=1 // pred_region
      _
    $region5: #{model_forward.1} parent=1 // pred_fallthru
      _
    // Predicated region
    $region6: #{model_forward.1} parent=1 // pred_check
      _
    $region7: #{model_forward.1} parent=1 // pred_check_branch
      %15 = sbr.rel (0) target = $region9
    $region8: #{model_forward.1} parent=1 // pred_region
      _
    $region9: #{model_forward.1} parent=1 // pred_fallthru
      _
    // Predicated region
    $region10: #{model_forward.1} parent=1 // pred_check
      _
    $region11: #{model_forward.1} parent=1 // pred_check_branch
      %17 = sbr.rel (0) target = $region13
    $region12: #{model_forward.1} parent=1 // pred_region
      _
    $region13: #{model_forward.1} parent=1 // pred_fallthru
      _
    // Predicated region
    $region14: #{model_forward.1} parent=1 // pred_check
      _
    $region15: #{model_forward.1} parent=1 // pred_check_branch
      %19 = sbr.rel (0) target = $region17
    $region16: #{model_forward.1} parent=1 // pred_region
      _
    $region17: #{model_forward.1} parent=1 // pred_fallthru
      _
    // Predicated region
    $region18: #{model_forward.1} parent=1 // pred_check
      _
    $region19: #{model_forward.1} parent=1 // pred_check_branch
      %21 = sbr.rel (0) target = $region21
    $region20: #{model_forward.1} parent=1 // pred_region
      _
    $region21: #{model_forward.1} parent=1 // pred_fallthru
      _
    // Predicated region
    $region22: #{model_forward.1} parent=1 // pred_check
      _
    $region23: #{model_forward.1} parent=1 // pred_check_branch
      %23 = sbr.rel (0) target = $region25
    $region24: #{model_forward.1} parent=1 // pred_region
      _
    $region25: #{model_forward.1} parent=1 // pred_fallthru
      _
    %v24 = vld [vmem:[%s0] sm:$0xff]
    %vm25 = vcmask 130048
    %v26 = vsel %vm25, %v24, 0.0
    %27 = vadd.xlane.f32.xlu0 %v26
    %v28 = vpop.xlane.xlu0 %27
    %v29 = vrcp.pop 16.0
    %v30 = vmul.f32 %v28, %v29
    %v31 = vsub.f32 %v24, %v30
    %v32 = vmul.f32 %v31, %v31
    %v33 = vsel %vm25, %v32, 0.0
    %34 = vadd.xlane.f32.xlu0 %v33
    %v35 = vpop.xlane.xlu0 %34
    %v36 = vmul.f32 %v35, %v29
    %v37 = vadd.f32 %v36, 1e-05
    %v38 = vrsqrt.pop %v37
    %v39 = vmul.f32 %v31, %v38
    %v40 = vld [vmem:[%s1] sm:$0xff]
    %v41 = vld [vmem:[%s1 + $0x8] sm:$0xff]
    %v42 = vld [vmem:[%s1 + $0x10] sm:$0xff]
    %v43 = vld [vmem:[%s1 + $0x18] sm:$0xff]
    %s44 = scalar_lea.vmem %s1, 32
    %v45 = vld [vmem:[%s44] ss:$8 sm:$0x3]
    %v47 = vlaneseq
    %v48 = vshrl.u32 %v47, 7
    %v49 = vsub.s32 0, %v48
    %v50 = vrot.slane %v45, %v49
    %v51 = vlaneseq
    %v52 = vshrl.u32 %v51, 7
    %v53 = vsub.s32 1, %v52
    %v54 = vrot.slane %v45, %v53
    %v58 = vsel %vm25, %v39, 0
    %60 = vmatprep.subr.mxu0 %v41
    %61 = vmatpush1.msra.mxu0 %v40
    %62 = vmatprep.subr.mxu0 %v43
    %63 = vmatpush1.msra.mxu0 %v42
    %64 = vmatprep.subr.mxu0 0.0
    %65 = vmatpush1.msra.mxu0 0.0
    %66 = vmatprep.subr.mxu0 0.0
    %67 = vmatpush1.msra.mxu0 0.0
    %68 = vmatprep.subr.mxu0 0.0
    %69 = vmatpush1.msra.mxu0 0.0
    %70 = vmatprep.subr.mxu0 0.0
    %71 = vmatpush1.msra.mxu0 0.0
    %72 = vmatprep.subr.mxu0 0.0
    %73 = vmatpush1.msra.mxu0 0.0
    %74 = vmatprep.subr.mxu0 0.0
    %75 = vmatpush1.msra.mxu0 0.0
    %76 = vmatprep.subr.mxu0 0.0
    %77 = vmatpush1.msra.mxu0 0.0
    %78 = vmatprep.subr.mxu0 0.0
    %79 = vmatpush1.msra.mxu0 0.0
    %80 = vmatprep.subr.mxu0 0.0
    %81 = vmatpush1.msra.mxu0 0.0
    %82 = vmatprep.subr.mxu0 0.0
    %83 = vmatpush1.msra.mxu0 0.0
    %84 = vmatprep.subr.mxu0 0.0
    %85 = vmatpush1.msra.mxu0 0.0
    %86 = vmatprep.subr.mxu0 0.0
    %87 = vmatpush1.msra.mxu0 0.0
    %88 = vmatprep.subr.mxu0 0.0
    %89 = vmatpush1.msra.mxu0 0.0
    %90 = vmatprep.subr.mxu0 0.0
    %91 = vmatpush1.msra.mxu0 0.0
    %92 = vmatprep.subr.mxu0 0.0
    %93 = vmatpush1.msra.mxu0 0.0
    %94 = vmatprep.subr.mxu0 0.0
    %95 = vmatpush1.msra.mxu0 0.0
    %96 = vmatprep.subr.mxu0 0.0
    %97 = vmatpush1.msra.mxu0 0.0
    %98 = vmatprep.subr.mxu0 0.0
    %99 = vmatpush1.msra.mxu0 0.0
    %100 = vmatprep.subr.mxu0 0.0
    %101 = vmatpush1.msra.mxu0 0.0
    %102 = vmatprep.subr.mxu0 0.0
    %103 = vmatpush1.msra.mxu0 0.0
    %104 = vmatprep.subr.mxu0 0.0
    %105 = vmatpush1.msra.mxu0 0.0
    %106 = vmatprep.subr.mxu0 0.0
    %107 = vmatpush1.msra.mxu0 0.0
    %108 = vmatprep.subr.mxu0 0.0
    %109 = vmatpush1.msra.mxu0 0.0
    %110 = vmatprep.subr.mxu0 0.0
    %111 = vmatpush1.msra.mxu0 0.0
    %112 = vmatprep.subr.mxu0 0.0
    %113 = vmatpush1.msra.mxu0 0.0
    %114 = vmatprep.subr.mxu0 0.0
    %115 = vmatpush1.msra.mxu0 0.0
    %116 = vmatprep.subr.mxu0 0.0
    %117 = vmatpush1.msra.mxu0 0.0
    %118 = vmatprep.subr.mxu0 0.0
    %119 = vmatpush1.msra.mxu0 0.0
    %120 = vmatprep.subr.mxu0 0.0
    %121 = vmatpush1.msra.mxu0 0.0
    %122 = vmatprep.subr.mxu0 0.0
    %123 = vmatpush1.msra.mxu0 0.0
    %124 = vmatprep.mubr.f32.mxu0 0.0
    %125 = vmatmul.mubr.f32.gmra.mrb[0].mxu0 %v58
    %v126 = vpop.f32.mrb[0].mxu0
    %v127 = vadd.f32 %v50, %v126
    %v128 = vpop.f32.mrb[0].mxu0
    %v129 = vadd.f32 %v54, %v128
    %130 = vdwg.mxu0
    %132 = vrot.lane.b32.xlu0 %v127, 96
    %v133 = vpop.permute.xlu0 %132
    %135 = vrot.lane.b32.xlu0 %v127, 64
    %v136 = vpop.permute.xlu0 %135
    %138 = vrot.lane.b32.xlu0 %v127, 32
    %v139 = vpop.permute.xlu0 %138
    %v141 = vlaneseq
    %v142 = vshrl.u32 %v141, 7
    %v143 = vadd.s32 %v142, 8
    %v144 = vadd.s32 %v142, 16
    %v145 = vadd.s32 %v142, 24
    %v146 = vadd.s32 %v142, 32
    %v147 = vlaneseq
    %v148 = vand.u32 %v147, 127
    %v149 = vand.u32 %v142, 7
    %v150 = vand.u32 %v143, 7
    %v151 = vand.u32 %v144, 7
    %v152 = vand.u32 %v145, 7
    %v153 = vand.u32 %v146, 7
    %v154 = vand.u32 %v148, 7
    %vm155 = vcmp.eq.s32.totalorder %v149, %v154
    %vm156 = vcmp.eq.s32.totalorder %v150, %v154
    %vm157 = vcmp.eq.s32.totalorder %v151, %v154
    %vm158 = vcmp.eq.s32.totalorder %v152, %v154
    %vm159 = vcmp.eq.s32.totalorder %v153, %v154
    %v160 = vsel %vm155, 0.0, -1e+30
    %v161 = vsel %vm156, 0.0, -1e+30
    %v162 = vsel %vm157, 0.0, -1e+30
    %v163 = vsel %vm158, 0.0, -1e+30
    %v164 = vsel %vm159, 0.0, -1e+30
    %v165 = vld [vmem:[%s2] sm:$0xff]
    %v166 = vld [vmem:[%s2 + $0x8] sm:$0xff]
    %v167 = vld [vmem:[%s2 + $0x10] sm:$0xff]
    %v168 = vld [vmem:[%s2 + $0x18] sm:$0xff]
    %v169 = vld [vmem:[%s2 + $0x20] sm:$0xff]
    %v170 = vld [vmem:[%s2 + $0x28] sm:$0xff]
    %v171 = vld [vmem:[%s2 + $0x30] sm:$0xff]
    %v172 = vld [vmem:[%s2 + $0x38] sm:$0xff]
    %v173 = vld [vmem:[%s3] sm:$0xff]
    %v174 = vld [vmem:[%s3 + $0x8] sm:$0xff]
    %v175 = vld [vmem:[%s3 + $0x10] sm:$0xff]
    %v176 = vld [vmem:[%s3 + $0x18] sm:$0xff]
    %v177 = vld [vmem:[%s3 + $0x20] sm:$0xff]
    %v178 = vld [vmem:[%s3 + $0x28] sm:$0xff]
    %v179 = vld [vmem:[%s3 + $0x30] sm:$0xff]
    %v180 = vld [vmem:[%s3 + $0x38] sm:$0xff]
    %v181 = vld [vmem:[%s4] sm:$0xff]
    %v182 = vlaneseq
    %v183 = vshrl.u32 %v182, 7
    %v184 = vsub.s32 0, %v183
    %v185 = vrot.slane %v181, %v184
    %vm186 = vcmask 261120
    %v187 = vsel %vm186, %v127, 0
    %v189 = vsel %vm186, %v133, 0
    %v191 = vsel %vm186, %v136, 0
    %v193 = vsel %vm186, %v139, 0
    %v196 = vsel %vm186, %v129, 0
    %198 = vmatprep.subr.mxu0 0.0
    %199 = vmatpush1.msra.mxu0 %v165
    %200 = vmatprep.subr.mxu0 0.0
    %201 = vmatpush1.msra.mxu0 %v167
    %202 = vmatprep.subr.mxu0 0.0
    %203 = vmatpush1.msra.mxu0 %v169
    %204 = vmatprep.subr.mxu0 0.0
    %205 = vmatpush1.msra.mxu0 %v171
    %206 = vmatprep.subr.mxu0 0.0
    %207 = vmatpush1.msra.mxu0 0.0
    %208 = vmatprep.subr.mxu0 0.0
    %209 = vmatpush1.msra.mxu0 0.0
    %210 = vmatprep.subr.mxu0 0.0
    %211 = vmatpush1.msra.mxu0 0.0
    %212 = vmatprep.subr.mxu0 0.0
    %213 = vmatpush1.msra.mxu0 0.0
    %214 = vmatprep.subr.mxu0 0.0
    %215 = vmatpush1.msra.mxu0 0.0
    %216 = vmatprep.subr.mxu0 0.0
    %217 = vmatpush1.msra.mxu0 0.0
    %218 = vmatprep.subr.mxu0 0.0
    %219 = vmatpush1.msra.mxu0 0.0
    %220 = vmatprep.subr.mxu0 0.0
    %221 = vmatpush1.msra.mxu0 0.0
    %222 = vmatprep.subr.mxu0 0.0
    %223 = vmatpush1.msra.mxu0 0.0
    %224 = vmatprep.subr.mxu0 0.0
    %225 = vmatpush1.msra.mxu0 0.0
    %226 = vmatprep.subr.mxu0 0.0
    %227 = vmatpush1.msra.mxu0 0.0
    %228 = vmatprep.subr.mxu0 0.0
    %229 = vmatpush1.msra.mxu0 0.0
    %230 = vmatprep.subr.mxu0 0.0
    %231 = vmatpush1.msra.mxu0 0.0
    %232 = vmatprep.subr.mxu0 0.0
    %233 = vmatpush1.msra.mxu0 0.0
    %234 = vmatprep.subr.mxu0 0.0
    %235 = vmatpush1.msra.mxu0 0.0
    %236 = vmatprep.subr.mxu0 0.0
    %237 = vmatpush1.msra.mxu0 0.0
    %238 = vmatprep.subr.mxu0 0.0
    %239 = vmatpush1.msra.mxu0 0.0
    %240 = vmatprep.subr.mxu0 0.0
    %241 = vmatpush1.msra.mxu0 0.0
    %242 = vmatprep.subr.mxu0 0.0
    %243 = vmatpush1.msra.mxu0 0.0
    %244 = vmatprep.subr.mxu0 0.0
    %245 = vmatpush1.msra.mxu0 0.0
    %246 = vmatprep.subr.mxu0 0.0
    %247 = vmatpush1.msra.mxu0 0.0
    %248 = vmatprep.subr.mxu0 0.0
    %249 = vmatpush1.msra.mxu0 0.0
    %250 = vmatprep.subr.mxu0 0.0
    %251 = vmatpush1.msra.mxu0 0.0
    %252 = vmatprep.subr.mxu0 0.0
    %253 = vmatpush1.msra.mxu0 0.0
    %254 = vmatprep.subr.mxu0 0.0
    %255 = vmatpush1.msra.mxu0 0.0
    %256 = vmatprep.subr.mxu0 0.0
    %257 = vmatpush1.msra.mxu0 0.0
    %258 = vmatprep.subr.mxu0 0.0
    %259 = vmatpush1.msra.mxu0 0.0
    %260 = vmatprep.subr.mxu0 0.0
    %261 = vmatpush1.msra.mxu0 0.0
    %262 = vmatprep.mubr.f32.mxu0 0.0
    %263 = vmatmul.mubr.f32.gmra.mrb[0].mxu0 %v187
    %v264 = vpop.f32.mrb[0].mxu0
    %v265 = vadd.f32 %v185, %v264
    %v266 = vpop.f32.mrb[0].mxu0
    %267 = vmatprep.mubr.f32.mxu0 0.0
    %268 = vmatmul.mubr.f32.gmra.mrb[0].mxu0 %v189
    %v269 = vpop.f32.mrb[0].mxu0
    %v270 = vadd.f32 %v185, %v269
    %v271 = vpop.f32.mrb[0].mxu0
    %272 = vmatprep.mubr.f32.mxu0 0.0
    %273 = vmatmul.mubr.f32.gmra.mrb[0].mxu0 %v191
    %v274 = vpop.f32.mrb[0].mxu0
    %v275 = vadd.f32 %v185, %v274
    %v276 = vpop.f32.mrb[0].mxu0
    %277 = vmatprep.mubr.f32.mxu0 0.0
    %278 = vmatmul.mubr.f32.gmra.mrb[0].mxu0 %v193
    %v279 = vpop.f32.mrb[0].mxu0
    %v280 = vadd.f32 %v185, %v279
    %v281 = vpop.f32.mrb[0].mxu0
    %282 = vmatprep.mubr.f32.mxu0 0.0
    %283 = vmatmul.mubr.f32.gmra.mrb[0].mxu0 %v196
    %v284 = vpop.f32.mrb[0].mxu0
    %v285 = vadd.f32 %v185, %v284
    %v286 = vpop.f32.mrb[0].mxu0
    %287 = vdwg.mxu0
    %293 = vrot.lane.b32.xlu0 %v265, 96
    %v294 = vpop.permute.xlu0 %293
    %295 = vrot.lane.b32.xlu0 %v270, 96
    %v296 = vpop.permute.xlu0 %295
    %297 = vrot.lane.b32.xlu0 %v275, 96
    %v298 = vpop.permute.xlu0 %297
    %299 = vrot.lane.b32.xlu0 %v280, 96
    %v300 = vpop.permute.xlu0 %299
    %301 = vrot.lane.b32.xlu0 %v285, 96
    %v302 = vpop.permute.xlu0 %301
    %vm303 = vcmask 64512
    %v304 = vsel %vm303, %v265, 0
    %v306 = vsel %vm303, %v270, 0
    %v308 = vsel %vm303, %v275, 0
    %v310 = vsel %vm303, %v280, 0
    %v312 = vsel %vm303, %v285, 0
    %v314 = vsel %vm303, %v294, 0
    %v316 = vsel %vm303, %v296, 0
    %v318 = vsel %vm303, %v298, 0
    %v320 = vsel %vm303, %v300, 0
    %v322 = vsel %vm303, %v302, 0
    %324 = vmatprep.subr.mxu0 0.0
    %325 = vmatpush1.xpose.msra.mxu0 %v314
    %326 = vmatprep.subr.mxu0 0.0
    %327 = vmatpush1.xpose.msra.mxu0 %v316
    %328 = vmatprep.subr.mxu0 0.0
    %329 = vmatpush1.xpose.msra.mxu0 %v318
    %330 = vmatprep.subr.mxu0 0.0
    %331 = vmatpush1.xpose.msra.mxu0 %v320
    %332 = vmatprep.subr.mxu0 0.0
    %333 = vmatpush1.xpose.msra.mxu0 %v322
    %334 = vmatprep.subr.mxu0 0.0
    %335 = vmatpush1.xpose.msra.mxu0 0.0
    %336 = vmatprep.subr.mxu0 0.0
    %337 = vmatpush1.xpose.msra.mxu0 0.0
    %338 = vmatprep.subr.mxu0 0.0
    %339 = vmatpush1.xpose.msra.mxu0 0.0
    %340 = vmatprep.subr.mxu0 0.0
    %341 = vmatpush1.xpose.msra.mxu0 0.0
    %342 = vmatprep.subr.mxu0 0.0
    %343 = vmatpush1.xpose.msra.mxu0 0.0
    %344 = vmatprep.subr.mxu0 0.0
    %345 = vmatpush1.xpose.msra.mxu0 0.0
    %346 = vmatprep.subr.mxu0 0.0
    %347 = vmatpush1.xpose.msra.mxu0 0.0
    %348 = vmatprep.subr.mxu0 0.0
    %349 = vmatpush1.xpose.msra.mxu0 0.0
    %350 = vmatprep.subr.mxu0 0.0
    %351 = vmatpush1.xpose.msra.mxu0 0.0
    %352 = vmatprep.subr.mxu0 0.0
    %353 = vmatpush1.xpose.msra.mxu0 0.0
    %354 = vmatprep.subr.mxu0 0.0
    %355 = vmatpush1.xpose.msra.mxu0 0.0
    %356 = vmatprep.subr.mxu0 0.0
    %357 = vmatpush1.xpose.msra.mxu0 0.0
    %358 = vmatprep.subr.mxu0 0.0
    %359 = vmatpush1.xpose.msra.mxu0 0.0
    %360 = vmatprep.subr.mxu0 0.0
    %361 = vmatpush1.xpose.msra.mxu0 0.0
    %362 = vmatprep.subr.mxu0 0.0
    %363 = vmatpush1.xpose.msra.mxu0 0.0
    %364 = vmatprep.subr.mxu0 0.0
    %365 = vmatpush1.xpose.msra.mxu0 0.0
    %366 = vmatprep.subr.mxu0 0.0
    %367 = vmatpush1.xpose.msra.mxu0 0.0
    %368 = vmatprep.subr.mxu0 0.0
    %369 = vmatpush1.xpose.msra.mxu0 0.0
    %370 = vmatprep.subr.mxu0 0.0
    %371 = vmatpush1.xpose.msra.mxu0 0.0
    %372 = vmatprep.subr.mxu0 0.0
    %373 = vmatpush1.xpose.msra.mxu0 0.0
    %374 = vmatprep.subr.mxu0 0.0
    %375 = vmatpush1.xpose.msra.mxu0 0.0
    %376 = vmatprep.subr.mxu0 0.0
    %377 = vmatpush1.xpose.msra.mxu0 0.0
    %378 = vmatprep.subr.mxu0 0.0
    %379 = vmatpush1.xpose.msra.mxu0 0.0
    %380 = vmatprep.subr.mxu0 0.0
    %381 = vmatpush1.xpose.msra.mxu0 0.0
    %382 = vmatprep.subr.mxu0 0.0
    %383 = vmatpush1.xpose.msra.mxu0 0.0
    %384 = vmatprep.subr.mxu0 0.0
    %385 = vmatpush1.xpose.msra.mxu0 0.0
    %386 = vmatprep.subr.mxu0 0.0
    %387 = vmatpush1.xpose.msra.mxu0 0.0
    %388 = vmatprep.mubr.f32.mxu0 0.0
    %389 = vmatmul.mubr.f32.gmra.mrb[0].mxu0 %v304
    %v390 = vpop.f32.mrb[0].mxu0
    %v391 = vadd.f32 %v160, %v390
    %v392 = vpop.f32.mrb[0].mxu0
    %393 = vmatprep.mubr.f32.mxu0 0.0
    %394 = vmatmul.mubr.f32.gmra.mrb[0].mxu0 %v306
    %v395 = vpop.f32.mrb[0].mxu0
    %v396 = vadd.f32 %v161, %v395
    %v397 = vpop.f32.mrb[0].mxu0
    %398 = vmatprep.mubr.f32.mxu0 0.0
    %399 = vmatmul.mubr.f32.gmra.mrb[0].mxu0 %v308
    %v400 = vpop.f32.mrb[0].mxu0
    %v401 = vadd.f32 %v162, %v400
    %v402 = vpop.f32.mrb[0].mxu0
    %403 = vmatprep.mubr.f32.mxu0 0.0
    %404 = vmatmul.mubr.f32.gmra.mrb[0].mxu0 %v310
    %v405 = vpop.f32.mrb[0].mxu0
    %v406 = vadd.f32 %v163, %v405
    %v407 = vpop.f32.mrb[0].mxu0
    %408 = vmatprep.mubr.f32.mxu0 0.0
    %409 = vmatmul.mubr.f32.gmra.mrb[0].mxu0 %v312
    %v410 = vpop.f32.mrb[0].mxu0
    %v411 = vadd.f32 %v164, %v410
    %v412 = vpop.f32.mrb[0].mxu0
    %413 = vdwg.mxu0
    %vm414 = vcmask 326656
    %v415 = vsel %vm414, %v391, -inf
    %416 = vmax.xlane.f32.xlu0 %v415
    %v417 = vpop.xlane.xlu0 %416
    %v418 = vsel %vm414, %v396, -inf
    %419 = vmax.xlane.f32.xlu0 %v418
    %v420 = vpop.xlane.xlu0 %419
    %v421 = vsel %vm414, %v401, -inf
    %422 = vmax.xlane.f32.xlu0 %v421
    %v423 = vpop.xlane.xlu0 %422
    %v424 = vsel %vm414, %v406, -inf
    %425 = vmax.xlane.f32.xlu0 %v424
    %v426 = vpop.xlane.xlu0 %425
    %v427 = vsel %vm414, %v411, -inf
    %428 = vmax.xlane.f32.xlu0 %v427
    %v429 = vpop.xlane.xlu0 %428
    %v430 = vsub.f32 %v391, %v417
    %v431 = vsub.f32 %v396, %v420
    %v432 = vsub.f32 %v401, %v423
    %v433 = vsub.f32 %v406, %v426
    %v434 = vsub.f32 %v411, %v429
    %v435 = vmul.f32 %v430, 1.442695
    %v436 = vpow.pop %v435
    %v437 = vmul.f32 %v431, 1.442695
    %v438 = vpow.pop %v437
    %v439 = vmul.f32 %v432, 1.442695
    %v440 = vpow.pop %v439
    %v441 = vmul.f32 %v433, 1.442695
    %v442 = vpow.pop %v441
    %v443 = vmul.f32 %v434, 1.442695
    %v444 = vpow.pop %v443
    %v445 = vsel %vm414, %v436, 0.0
    %446 = vadd.xlane.f32.xlu0 %v445
    %v447 = vpop.xlane.xlu0 %446
    %v448 = vsel %vm414, %v438, 0.0
    %449 = vadd.xlane.f32.xlu0 %v448
    %v450 = vpop.xlane.xlu0 %449
    %v451 = vsel %vm414, %v440, 0.0
    %452 = vadd.xlane.f32.xlu0 %v451
    %v453 = vpop.xlane.xlu0 %452
    %v454 = vsel %vm414, %v442, 0.0
    %455 = vadd.xlane.f32.xlu0 %v454
    %v456 = vpop.xlane.xlu0 %455
    %v457 = vsel %vm414, %v444, 0.0
    %458 = vadd.xlane.f32.xlu0 %v457
    %v459 = vpop.xlane.xlu0 %458
    %v460 = vrcp.pop %v447
    %v461 = vmul.f32 1.0, %v460
    %v462 = vrcp.pop %v450
    %v463 = vmul.f32 1.0, %v462
    %v464 = vrcp.pop %v453
    %v465 = vmul.f32 1.0, %v464
    %v466 = vrcp.pop %v456
    %v467 = vmul.f32 1.0, %v466
    %v468 = vrcp.pop %v459
    %v469 = vmul.f32 1.0, %v468
    %v470 = vmul.f32 %v436, %v461
    %v471 = vmul.f32 %v438, %v463
    %v472 = vmul.f32 %v440, %v465
    %v473 = vmul.f32 %v442, %v467
    %v474 = vmul.f32 %v444, %v469
    %475 = vrot.lane.b32.xlu0 %v265, 64
    %v476 = vpop.permute.xlu0 %475
    %477 = vrot.lane.b32.xlu0 %v270, 64
    %v478 = vpop.permute.xlu0 %477
    %479 = vrot.lane.b32.xlu0 %v275, 64
    %v480 = vpop.permute.xlu0 %479
    %481 = vrot.lane.b32.xlu0 %v280, 64
    %v482 = vpop.permute.xlu0 %481
    %483 = vrot.lane.b32.xlu0 %v285, 64
    %v484 = vpop.permute.xlu0 %483
    %v491 = vsel %vm414, %v470, 0
    %v494 = vsel %vm414, %v471, 0
    %v497 = vsel %vm414, %v472, 0
    %v500 = vsel %vm414, %v473, 0
    %v503 = vsel %vm414, %v474, 0
    %505 = vmatprep.subr.mxu0 0.0
    %506 = vmatpush1.msra.mxu0 %v476
    %507 = vmatprep.subr.mxu0 0.0
    %508 = vmatpush1.msra.mxu0 %v478
    %509 = vmatprep.subr.mxu0 0.0
    %510 = vmatpush1.msra.mxu0 %v480
    %511 = vmatprep.subr.mxu0 0.0
    %512 = vmatpush1.msra.mxu0 %v482
    %513 = vmatprep.subr.mxu0 0.0
    %514 = vmatpush1.msra.mxu0 %v484
    %515 = vmatprep.subr.mxu0 0.0
    %516 = vmatpush1.msra.mxu0 0.0
    %517 = vmatprep.subr.mxu0 0.0
    %518 = vmatpush1.msra.mxu0 0.0
    %519 = vmatprep.subr.mxu0 0.0
    %520 = vmatpush1.msra.mxu0 0.0
    %521 = vmatprep.subr.mxu0 0.0
    %522 = vmatpush1.msra.mxu0 0.0
    %523 = vmatprep.subr.mxu0 0.0
    %524 = vmatpush1.msra.mxu0 0.0
    %525 = vmatprep.subr.mxu0 0.0
    %526 = vmatpush1.msra.mxu0 0.0
    %527 = vmatprep.subr.mxu0 0.0
    %528 = vmatpush1.msra.mxu0 0.0
    %529 = vmatprep.subr.mxu0 0.0
    %530 = vmatpush1.msra.mxu0 0.0
    %531 = vmatprep.subr.mxu0 0.0
    %532 = vmatpush1.msra.mxu0 0.0
    %533 = vmatprep.subr.mxu0 0.0
    %534 = vmatpush1.msra.mxu0 0.0
    %535 = vmatprep.subr.mxu0 0.0
    %536 = vmatpush1.msra.mxu0 0.0
    %537 = vmatprep.subr.mxu0 0.0
    %538 = vmatpush1.msra.mxu0 0.0
    %539 = vmatprep.subr.mxu0 0.0
    %540 = vmatpush1.msra.mxu0 0.0
    %541 = vmatprep.subr.mxu0 0.0
    %542 = vmatpush1.msra.mxu0 0.0
    %543 = vmatprep.subr.mxu0 0.0
    %544 = vmatpush1.msra.mxu0 0.0
    %545 = vmatprep.subr.mxu0 0.0
    %546 = vmatpush1.msra.mxu0 0.0
    %547 = vmatprep.subr.mxu0 0.0
    %548 = vmatpush1.msra.mxu0 0.0
    %549 = vmatprep.subr.mxu0 0.0
    %550 = vmatpush1.msra.mxu0 0.0
    %551 = vmatprep.subr.mxu0 0.0
    %552 = vmatpush1.msra.mxu0 0.0
    %553 = vmatprep.subr.mxu0 0.0
    %554 = vmatpush1.msra.mxu0 0.0
    %555 = vmatprep.subr.mxu0 0.0
    %556 = vmatpush1.msra.mxu0 0.0
    %557 = vmatprep.subr.mxu0 0.0
    %558 = vmatpush1.msra.mxu0 0.0
    %559 = vmatprep.subr.mxu0 0.0
    %560 = vmatpush1.msra.mxu0 0.0
    %561 = vmatprep.subr.mxu0 0.0
    %562 = vmatpush1.msra.mxu0 0.0
    %563 = vmatprep.subr.mxu0 0.0
    %564 = vmatpush1.msra.mxu0 0.0
    %565 = vmatprep.subr.mxu0 0.0
    %566 = vmatpush1.msra.mxu0 0.0
    %567 = vmatprep.subr.mxu0 0.0
    %568 = vmatpush1.msra.mxu0 0.0
    %569 = vmatprep.mubr.f32.mxu0 0.0
    %570 = vmatmul.mubr.f32.gmra.mrb[0].mxu0 %v491
    %v571 = vpop.f32.mrb[0].mxu0
    %v572 = vadd.f32 0.0, %v571
    %v573 = vpop.f32.mrb[0].mxu0
    %574 = vmatprep.mubr.f32.mxu0 0.0
    %575 = vmatmul.mubr.f32.gmra.mrb[0].mxu0 %v494
    %v576 = vpop.f32.mrb[0].mxu0
    %v577 = vadd.f32 0.0, %v576
    %v578 = vpop.f32.mrb[0].mxu0
    %579 = vmatprep.mubr.f32.mxu0 0.0
    %580 = vmatmul.mubr.f32.gmra.mrb[0].mxu0 %v497
    %v581 = vpop.f32.mrb[0].mxu0
    %v582 = vadd.f32 0.0, %v581
    %v583 = vpop.f32.mrb[0].mxu0
    %584 = vmatprep.mubr.f32.mxu0 0.0
    %585 = vmatmul.mubr.f32.gmra.mrb[0].mxu0 %v500
    %v586 = vpop.f32.mrb[0].mxu0
    %v587 = vadd.f32 0.0, %v586
    %v588 = vpop.f32.mrb[0].mxu0
    %589 = vmatprep.mubr.f32.mxu0 0.0
    %590 = vmatmul.mubr.f32.gmra.mrb[0].mxu0 %v503
    %v591 = vpop.f32.mrb[0].mxu0
    %v592 = vadd.f32 0.0, %v591
    %v593 = vpop.f32.mrb[0].mxu0
    %594 = vdwg.mxu0
    %595 = vrot.lane.b32.xlu0 %v265, 120
    %v596 = vpop.permute.xlu0 %595
    %597 = vrot.lane.b32.xlu0 %v270, 120
    %v598 = vpop.permute.xlu0 %597
    %599 = vrot.lane.b32.xlu0 %v275, 120
    %v600 = vpop.permute.xlu0 %599
    %601 = vrot.lane.b32.xlu0 %v280, 120
    %v602 = vpop.permute.xlu0 %601
    %603 = vrot.lane.b32.xlu0 %v285, 120
    %v604 = vpop.permute.xlu0 %603
    %605 = vrot.lane.b32.xlu0 %v265, 88
    %v606 = vpop.permute.xlu0 %605
    %607 = vrot.lane.b32.xlu0 %v270, 88
    %v608 = vpop.permute.xlu0 %607
    %609 = vrot.lane.b32.xlu0 %v275, 88
    %v610 = vpop.permute.xlu0 %609
    %611 = vrot.lane.b32.xlu0 %v280, 88
    %v612 = vpop.permute.xlu0 %611
    %613 = vrot.lane.b32.xlu0 %v285, 88
    %v614 = vpop.permute.xlu0 %613
    %v615 = vsel %vm303, %v596, 0
    %v617 = vsel %vm303, %v598, 0
    %v619 = vsel %vm303, %v600, 0
    %v621 = vsel %vm303, %v602, 0
    %v623 = vsel %vm303, %v604, 0
    %v625 = vsel %vm303, %v606, 0
    %v627 = vsel %vm303, %v608, 0
    %v629 = vsel %vm303, %v610, 0
    %v631 = vsel %vm303, %v612, 0
    %v633 = vsel %vm303, %v614, 0
    %635 = vmatprep.subr.mxu0 0.0
    %636 = vmatpush1.xpose.msra.mxu0 %v625
    %637 = vmatprep.subr.mxu0 0.0
    %638 = vmatpush1.xpose.msra.mxu0 %v627
    %639 = vmatprep.subr.mxu0 0.0
    %640 = vmatpush1.xpose.msra.mxu0 %v629
    %641 = vmatprep.subr.mxu0 0.0
    %642 = vmatpush1.xpose.msra.mxu0 %v631
    %643 = vmatprep.subr.mxu0 0.0
    %644 = vmatpush1.xpose.msra.mxu0 %v633
    %645 = vmatprep.subr.mxu0 0.0
    %646 = vmatpush1.xpose.msra.mxu0 0.0
    %647 = vmatprep.subr.mxu0 0.0
    %648 = vmatpush1.xpose.msra.mxu0 0.0
    %649 = vmatprep.subr.mxu0 0.0
    %650 = vmatpush1.xpose.msra.mxu0 0.0
    %651 = vmatprep.subr.mxu0 0.0
    %652 = vmatpush1.xpose.msra.mxu0 0.0
    %653 = vmatprep.subr.mxu0 0.0
    %654 = vmatpush1.xpose.msra.mxu0 0.0
    %655 = vmatprep.subr.mxu0 0.0
    %656 = vmatpush1.xpose.msra.mxu0 0.0
    %657 = vmatprep.subr.mxu0 0.0
    %658 = vmatpush1.xpose.msra.mxu0 0.0
    %659 = vmatprep.subr.mxu0 0.0
    %660 = vmatpush1.xpose.msra.mxu0 0.0
    %661 = vmatprep.subr.mxu0 0.0
    %662 = vmatpush1.xpose.msra.mxu0 0.0
    %663 = vmatprep.subr.mxu0 0.0
    %664 = vmatpush1.xpose.msra.mxu0 0.0
    %665 = vmatprep.subr.mxu0 0.0
    %666 = vmatpush1.xpose.msra.mxu0 0.0
    %667 = vmatprep.subr.mxu0 0.0
    %668 = vmatpush1.xpose.msra.mxu0 0.0
    %669 = vmatprep.subr.mxu0 0.0
    %670 = vmatpush1.xpose.msra.mxu0 0.0
    %671 = vmatprep.subr.mxu0 0.0
    %672 = vmatpush1.xpose.msra.mxu0 0.0
    %673 = vmatprep.subr.mxu0 0.0
    %674 = vmatpush1.xpose.msra.mxu0 0.0
    %675 = vmatprep.subr.mxu0 0.0
    %676 = vmatpush1.xpose.msra.mxu0 0.0
    %677 = vmatprep.subr.mxu0 0.0
    %678 = vmatpush1.xpose.msra.mxu0 0.0
    %679 = vmatprep.subr.mxu0 0.0
    %680 = vmatpush1.xpose.msra.mxu0 0.0
    %681 = vmatprep.subr.mxu0 0.0
    %682 = vmatpush1.xpose.msra.mxu0 0.0
    %683 = vmatprep.subr.mxu0 0.0
    %684 = vmatpush1.xpose.msra.mxu0 0.0
    %685 = vmatprep.subr.mxu0 0.0
    %686 = vmatpush1.xpose.msra.mxu0 0.0
    %687 = vmatprep.subr.mxu0 0.0
    %688 = vmatpush1.xpose.msra.mxu0 0.0
    %689 = vmatprep.subr.mxu0 0.0
    %690 = vmatpush1.xpose.msra.mxu0 0.0
    %691 = vmatprep.subr.mxu0 0.0
    %692 = vmatpush1.xpose.msra.mxu0 0.0
    %693 = vmatprep.subr.mxu0 0.0
    %694 = vmatpush1.xpose.msra.mxu0 0.0
    %695 = vmatprep.subr.mxu0 0.0
    %696 = vmatpush1.xpose.msra.mxu0 0.0
    %697 = vmatprep.subr.mxu0 0.0
    %698 = vmatpush1.xpose.msra.mxu0 0.0
    %699 = vmatprep.mubr.f32.mxu0 0.0
    %700 = vmatmul.mubr.f32.gmra.mrb[0].mxu0 %v615
    %v701 = vpop.f32.mrb[0].mxu0
    %v702 = vadd.f32 %v160, %v701
    %v703 = vpop.f32.mrb[0].mxu0
    %704 = vmatprep.mubr.f32.mxu0 0.0
    %705 = vmatmul.mubr.f32.gmra.mrb[0].mxu0 %v617
    %v706 = vpop.f32.mrb[0].mxu0
    %v707 = vadd.f32 %v161, %v706
    %v708 = vpop.f32.mrb[0].mxu0
    %709 = vmatprep.mubr.f32.mxu0 0.0
    %710 = vmatmul.mubr.f32.gmra.mrb[0].mxu0 %v619
    %v711 = vpop.f32.mrb[0].mxu0
    %v712 = vadd.f32 %v162, %v711
    %v713 = vpop.f32.mrb[0].mxu0
    %714 = vmatprep.mubr.f32.mxu0 0.0
    %715 = vmatmul.mubr.f32.gmra.mrb[0].mxu0 %v621
    %v716 = vpop.f32.mrb[0].mxu0
    %v717 = vadd.f32 %v163, %v716
    %v718 = vpop.f32.mrb[0].mxu0
    %719 = vmatprep.mubr.f32.mxu0 0.0
    %720 = vmatmul.mubr.f32.gmra.mrb[0].mxu0 %v623
    %v721 = vpop.f32.mrb[0].mxu0
    %v722 = vadd.f32 %v164, %v721
    %v723 = vpop.f32.mrb[0].mxu0
    %724 = vdwg.mxu0
    %v725 = vsel %vm414, %v702, -inf
    %726 = vmax.xlane.f32.xlu0 %v725
    %v727 = vpop.xlane.xlu0 %726
    %v728 = vsel %vm414, %v707, -inf
    %729 = vmax.xlane.f32.xlu0 %v728
    %v730 = vpop.xlane.xlu0 %729
    %v731 = vsel %vm414, %v712, -inf
    %732 = vmax.xlane.f32.xlu0 %v731
    %v733 = vpop.xlane.xlu0 %732
    %v734 = vsel %vm414, %v717, -inf
    %735 = vmax.xlane.f32.xlu0 %v734
    %v736 = vpop.xlane.xlu0 %735
    %v737 = vsel %vm414, %v722, -inf
    %738 = vmax.xlane.f32.xlu0 %v737
    %v739 = vpop.xlane.xlu0 %738
    %v740 = vsub.f32 %v702, %v727
    %v741 = vsub.f32 %v707, %v730
    %v742 = vsub.f32 %v712, %v733
    %v743 = vsub.f32 %v717, %v736
    %v744 = vsub.f32 %v722, %v739
    %v745 = vmul.f32 %v740, 1.442695
    %v746 = vpow.pop %v745
    %v747 = vmul.f32 %v741, 1.442695
    %v748 = vpow.pop %v747
    %v749 = vmul.f32 %v742, 1.442695
    %v750 = vpow.pop %v749
    %v751 = vmul.f32 %v743, 1.442695
    %v752 = vpow.pop %v751
    %v753 = vmul.f32 %v744, 1.442695
    %v754 = vpow.pop %v753
    %v755 = vsel %vm414, %v746, 0.0
    %756 = vadd.xlane.f32.xlu0 %v755
    %v757 = vpop.xlane.xlu0 %756
    %v758 = vsel %vm414, %v748, 0.0
    %759 = vadd.xlane.f32.xlu0 %v758
    %v760 = vpop.xlane.xlu0 %759
    %v761 = vsel %vm414, %v750, 0.0
    %762 = vadd.xlane.f32.xlu0 %v761
    %v763 = vpop.xlane.xlu0 %762
    %v764 = vsel %vm414, %v752, 0.0
    %765 = vadd.xlane.f32.xlu0 %v764
    %v766 = vpop.xlane.xlu0 %765
    %v767 = vsel %vm414, %v754, 0.0
    %768 = vadd.xlane.f32.xlu0 %v767
    %v769 = vpop.xlane.xlu0 %768
    %v770 = vrcp.pop %v757
    %v771 = vmul.f32 1.0, %v770
    %v772 = vrcp.pop %v760
    %v773 = vmul.f32 1.0, %v772
    %v774 = vrcp.pop %v763
    %v775 = vmul.f32 1.0, %v774
    %v776 = vrcp.pop %v766
    %v777 = vmul.f32 1.0, %v776
    %v778 = vrcp.pop %v769
    %v779 = vmul.f32 1.0, %v778
    %v780 = vmul.f32 %v746, %v771
    %v781 = vmul.f32 %v748, %v773
    %v782 = vmul.f32 %v750, %v775
    %v783 = vmul.f32 %v752, %v777
    %v784 = vmul.f32 %v754, %v779
    %785 = vrot.lane.b32.xlu0 %v265, 56
    %v786 = vpop.permute.xlu0 %785
    %787 = vrot.lane.b32.xlu0 %v270, 56
    %v788 = vpop.permute.xlu0 %787
    %789 = vrot.lane.b32.xlu0 %v275, 56
    %v790 = vpop.permute.xlu0 %789
    %791 = vrot.lane.b32.xlu0 %v280, 56
    %v792 = vpop.permute.xlu0 %791
    %793 = vrot.lane.b32.xlu0 %v285, 56
    %v794 = vpop.permute.xlu0 %793
    %v801 = vsel %vm414, %v780, 0
    %v804 = vsel %vm414, %v781, 0
    %v807 = vsel %vm414, %v782, 0
    %v810 = vsel %vm414, %v783, 0
    %v813 = vsel %vm414, %v784, 0
    %815 = vmatprep.subr.mxu0 0.0
    %816 = vmatpush1.msra.mxu0 %v786
    %817 = vmatprep.subr.mxu0 0.0
    %818 = vmatpush1.msra.mxu0 %v788
    %819 = vmatprep.subr.mxu0 0.0
    %820 = vmatpush1.msra.mxu0 %v790
    %821 = vmatprep.subr.mxu0 0.0
    %822 = vmatpush1.msra.mxu0 %v792
    %823 = vmatprep.subr.mxu0 0.0
    %824 = vmatpush1.msra.mxu0 %v794
    %825 = vmatprep.subr.mxu0 0.0
    %826 = vmatpush1.msra.mxu0 0.0
    %827 = vmatprep.subr.mxu0 0.0
    %828 = vmatpush1.msra.mxu0 0.0
    %829 = vmatprep.subr.mxu0 0.0
    %830 = vmatpush1.msra.mxu0 0.0
    %831 = vmatprep.subr.mxu0 0.0
    %832 = vmatpush1.msra.mxu0 0.0
    %833 = vmatprep.subr.mxu0 0.0
    %834 = vmatpush1.msra.mxu0 0.0
    %835 = vmatprep.subr.mxu0 0.0
    %836 = vmatpush1.msra.mxu0 0.0
    %837 = vmatprep.subr.mxu0 0.0
    %838 = vmatpush1.msra.mxu0 0.0
    %839 = vmatprep.subr.mxu0 0.0
    %840 = vmatpush1.msra.mxu0 0.0
    %841 = vmatprep.subr.mxu0 0.0
    %842 = vmatpush1.msra.mxu0 0.0
    %843 = vmatprep.subr.mxu0 0.0
    %844 = vmatpush1.msra.mxu0 0.0
    %845 = vmatprep.subr.mxu0 0.0
    %846 = vmatpush1.msra.mxu0 0.0
    %847 = vmatprep.subr.mxu0 0.0
    %848 = vmatpush1.msra.mxu0 0.0
    %849 = vmatprep.subr.mxu0 0.0
    %850 = vmatpush1.msra.mxu0 0.0
    %851 = vmatprep.subr.mxu0 0.0
    %852 = vmatpush1.msra.mxu0 0.0
    %853 = vmatprep.subr.mxu0 0.0
    %854 = vmatpush1.msra.mxu0 0.0
    %855 = vmatprep.subr.mxu0 0.0
    %856 = vmatpush1.msra.mxu0 0.0
    %857 = vmatprep.subr.mxu0 0.0
    %858 = vmatpush1.msra.mxu0 0.0
    %859 = vmatprep.subr.mxu0 0.0
    %860 = vmatpush1.msra.mxu0 0.0
    %861 = vmatprep.subr.mxu0 0.0
    %862 = vmatpush1.msra.mxu0 0.0
    %863 = vmatprep.subr.mxu0 0.0
    %864 = vmatpush1.msra.mxu0 0.0
    %865 = vmatprep.subr.mxu0 0.0
    %866 = vmatpush1.msra.mxu0 0.0
    %867 = vmatprep.subr.mxu0 0.0
    %868 = vmatpush1.msra.mxu0 0.0
    %869 = vmatprep.subr.mxu0 0.0
    %870 = vmatpush1.msra.mxu0 0.0
    %871 = vmatprep.subr.mxu0 0.0
    %872 = vmatpush1.msra.mxu0 0.0
    %873 = vmatprep.subr.mxu0 0.0
    %874 = vmatpush1.msra.mxu0 0.0
    %875 = vmatprep.subr.mxu0 0.0
    %876 = vmatpush1.msra.mxu0 0.0
    %877 = vmatprep.subr.mxu0 0.0
    %878 = vmatpush1.msra.mxu0 0.0
    %879 = vmatprep.mubr.f32.mxu0 0.0
    %880 = vmatmul.mubr.f32.gmra.mrb[0].mxu0 %v801
    %v881 = vpop.f32.mrb[0].mxu0
    %v882 = vadd.f32 0.0, %v881
    %v883 = vpop.f32.mrb[0].mxu0
    %884 = vmatprep.mubr.f32.mxu0 0.0
    %885 = vmatmul.mubr.f32.gmra.mrb[0].mxu0 %v804
    %v886 = vpop.f32.mrb[0].mxu0
    %v887 = vadd.f32 0.0, %v886
    %v888 = vpop.f32.mrb[0].mxu0
    %889 = vmatprep.mubr.f32.mxu0 0.0
    %890 = vmatmul.mubr.f32.gmra.mrb[0].mxu0 %v807
    %v891 = vpop.f32.mrb[0].mxu0
    %v892 = vadd.f32 0.0, %v891
    %v893 = vpop.f32.mrb[0].mxu0
    %894 = vmatprep.mubr.f32.mxu0 0.0
    %895 = vmatmul.mubr.f32.gmra.mrb[0].mxu0 %v810
    %v896 = vpop.f32.mrb[0].mxu0
    %v897 = vadd.f32 0.0, %v896
    %v898 = vpop.f32.mrb[0].mxu0
    %899 = vmatprep.mubr.f32.mxu0 0.0
    %900 = vmatmul.mubr.f32.gmra.mrb[0].mxu0 %v813
    %v901 = vpop.f32.mrb[0].mxu0
    %v902 = vadd.f32 0.0, %v901
    %v903 = vpop.f32.mrb[0].mxu0
    %904 = vdwg.mxu0
    %905 = vrot.lane.b32.xlu0 %v265, 112
    %v906 = vpop.permute.xlu0 %905
    %907 = vrot.lane.b32.xlu0 %v270, 112
    %v908 = vpop.permute.xlu0 %907
    %909 = vrot.lane.b32.xlu0 %v275, 112
    %v910 = vpop.permute.xlu0 %909
    %911 = vrot.lane.b32.xlu0 %v280, 112
    %v912 = vpop.permute.xlu0 %911
    %913 = vrot.lane.b32.xlu0 %v285, 112
    %v914 = vpop.permute.xlu0 %913
    %915 = vrot.lane.b32.xlu0 %v265, 80
    %v916 = vpop.permute.xlu0 %915
    %917 = vrot.lane.b32.xlu0 %v270, 80
    %v918 = vpop.permute.xlu0 %917
    %919 = vrot.lane.b32.xlu0 %v275, 80
    %v920 = vpop.permute.xlu0 %919
    %921 = vrot.lane.b32.xlu0 %v280, 80
    %v922 = vpop.permute.xlu0 %921
    %923 = vrot.lane.b32.xlu0 %v285, 80
    %v924 = vpop.permute.xlu0 %923
    %v925 = vsel %vm303, %v906, 0
    %v927 = vsel %vm303, %v908, 0
    %v929 = vsel %vm303, %v910, 0
    %v931 = vsel %vm303, %v912, 0
    %v933 = vsel %vm303, %v914, 0
    %v935 = vsel %vm303, %v916, 0
    %v937 = vsel %vm303, %v918, 0
    %v939 = vsel %vm303, %v920, 0
    %v941 = vsel %vm303, %v922, 0
    %v943 = vsel %vm303, %v924, 0
    %945 = vmatprep.subr.mxu0 0.0
    %946 = vmatpush1.xpose.msra.mxu0 %v935
    %947 = vmatprep.subr.mxu0 0.0
    %948 = vmatpush1.xpose.msra.mxu0 %v937
    %949 = vmatprep.subr.mxu0 0.0
    %950 = vmatpush1.xpose.msra.mxu0 %v939
    %951 = vmatprep.subr.mxu0 0.0
    %952 = vmatpush1.xpose.msra.mxu0 %v941
    %953 = vmatprep.subr.mxu0 0.0
    %954 = vmatpush1.xpose.msra.mxu0 %v943
    %955 = vmatprep.subr.mxu0 0.0
    %956 = vmatpush1.xpose.msra.mxu0 0.0
    %957 = vmatprep.subr.mxu0 0.0
    %958 = vmatpush1.xpose.msra.mxu0 0.0
    %959 = vmatprep.subr.mxu0 0.0
    %960 = vmatpush1.xpose.msra.mxu0 0.0
    %961 = vmatprep.subr.mxu0 0.0
    %962 = vmatpush1.xpose.msra.mxu0 0.0
    %963 = vmatprep.subr.mxu0 0.0
    %964 = vmatpush1.xpose.msra.mxu0 0.0
    %965 = vmatprep.subr.mxu0 0.0
    %966 = vmatpush1.xpose.msra.mxu0 0.0
    %967 = vmatprep.subr.mxu0 0.0
    %968 = vmatpush1.xpose.msra.mxu0 0.0
    %969 = vmatprep.subr.mxu0 0.0
    %970 = vmatpush1.xpose.msra.mxu0 0.0
    %971 = vmatprep.subr.mxu0 0.0
    %972 = vmatpush1.xpose.msra.mxu0 0.0
    %973 = vmatprep.subr.mxu0 0.0
    %974 = vmatpush1.xpose.msra.mxu0 0.0
    %975 = vmatprep.subr.mxu0 0.0
    %976 = vmatpush1.xpose.msra.mxu0 0.0
    %977 = vmatprep.subr.mxu0 0.0
    %978 = vmatpush1.xpose.msra.mxu0 0.0
    %979 = vmatprep.subr.mxu0 0.0
    %980 = vmatpush1.xpose.msra.mxu0 0.0
    %981 = vmatprep.subr.mxu0 0.0
    %982 = vmatpush1.xpose.msra.mxu0 0.0
    %983 = vmatprep.subr.mxu0 0.0
    %984 = vmatpush1.xpose.msra.mxu0 0.0
    %985 = vmatprep.subr.mxu0 0.0
    %986 = vmatpush1.xpose.msra.mxu0 0.0
    %987 = vmatprep.subr.mxu0 0.0
    %988 = vmatpush1.xpose.msra.mxu0 0.0
    %989 = vmatprep.subr.mxu0 0.0
    %990 = vmatpush1.xpose.msra.mxu0 0.0
    %991 = vmatprep.subr.mxu0 0.0
    %992 = vmatpush1.xpose.msra.mxu0 0.0
    %993 = vmatprep.subr.mxu0 0.0
    %994 = vmatpush1.xpose.msra.mxu0 0.0
    %995 = vmatprep.subr.mxu0 0.0
    %996 = vmatpush1.xpose.msra.mxu0 0.0
    %997 = vmatprep.subr.mxu0 0.0
    %998 = vmatpush1.xpose.msra.mxu0 0.0
    %999 = vmatprep.subr.mxu0 0.0
    %1000 = vmatpush1.xpose.msra.mxu0 0.0
    %1001 = vmatprep.subr.mxu0 0.0
    %1002 = vmatpush1.xpose.msra.mxu0 0.0
    %1003 = vmatprep.subr.mxu0 0.0
    %1004 = vmatpush1.xpose.msra.mxu0 0.0
    %1005 = vmatprep.subr.mxu0 0.0
    %1006 = vmatpush1.xpose.msra.mxu0 0.0
    %1007 = vmatprep.subr.mxu0 0.0
    %1008 = vmatpush1.xpose.msra.mxu0 0.0
    %1009 = vmatprep.mubr.f32.mxu0 0.0
    %1010 = vmatmul.mubr.f32.gmra.mrb[0].mxu0 %v925
    %v1011 = vpop.f32.mrb[0].mxu0
    %v1012 = vadd.f32 %v160, %v1011
    %v1013 = vpop.f32.mrb[0].mxu0
    %1014 = vmatprep.mubr.f32.mxu0 0.0
    %1015 = vmatmul.mubr.f32.gmra.mrb[0].mxu0 %v927
    %v1016 = vpop.f32.mrb[0].mxu0
    %v1017 = vadd.f32 %v161, %v1016
    %v1018 = vpop.f32.mrb[0].mxu0
    %1019 = vmatprep.mubr.f32.mxu0 0.0
    %1020 = vmatmul.mubr.f32.gmra.mrb[0].mxu0 %v929
    %v1021 = vpop.f32.mrb[0].mxu0
    %v1022 = vadd.f32 %v162, %v1021
    %v1023 = vpop.f32.mrb[0].mxu0
    %1024 = vmatprep.mubr.f32.mxu0 0.0
    %1025 = vmatmul.mubr.f32.gmra.mrb[0].mxu0 %v931
    %v1026 = vpop.f32.mrb[0].mxu0
    %v1027 = vadd.f32 %v163, %v1026
    %v1028 = vpop.f32.mrb[0].mxu0
    %1029 = vmatprep.mubr.f32.mxu0 0.0
    %1030 = vmatmul.mubr.f32.gmra.mrb[0].mxu0 %v933
    %v1031 = vpop.f32.mrb[0].mxu0
    %v1032 = vadd.f32 %v164, %v1031
    %v1033 = vpop.f32.mrb[0].mxu0
    %1034 = vdwg.mxu0
    %v1035 = vsel %vm414, %v1012, -inf
    %1036 = vmax.xlane.f32.xlu0 %v1035
    %v1037 = vpop.xlane.xlu0 %1036
    %v1038 = vsel %vm414, %v1017, -inf
    %1039 = vmax.xlane.f32.xlu0 %v1038
    %v1040 = vpop.xlane.xlu0 %1039
    %v1041 = vsel %vm414, %v1022, -inf
    %1042 = vmax.xlane.f32.xlu0 %v1041
    %v1043 = vpop.xlane.xlu0 %1042
    %v1044 = vsel %vm414, %v1027, -inf
    %1045 = vmax.xlane.f32.xlu0 %v1044
    %v1046 = vpop.xlane.xlu0 %1045
    %v1047 = vsel %vm414, %v1032, -inf
    %1048 = vmax.xlane.f32.xlu0 %v1047
    %v1049 = vpop.xlane.xlu0 %1048
    %v1050 = vsub.f32 %v1012, %v1037
    %v1051 = vsub.f32 %v1017, %v1040
    %v1052 = vsub.f32 %v1022, %v1043
    %v1053 = vsub.f32 %v1027, %v1046
    %v1054 = vsub.f32 %v1032, %v1049
    %v1055 = vmul.f32 %v1050, 1.442695
    %v1056 = vpow.pop %v1055
    %v1057 = vmul.f32 %v1051, 1.442695
    %v1058 = vpow.pop %v1057
    %v1059 = vmul.f32 %v1052, 1.442695
    %v1060 = vpow.pop %v1059
    %v1061 = vmul.f32 %v1053, 1.442695
    %v1062 = vpow.pop %v1061
    %v1063 = vmul.f32 %v1054, 1.442695
    %v1064 = vpow.pop %v1063
    %v1065 = vsel %vm414, %v1056, 0.0
    %1066 = vadd.xlane.f32.xlu0 %v1065
    %v1067 = vpop.xlane.xlu0 %1066
    %v1068 = vsel %vm414, %v1058, 0.0
    %1069 = vadd.xlane.f32.xlu0 %v1068
    %v1070 = vpop.xlane.xlu0 %1069
    %v1071 = vsel %vm414, %v1060, 0.0
    %1072 = vadd.xlane.f32.xlu0 %v1071
    %v1073 = vpop.xlane.xlu0 %1072
    %v1074 = vsel %vm414, %v1062, 0.0
    %1075 = vadd.xlane.f32.xlu0 %v1074
    %v1076 = vpop.xlane.xlu0 %1075
    %v1077 = vsel %vm414, %v1064, 0.0
    %1078 = vadd.xlane.f32.xlu0 %v1077
    %v1079 = vpop.xlane.xlu0 %1078
    %v1080 = vrcp.pop %v1067
    %v1081 = vmul.f32 1.0, %v1080
    %v1082 = vrcp.pop %v1070
    %v1083 = vmul.f32 1.0, %v1082
    %v1084 = vrcp.pop %v1073
    %v1085 = vmul.f32 1.0, %v1084
    %v1086 = vrcp.pop %v1076
    %v1087 = vmul.f32 1.0, %v1086
    %v1088 = vrcp.pop %v1079
    %v1089 = vmul.f32 1.0, %v1088
    %v1090 = vmul.f32 %v1056, %v1081
    %v1091 = vmul.f32 %v1058, %v1083
    %v1092 = vmul.f32 %v1060, %v1085
    %v1093 = vmul.f32 %v1062, %v1087
    %v1094 = vmul.f32 %v1064, %v1089
    %1095 = vrot.lane.b32.xlu0 %v265, 48
    %v1096 = vpop.permute.xlu0 %1095
    %1097 = vrot.lane.b32.xlu0 %v270, 48
    %v1098 = vpop.permute.xlu0 %1097
    %1099 = vrot.lane.b32.xlu0 %v275, 48
    %v1100 = vpop.permute.xlu0 %1099
    %1101 = vrot.lane.b32.xlu0 %v280, 48
    %v1102 = vpop.permute.xlu0 %1101
    %1103 = vrot.lane.b32.xlu0 %v285, 48
    %v1104 = vpop.permute.xlu0 %1103
    %v1111 = vsel %vm414, %v1090, 0
    %v1114 = vsel %vm414, %v1091, 0
    %v1117 = vsel %vm414, %v1092, 0
    %v1120 = vsel %vm414, %v1093, 0
    %v1123 = vsel %vm414, %v1094, 0
    %1125 = vmatprep.subr.mxu0 0.0
    %1126 = vmatpush1.msra.mxu0 %v1096
    %1127 = vmatprep.subr.mxu0 0.0
    %1128 = vmatpush1.msra.mxu0 %v1098
    %1129 = vmatprep.subr.mxu0 0.0
    %1130 = vmatpush1.msra.mxu0 %v1100
    %1131 = vmatprep.subr.mxu0 0.0
    %1132 = vmatpush1.msra.mxu0 %v1102
    %1133 = vmatprep.subr.mxu0 0.0
    %1134 = vmatpush1.msra.mxu0 %v1104
    %1135 = vmatprep.subr.mxu0 0.0
    %1136 = vmatpush1.msra.mxu0 0.0
    %1137 = vmatprep.subr.mxu0 0.0
    %1138 = vmatpush1.msra.mxu0 0.0
    %1139 = vmatprep.subr.mxu0 0.0
    %1140 = vmatpush1.msra.mxu0 0.0
    %1141 = vmatprep.subr.mxu0 0.0
    %1142 = vmatpush1.msra.mxu0 0.0
    %1143 = vmatprep.subr.mxu0 0.0
    %1144 = vmatpush1.msra.mxu0 0.0
    %1145 = vmatprep.subr.mxu0 0.0
    %1146 = vmatpush1.msra.mxu0 0.0
    %1147 = vmatprep.subr.mxu0 0.0
    %1148 = vmatpush1.msra.mxu0 0.0
    %1149 = vmatprep.subr.mxu0 0.0
    %1150 = vmatpush1.msra.mxu0 0.0
    %1151 = vmatprep.subr.mxu0 0.0
    %1152 = vmatpush1.msra.mxu0 0.0
    %1153 = vmatprep.subr.mxu0 0.0
    %1154 = vmatpush1.msra.mxu0 0.0
    %1155 = vmatprep.subr.mxu0 0.0
    %1156 = vmatpush1.msra.mxu0 0.0
    %1157 = vmatprep.subr.mxu0 0.0
    %1158 = vmatpush1.msra.mxu0 0.0
    %1159 = vmatprep.subr.mxu0 0.0
    %1160 = vmatpush1.msra.mxu0 0.0
    %1161 = vmatprep.subr.mxu0 0.0
    %1162 = vmatpush1.msra.mxu0 0.0
    %1163 = vmatprep.subr.mxu0 0.0
    %1164 = vmatpush1.msra.mxu0 0.0
    %1165 = vmatprep.subr.mxu0 0.0
    %1166 = vmatpush1.msra.mxu0 0.0
    %1167 = vmatprep.subr.mxu0 0.0
    %1168 = vmatpush1.msra.mxu0 0.0
    %1169 = vmatprep.subr.mxu0 0.0
    %1170 = vmatpush1.msra.mxu0 0.0
    %1171 = vmatprep.subr.mxu0 0.0
    %1172 = vmatpush1.msra.mxu0 0.0
    %1173 = vmatprep.subr.mxu0 0.0
    %1174 = vmatpush1.msra.mxu0 0.0
    %1175 = vmatprep.subr.mxu0 0.0
    %1176 = vmatpush1.msra.mxu0 0.0
    %1177 = vmatprep.subr.mxu0 0.0
    %1178 = vmatpush1.msra.mxu0 0.0
    %1179 = vmatprep.subr.mxu0 0.0
    %1180 = vmatpush1.msra.mxu0 0.0
    %1181 = vmatprep.subr.mxu0 0.0
    %1182 = vmatpush1.msra.mxu0 0.0
    %1183 = vmatprep.subr.mxu0 0.0
    %1184 = vmatpush1.msra.mxu0 0.0
    %1185 = vmatprep.subr.mxu0 0.0
    %1186 = vmatpush1.msra.mxu0 0.0
    %1187 = vmatprep.subr.mxu0 0.0
    %1188 = vmatpush1.msra.mxu0 0.0
    %1189 = vmatprep.mubr.f32.mxu0 0.0
    %1190 = vmatmul.mubr.f32.gmra.mrb[0].mxu0 %v1111
    %v1191 = vpop.f32.mrb[0].mxu0
    %v1192 = vadd.f32 0.0, %v1191
    %v1193 = vpop.f32.mrb[0].mxu0
    %1194 = vmatprep.mubr.f32.mxu0 0.0
    %1195 = vmatmul.mubr.f32.gmra.mrb[0].mxu0 %v1114
    %v1196 = vpop.f32.mrb[0].mxu0
    %v1197 = vadd.f32 0.0, %v1196
    %v1198 = vpop.f32.mrb[0].mxu0
    %1199 = vmatprep.mubr.f32.mxu0 0.0
    %1200 = vmatmul.mubr.f32.gmra.mrb[0].mxu0 %v1117
    %v1201 = vpop.f32.mrb[0].mxu0
    %v1202 = vadd.f32 0.0, %v1201
    %v1203 = vpop.f32.mrb[0].mxu0
    %1204 = vmatprep.mubr.f32.mxu0 0.0
    %1205 = vmatmul.mubr.f32.gmra.mrb[0].mxu0 %v1120
    %v1206 = vpop.f32.mrb[0].mxu0
    %v1207 = vadd.f32 0.0, %v1206
    %v1208 = vpop.f32.mrb[0].mxu0
    %1209 = vmatprep.mubr.f32.mxu0 0.0
    %1210 = vmatmul.mubr.f32.gmra.mrb[0].mxu0 %v1123
    %v1211 = vpop.f32.mrb[0].mxu0
    %v1212 = vadd.f32 0.0, %v1211
    %v1213 = vpop.f32.mrb[0].mxu0
    %1214 = vdwg.mxu0
    %1215 = vrot.lane.b32.xlu0 %v265, 104
    %v1216 = vpop.permute.xlu0 %1215
    %1217 = vrot.lane.b32.xlu0 %v270, 104
    %v1218 = vpop.permute.xlu0 %1217
    %1219 = vrot.lane.b32.xlu0 %v275, 104
    %v1220 = vpop.permute.xlu0 %1219
    %1221 = vrot.lane.b32.xlu0 %v280, 104
    %v1222 = vpop.permute.xlu0 %1221
    %1223 = vrot.lane.b32.xlu0 %v285, 104
    %v1224 = vpop.permute.xlu0 %1223
    %1225 = vrot.lane.b32.xlu0 %v265, 72
    %v1226 = vpop.permute.xlu0 %1225
    %1227 = vrot.lane.b32.xlu0 %v270, 72
    %v1228 = vpop.permute.xlu0 %1227
    %1229 = vrot.lane.b32.xlu0 %v275, 72
    %v1230 = vpop.permute.xlu0 %1229
    %1231 = vrot.lane.b32.xlu0 %v280, 72
    %v1232 = vpop.permute.xlu0 %1231
    %1233 = vrot.lane.b32.xlu0 %v285, 72
    %v1234 = vpop.permute.xlu0 %1233
    %v1235 = vsel %vm303, %v1216, 0
    %v1237 = vsel %vm303, %v1218, 0
    %v1239 = vsel %vm303, %v1220, 0
    %v1241 = vsel %vm303, %v1222, 0
    %v1243 = vsel %vm303, %v1224, 0
    %v1245 = vsel %vm303, %v1226, 0
    %v1247 = vsel %vm303, %v1228, 0
    %v1249 = vsel %vm303, %v1230, 0
    %v1251 = vsel %vm303, %v1232, 0
    %v1253 = vsel %vm303, %v1234, 0
    %1255 = vmatprep.subr.mxu0 0.0
    %1256 = vmatpush1.xpose.msra.mxu0 %v1245
    %1257 = vmatprep.subr.mxu0 0.0
    %1258 = vmatpush1.xpose.msra.mxu0 %v1247
    %1259 = vmatprep.subr.mxu0 0.0
    %1260 = vmatpush1.xpose.msra.mxu0 %v1249
    %1261 = vmatprep.subr.mxu0 0.0
    %1262 = vmatpush1.xpose.msra.mxu0 %v1251
    %1263 = vmatprep.subr.mxu0 0.0
    %1264 = vmatpush1.xpose.msra.mxu0 %v1253
    %1265 = vmatprep.subr.mxu0 0.0
    %1266 = vmatpush1.xpose.msra.mxu0 0.0
    %1267 = vmatprep.subr.mxu0 0.0
    %1268 = vmatpush1.xpose.msra.mxu0 0.0
    %1269 = vmatprep.subr.mxu0 0.0
    %1270 = vmatpush1.xpose.msra.mxu0 0.0
    %1271 = vmatprep.subr.mxu0 0.0
    %1272 = vmatpush1.xpose.msra.mxu0 0.0
    %1273 = vmatprep.subr.mxu0 0.0
    %1274 = vmatpush1.xpose.msra.mxu0 0.0
    %1275 = vmatprep.subr.mxu0 0.0
    %1276 = vmatpush1.xpose.msra.mxu0 0.0
    %1277 = vmatprep.subr.mxu0 0.0
    %1278 = vmatpush1.xpose.msra.mxu0 0.0
    %1279 = vmatprep.subr.mxu0 0.0
    %1280 = vmatpush1.xpose.msra.mxu0 0.0
    %1281 = vmatprep.subr.mxu0 0.0
    %1282 = vmatpush1.xpose.msra.mxu0 0.0
    %1283 = vmatprep.subr.mxu0 0.0
    %1284 = vmatpush1.xpose.msra.mxu0 0.0
    %1285 = vmatprep.subr.mxu0 0.0
    %1286 = vmatpush1.xpose.msra.mxu0 0.0
    %1287 = vmatprep.subr.mxu0 0.0
    %1288 = vmatpush1.xpose.msra.mxu0 0.0
    %1289 = vmatprep.subr.mxu0 0.0
    %1290 = vmatpush1.xpose.msra.mxu0 0.0
    %1291 = vmatprep.subr.mxu0 0.0
    %1292 = vmatpush1.xpose.msra.mxu0 0.0
    %1293 = vmatprep.subr.mxu0 0.0
    %1294 = vmatpush1.xpose.msra.mxu0 0.0
    %1295 = vmatprep.subr.mxu0 0.0
    %1296 = vmatpush1.xpose.msra.mxu0 0.0
    %1297 = vmatprep.subr.mxu0 0.0
    %1298 = vmatpush1.xpose.msra.mxu0 0.0
    %1299 = vmatprep.subr.mxu0 0.0
    %1300 = vmatpush1.xpose.msra.mxu0 0.0
    %1301 = vmatprep.subr.mxu0 0.0
    %1302 = vmatpush1.xpose.msra.mxu0 0.0
    %1303 = vmatprep.subr.mxu0 0.0
    %1304 = vmatpush1.xpose.msra.mxu0 0.0
    %1305 = vmatprep.subr.mxu0 0.0
    %1306 = vmatpush1.xpose.msra.mxu0 0.0
    %1307 = vmatprep.subr.mxu0 0.0
    %1308 = vmatpush1.xpose.msra.mxu0 0.0
    %1309 = vmatprep.subr.mxu0 0.0
    %1310 = vmatpush1.xpose.msra.mxu0 0.0
    %1311 = vmatprep.subr.mxu0 0.0
    %1312 = vmatpush1.xpose.msra.mxu0 0.0
    %1313 = vmatprep.subr.mxu0 0.0
    %1314 = vmatpush1.xpose.msra.mxu0 0.0
    %1315 = vmatprep.subr.mxu0 0.0
    %1316 = vmatpush1.xpose.msra.mxu0 0.0
    %1317 = vmatprep.subr.mxu0 0.0
    %1318 = vmatpush1.xpose.msra.mxu0 0.0
    %1319 = vmatprep.mubr.f32.mxu0 0.0
    %1320 = vmatmul.mubr.f32.gmra.mrb[0].mxu0 %v1235
    %v1321 = vpop.f32.mrb[0].mxu0
    %v1322 = vadd.f32 %v160, %v1321
    %v1323 = vpop.f32.mrb[0].mxu0
    %1324 = vmatprep.mubr.f32.mxu0 0.0
    %1325 = vmatmul.mubr.f32.gmra.mrb[0].mxu0 %v1237
    %v1326 = vpop.f32.mrb[0].mxu0
    %v1327 = vadd.f32 %v161, %v1326
    %v1328 = vpop.f32.mrb[0].mxu0
    %1329 = vmatprep.mubr.f32.mxu0 0.0
    %1330 = vmatmul.mubr.f32.gmra.mrb[0].mxu0 %v1239
    %v1331 = vpop.f32.mrb[0].mxu0
    %v1332 = vadd.f32 %v162, %v1331
    %v1333 = vpop.f32.mrb[0].mxu0
    %1334 = vmatprep.mubr.f32.mxu0 0.0
    %1335 = vmatmul.mubr.f32.gmra.mrb[0].mxu0 %v1241
    %v1336 = vpop.f32.mrb[0].mxu0
    %v1337 = vadd.f32 %v163, %v1336
    %v1338 = vpop.f32.mrb[0].mxu0
    %1339 = vmatprep.mubr.f32.mxu0 0.0
    %1340 = vmatmul.mubr.f32.gmra.mrb[0].mxu0 %v1243
    %v1341 = vpop.f32.mrb[0].mxu0
    %v1342 = vadd.f32 %v164, %v1341
    %v1343 = vpop.f32.mrb[0].mxu0
    %1344 = vdwg.mxu0
    %v1345 = vsel %vm414, %v1322, -inf
    %1346 = vmax.xlane.f32.xlu0 %v1345
    %v1347 = vpop.xlane.xlu0 %1346
    %v1348 = vsel %vm414, %v1327, -inf
    %1349 = vmax.xlane.f32.xlu0 %v1348
    %v1350 = vpop.xlane.xlu0 %1349
    %v1351 = vsel %vm414, %v1332, -inf
    %1352 = vmax.xlane.f32.xlu0 %v1351
    %v1353 = vpop.xlane.xlu0 %1352
    %v1354 = vsel %vm414, %v1337, -inf
    %1355 = vmax.xlane.f32.xlu0 %v1354
    %v1356 = vpop.xlane.xlu0 %1355
    %v1357 = vsel %vm414, %v1342, -inf
    %1358 = vmax.xlane.f32.xlu0 %v1357
    %v1359 = vpop.xlane.xlu0 %1358
    %v1360 = vsub.f32 %v1322, %v1347
    %v1361 = vsub.f32 %v1327, %v1350
    %v1362 = vsub.f32 %v1332, %v1353
    %v1363 = vsub.f32 %v1337, %v1356
    %v1364 = vsub.f32 %v1342, %v1359
    %v1365 = vmul.f32 %v1360, 1.442695
    %v1366 = vpow.pop %v1365
    %v1367 = vmul.f32 %v1361, 1.442695
    %v1368 = vpow.pop %v1367
    %v1369 = vmul.f32 %v1362, 1.442695
    %v1370 = vpow.pop %v1369
    %v1371 = vmul.f32 %v1363, 1.442695
    %v1372 = vpow.pop %v1371
    %v1373 = vmul.f32 %v1364, 1.442695
    %v1374 = vpow.pop %v1373
    %v1375 = vsel %vm414, %v1366, 0.0
    %1376 = vadd.xlane.f32.xlu0 %v1375
    %v1377 = vpop.xlane.xlu0 %1376
    %v1378 = vsel %vm414, %v1368, 0.0
    %1379 = vadd.xlane.f32.xlu0 %v1378
    %v1380 = vpop.xlane.xlu0 %1379
    %v1381 = vsel %vm414, %v1370, 0.0
    %1382 = vadd.xlane.f32.xlu0 %v1381
    %v1383 = vpop.xlane.xlu0 %1382
    %v1384 = vsel %vm414, %v1372, 0.0
    %1385 = vadd.xlane.f32.xlu0 %v1384
    %v1386 = vpop.xlane.xlu0 %1385
    %v1387 = vsel %vm414, %v1374, 0.0
    %1388 = vadd.xlane.f32.xlu0 %v1387
    %v1389 = vpop.xlane.xlu0 %1388
    %v1390 = vrcp.pop %v1377
    %v1391 = vmul.f32 1.0, %v1390
    %v1392 = vrcp.pop %v1380
    %v1393 = vmul.f32 1.0, %v1392
    %v1394 = vrcp.pop %v1383
    %v1395 = vmul.f32 1.0, %v1394
    %v1396 = vrcp.pop %v1386
    %v1397 = vmul.f32 1.0, %v1396
    %v1398 = vrcp.pop %v1389
    %v1399 = vmul.f32 1.0, %v1398
    %v1400 = vmul.f32 %v1366, %v1391
    %v1401 = vmul.f32 %v1368, %v1393
    %v1402 = vmul.f32 %v1370, %v1395
    %v1403 = vmul.f32 %v1372, %v1397
    %v1404 = vmul.f32 %v1374, %v1399
    %1405 = vrot.lane.b32.xlu0 %v265, 40
    %v1406 = vpop.permute.xlu0 %1405
    %1407 = vrot.lane.b32.xlu0 %v270, 40
    %v1408 = vpop.permute.xlu0 %1407
    %1409 = vrot.lane.b32.xlu0 %v275, 40
    %v1410 = vpop.permute.xlu0 %1409
    %1411 = vrot.lane.b32.xlu0 %v280, 40
    %v1412 = vpop.permute.xlu0 %1411
    %1413 = vrot.lane.b32.xlu0 %v285, 40
    %v1414 = vpop.permute.xlu0 %1413
    %v1421 = vsel %vm414, %v1400, 0
    %v1424 = vsel %vm414, %v1401, 0
    %v1427 = vsel %vm414, %v1402, 0
    %v1430 = vsel %vm414, %v1403, 0
    %v1433 = vsel %vm414, %v1404, 0
    %1435 = vmatprep.subr.mxu0 0.0
    %1436 = vmatpush1.msra.mxu0 %v1406
    %1437 = vmatprep.subr.mxu0 0.0
    %1438 = vmatpush1.msra.mxu0 %v1408
    %1439 = vmatprep.subr.mxu0 0.0
    %1440 = vmatpush1.msra.mxu0 %v1410
    %1441 = vmatprep.subr.mxu0 0.0
    %1442 = vmatpush1.msra.mxu0 %v1412
    %1443 = vmatprep.subr.mxu0 0.0
    %1444 = vmatpush1.msra.mxu0 %v1414
    %1445 = vmatprep.subr.mxu0 0.0
    %1446 = vmatpush1.msra.mxu0 0.0
    %1447 = vmatprep.subr.mxu0 0.0
    %1448 = vmatpush1.msra.mxu0 0.0
    %1449 = vmatprep.subr.mxu0 0.0
    %1450 = vmatpush1.msra.mxu0 0.0
    %1451 = vmatprep.subr.mxu0 0.0
    %1452 = vmatpush1.msra.mxu0 0.0
    %1453 = vmatprep.subr.mxu0 0.0
    %1454 = vmatpush1.msra.mxu0 0.0
    %1455 = vmatprep.subr.mxu0 0.0
    %1456 = vmatpush1.msra.mxu0 0.0
    %1457 = vmatprep.subr.mxu0 0.0
    %1458 = vmatpush1.msra.mxu0 0.0
    %1459 = vmatprep.subr.mxu0 0.0
    %1460 = vmatpush1.msra.mxu0 0.0
    %1461 = vmatprep.subr.mxu0 0.0
    %1462 = vmatpush1.msra.mxu0 0.0
    %1463 = vmatprep.subr.mxu0 0.0
    %1464 = vmatpush1.msra.mxu0 0.0
    %1465 = vmatprep.subr.mxu0 0.0
    %1466 = vmatpush1.msra.mxu0 0.0
    %1467 = vmatprep.subr.mxu0 0.0
    %1468 = vmatpush1.msra.mxu0 0.0
    %1469 = vmatprep.subr.mxu0 0.0
    %1470 = vmatpush1.msra.mxu0 0.0
    %1471 = vmatprep.subr.mxu0 0.0
    %1472 = vmatpush1.msra.mxu0 0.0
    %1473 = vmatprep.subr.mxu0 0.0
    %1474 = vmatpush1.msra.mxu0 0.0
    %1475 = vmatprep.subr.mxu0 0.0
    %1476 = vmatpush1.msra.mxu0 0.0
    %1477 = vmatprep.subr.mxu0 0.0
    %1478 = vmatpush1.msra.mxu0 0.0
    %1479 = vmatprep.subr.mxu0 0.0
    %1480 = vmatpush1.msra.mxu0 0.0
    %1481 = vmatprep.subr.mxu0 0.0
    %1482 = vmatpush1.msra.mxu0 0.0
    %1483 = vmatprep.subr.mxu0 0.0
    %1484 = vmatpush1.msra.mxu0 0.0
    %1485 = vmatprep.subr.mxu0 0.0
    %1486 = vmatpush1.msra.mxu0 0.0
    %1487 = vmatprep.subr.mxu0 0.0
    %1488 = vmatpush1.msra.mxu0 0.0
    %1489 = vmatprep.subr.mxu0 0.0
    %1490 = vmatpush1.msra.mxu0 0.0
    %1491 = vmatprep.subr.mxu0 0.0
    %1492 = vmatpush1.msra.mxu0 0.0
    %1493 = vmatprep.subr.mxu0 0.0
    %1494 = vmatpush1.msra.mxu0 0.0
    %1495 = vmatprep.subr.mxu0 0.0
    %1496 = vmatpush1.msra.mxu0 0.0
    %1497 = vmatprep.subr.mxu0 0.0
    %1498 = vmatpush1.msra.mxu0 0.0
    %1499 = vmatprep.mubr.f32.mxu0 0.0
    %1500 = vmatmul.mubr.f32.gmra.mrb[0].mxu0 %v1421
    %v1501 = vpop.f32.mrb[0].mxu0
    %v1502 = vadd.f32 0.0, %v1501
    %v1503 = vpop.f32.mrb[0].mxu0
    %1504 = vmatprep.mubr.f32.mxu0 0.0
    %1505 = vmatmul.mubr.f32.gmra.mrb[0].mxu0 %v1424
    %v1506 = vpop.f32.mrb[0].mxu0
    %v1507 = vadd.f32 0.0, %v1506
    %v1508 = vpop.f32.mrb[0].mxu0
    %1509 = vmatprep.mubr.f32.mxu0 0.0
    %1510 = vmatmul.mubr.f32.gmra.mrb[0].mxu0 %v1427
    %v1511 = vpop.f32.mrb[0].mxu0
    %v1512 = vadd.f32 0.0, %v1511
    %v1513 = vpop.f32.mrb[0].mxu0
    %1514 = vmatprep.mubr.f32.mxu0 0.0
    %1515 = vmatmul.mubr.f32.gmra.mrb[0].mxu0 %v1430
    %v1516 = vpop.f32.mrb[0].mxu0
    %v1517 = vadd.f32 0.0, %v1516
    %v1518 = vpop.f32.mrb[0].mxu0
    %1519 = vmatprep.mubr.f32.mxu0 0.0
    %1520 = vmatmul.mubr.f32.gmra.mrb[0].mxu0 %v1433
    %v1521 = vpop.f32.mrb[0].mxu0
    %v1522 = vadd.f32 0.0, %v1521
    %v1523 = vpop.f32.mrb[0].mxu0
    %1524 = vdwg.mxu0
    %1530 = vrot.lane.b32.xlu0 %v882, 8
    %v1531 = vpop.permute.xlu0 %1530
    %1532 = vrot.lane.b32.xlu0 %v887, 8
    %v1533 = vpop.permute.xlu0 %1532
    %1534 = vrot.lane.b32.xlu0 %v892, 8
    %v1535 = vpop.permute.xlu0 %1534
    %1536 = vrot.lane.b32.xlu0 %v897, 8
    %v1537 = vpop.permute.xlu0 %1536
    %1538 = vrot.lane.b32.xlu0 %v902, 8
    %v1539 = vpop.permute.xlu0 %1538
    %1550 = vrot.lane.b32.xlu0 %v1192, 16
    %v1551 = vpop.permute.xlu0 %1550
    %1552 = vrot.lane.b32.xlu0 %v1197, 16
    %v1553 = vpop.permute.xlu0 %1552
    %1554 = vrot.lane.b32.xlu0 %v1202, 16
    %v1555 = vpop.permute.xlu0 %1554
    %1556 = vrot.lane.b32.xlu0 %v1207, 16
    %v1557 = vpop.permute.xlu0 %1556
    %1558 = vrot.lane.b32.xlu0 %v1212, 16
    %v1559 = vpop.permute.xlu0 %1558
    %1570 = vrot.lane.b32.xlu0 %v1502, 24
    %v1571 = vpop.permute.xlu0 %1570
    %1572 = vrot.lane.b32.xlu0 %v1507, 24
    %v1573 = vpop.permute.xlu0 %1572
    %1574 = vrot.lane.b32.xlu0 %v1512, 24
    %v1575 = vpop.permute.xlu0 %1574
    %1576 = vrot.lane.b32.xlu0 %v1517, 24
    %v1577 = vpop.permute.xlu0 %1576
    %1578 = vrot.lane.b32.xlu0 %v1522, 24
    %v1579 = vpop.permute.xlu0 %1578
    %v1585 = vsel %vm303, %v572, %v1531
    %v1586 = vsel %vm303, %v577, %v1533
    %v1587 = vsel %vm303, %v582, %v1535
    %v1588 = vsel %vm303, %v587, %v1537
    %v1589 = vsel %vm303, %v592, %v1539
    %v1590 = vsel %vm25, %v1585, %v1551
    %v1591 = vsel %vm25, %v1586, %v1553
    %v1592 = vsel %vm25, %v1587, %v1555
    %v1593 = vsel %vm25, %v1588, %v1557
    %v1594 = vsel %vm25, %v1589, %v1559
    %vm1595 = vcmask 195584
    %v1596 = vsel %vm1595, %v1590, %v1571
    %v1597 = vsel %vm1595, %v1591, %v1573
    %v1598 = vsel %vm1595, %v1592, %v1575
    %v1599 = vsel %vm1595, %v1593, %v1577
    %v1600 = vsel %vm1595, %v1594, %v1579
    %v1601 = vlaneseq
    %v1602 = vshrl.u32 %v1601, 7
    %v1603 = vsub.s32 1, %v1602
    %v1604 = vrot.slane %v181, %v1603
    %1609 = vrot.lane.b32.xlu0 %v165, 32
    %v1610 = vpop.permute.xlu0 %1609
    %1611 = vrot.lane.b32.xlu0 %v167, 32
    %v1612 = vpop.permute.xlu0 %1611
    %1613 = vrot.lane.b32.xlu0 %v169, 32
    %v1614 = vpop.permute.xlu0 %1613
    %1615 = vrot.lane.b32.xlu0 %v171, 32
    %v1616 = vpop.permute.xlu0 %1615
    %v1622 = vsel %vm186, %v1596, 0
    %v1625 = vsel %vm186, %v1597, 0
    %v1628 = vsel %vm186, %v1598, 0
    %v1631 = vsel %vm186, %v1599, 0
    %v1634 = vsel %vm186, %v1600, 0
    %1636 = vmatprep.subr.mxu0 0.0
    %1637 = vmatpush1.msra.mxu0 %v1610
    %1638 = vmatprep.subr.mxu0 0.0
    %1639 = vmatpush1.msra.mxu0 %v1612
    %1640 = vmatprep.subr.mxu0 0.0
    %1641 = vmatpush1.msra.mxu0 %v1614
    %1642 = vmatprep.subr.mxu0 0.0
    %1643 = vmatpush1.msra.mxu0 %v1616
    %1644 = vmatprep.subr.mxu0 0.0
    %1645 = vmatpush1.msra.mxu0 0.0
    %1646 = vmatprep.subr.mxu0 0.0
    %1647 = vmatpush1.msra.mxu0 0.0
    %1648 = vmatprep.subr.mxu0 0.0
    %1649 = vmatpush1.msra.mxu0 0.0
    %1650 = vmatprep.subr.mxu0 0.0
    %1651 = vmatpush1.msra.mxu0 0.0
    %1652 = vmatprep.subr.mxu0 0.0
    %1653 = vmatpush1.msra.mxu0 0.0
    %1654 = vmatprep.subr.mxu0 0.0
    %1655 = vmatpush1.msra.mxu0 0.0
    %1656 = vmatprep.subr.mxu0 0.0
    %1657 = vmatpush1.msra.mxu0 0.0
    %1658 = vmatprep.subr.mxu0 0.0
    %1659 = vmatpush1.msra.mxu0 0.0
    %1660 = vmatprep.subr.mxu0 0.0
    %1661 = vmatpush1.msra.mxu0 0.0
    %1662 = vmatprep.subr.mxu0 0.0
    %1663 = vmatpush1.msra.mxu0 0.0
    %1664 = vmatprep.subr.mxu0 0.0
    %1665 = vmatpush1.msra.mxu0 0.0
    %1666 = vmatprep.subr.mxu0 0.0
    %1667 = vmatpush1.msra.mxu0 0.0
    %1668 = vmatprep.subr.mxu0 0.0
    %1669 = vmatpush1.msra.mxu0 0.0
    %1670 = vmatprep.subr.mxu0 0.0
    %1671 = vmatpush1.msra.mxu0 0.0
    %1672 = vmatprep.subr.mxu0 0.0
    %1673 = vmatpush1.msra.mxu0 0.0
    %1674 = vmatprep.subr.mxu0 0.0
    %1675 = vmatpush1.msra.mxu0 0.0
    %1676 = vmatprep.subr.mxu0 0.0
    %1677 = vmatpush1.msra.mxu0 0.0
    %1678 = vmatprep.subr.mxu0 0.0
    %1679 = vmatpush1.msra.mxu0 0.0
    %1680 = vmatprep.subr.mxu0 0.0
    %1681 = vmatpush1.msra.mxu0 0.0
    %1682 = vmatprep.subr.mxu0 0.0
    %1683 = vmatpush1.msra.mxu0 0.0
    %1684 = vmatprep.subr.mxu0 0.0
    %1685 = vmatpush1.msra.mxu0 0.0
    %1686 = vmatprep.subr.mxu0 0.0
    %1687 = vmatpush1.msra.mxu0 0.0
    %1688 = vmatprep.subr.mxu0 0.0
    %1689 = vmatpush1.msra.mxu0 0.0
    %1690 = vmatprep.subr.mxu0 0.0
    %1691 = vmatpush1.msra.mxu0 0.0
    %1692 = vmatprep.subr.mxu0 0.0
    %1693 = vmatpush1.msra.mxu0 0.0
    %1694 = vmatprep.subr.mxu0 0.0
    %1695 = vmatpush1.msra.mxu0 0.0
    %1696 = vmatprep.subr.mxu0 0.0
    %1697 = vmatpush1.msra.mxu0 0.0
    %1698 = vmatprep.subr.mxu0 0.0
    %1699 = vmatpush1.msra.mxu0 0.0
    %1700 = vmatprep.mubr.f32.mxu0 0.0
    %1701 = vmatmul.mubr.f32.gmra.mrb[0].mxu0 %v1622
    %v1702 = vpop.f32.mrb[0].mxu0
    %v1703 = vadd.f32 %v1604, %v1702
    %v1704 = vpop.f32.mrb[0].mxu0
    %1705 = vmatprep.mubr.f32.mxu0 0.0
    %1706 = vmatmul.mubr.f32.gmra.mrb[0].mxu0 %v1625
    %v1707 = vpop.f32.mrb[0].mxu0
    %v1708 = vadd.f32 %v1604, %v1707
    %v1709 = vpop.f32.mrb[0].mxu0
    %1710 = vmatprep.mubr.f32.mxu0 0.0
    %1711 = vmatmul.mubr.f32.gmra.mrb[0].mxu0 %v1628
    %v1712 = vpop.f32.mrb[0].mxu0
    %v1713 = vadd.f32 %v1604, %v1712
    %v1714 = vpop.f32.mrb[0].mxu0
    %1715 = vmatprep.mubr.f32.mxu0 0.0
    %1716 = vmatmul.mubr.f32.gmra.mrb[0].mxu0 %v1631
    %v1717 = vpop.f32.mrb[0].mxu0
    %v1718 = vadd.f32 %v1604, %v1717
    %v1719 = vpop.f32.mrb[0].mxu0
    %1720 = vmatprep.mubr.f32.mxu0 0.0
    %1721 = vmatmul.mubr.f32.gmra.mrb[0].mxu0 %v1634
    %v1722 = vpop.f32.mrb[0].mxu0
    %v1723 = vadd.f32 %v1604, %v1722
    %v1724 = vpop.f32.mrb[0].mxu0
    %1725 = vdwg.mxu0
    %v1726 = vadd.f32 %v127, %v1703
    %v1727 = vadd.f32 %v133, %v1708
    %v1728 = vadd.f32 %v136, %v1713
    %v1729 = vadd.f32 %v139, %v1718
    %v1730 = vadd.f32 %v129, %v1723
    %v1731 = vsel %vm186, %v1726, 0.0
    %1732 = vadd.xlane.f32.xlu0 %v1731
    %v1733 = vpop.xlane.xlu0 %1732
    %v1734 = vsel %vm186, %v1727, 0.0
    %1735 = vadd.xlane.f32.xlu0 %v1734
    %v1736 = vpop.xlane.xlu0 %1735
    %v1737 = vsel %vm186, %v1728, 0.0
    %1738 = vadd.xlane.f32.xlu0 %v1737
    %v1739 = vpop.xlane.xlu0 %1738
    %v1740 = vsel %vm186, %v1729, 0.0
    %1741 = vadd.xlane.f32.xlu0 %v1740
    %v1742 = vpop.xlane.xlu0 %1741
    %v1743 = vsel %vm186, %v1730, 0.0
    %1744 = vadd.xlane.f32.xlu0 %v1743
    %v1745 = vpop.xlane.xlu0 %1744
    %v1746 = vrcp.pop 32.0
    %v1747 = vmul.f32 %v1733, %v1746
    %v1748 = vmul.f32 %v1736, %v1746
    %v1749 = vmul.f32 %v1739, %v1746
    %v1750 = vmul.f32 %v1742, %v1746
    %v1751 = vmul.f32 %v1745, %v1746
    %v1752 = vsub.f32 %v1726, %v1747
    %v1753 = vsub.f32 %v1727, %v1748
    %v1754 = vsub.f32 %v1728, %v1749
    %v1755 = vsub.f32 %v1729, %v1750
    %v1756 = vsub.f32 %v1730, %v1751
    %v1757 = vmul.f32 %v1752, %v1752
    %v1758 = vmul.f32 %v1753, %v1753
    %v1759 = vmul.f32 %v1754, %v1754
    %v1760 = vmul.f32 %v1755, %v1755
    %v1761 = vmul.f32 %v1756, %v1756
    %v1762 = vsel %vm186, %v1757, 0.0
    %1763 = vadd.xlane.f32.xlu0 %v1762
    %v1764 = vpop.xlane.xlu0 %1763
    %v1765 = vsel %vm186, %v1758, 0.0
    %1766 = vadd.xlane.f32.xlu0 %v1765
    %v1767 = vpop.xlane.xlu0 %1766
    %v1768 = vsel %vm186, %v1759, 0.0
    %1769 = vadd.xlane.f32.xlu0 %v1768
    %v1770 = vpop.xlane.xlu0 %1769
    %v1771 = vsel %vm186, %v1760, 0.0
    %1772 = vadd.xlane.f32.xlu0 %v1771
    %v1773 = vpop.xlane.xlu0 %1772
    %v1774 = vsel %vm186, %v1761, 0.0
    %1775 = vadd.xlane.f32.xlu0 %v1774
    %v1776 = vpop.xlane.xlu0 %1775
    %v1777 = vmul.f32 %v1764, %v1746
    %v1778 = vmul.f32 %v1767, %v1746
    %v1779 = vmul.f32 %v1770, %v1746
    %v1780 = vmul.f32 %v1773, %v1746
    %v1781 = vmul.f32 %v1776, %v1746
    %v1782 = vadd.f32 %v1777, 1e-05
    %v1783 = vadd.f32 %v1778, 1e-05
    %v1784 = vadd.f32 %v1779, 1e-05
    %v1785 = vadd.f32 %v1780, 1e-05
    %v1786 = vadd.f32 %v1781, 1e-05
    %v1787 = vrsqrt.pop %v1782
    %v1788 = vrsqrt.pop %v1783
    %v1789 = vrsqrt.pop %v1784
    %v1790 = vrsqrt.pop %v1785
    %v1791 = vrsqrt.pop %v1786
    %v1792 = vmul.f32 %v1752, %v1787
    %v1793 = vmul.f32 %v1753, %v1788
    %v1794 = vmul.f32 %v1754, %v1789
    %v1795 = vmul.f32 %v1755, %v1790
    %v1796 = vmul.f32 %v1756, %v1791
    %v1797 = vlaneseq
    %v1798 = vshrl.u32 %v1797, 7
    %v1799 = vsub.s32 4, %v1798
    %v1800 = vrot.slane %v181, %v1799
    %v1801 = vmul.f32 %v1792, %v1800
    %v1802 = vmul.f32 %v1793, %v1800
    %v1803 = vmul.f32 %v1794, %v1800
    %v1804 = vmul.f32 %v1795, %v1800
    %v1805 = vmul.f32 %v1796, %v1800
    %v1806 = vlaneseq
    %v1807 = vshrl.u32 %v1806, 7
    %v1808 = vsub.s32 5, %v1807
    %v1809 = vrot.slane %v181, %v1808
    %v1810 = vadd.f32 %v1801, %v1809
    %v1811 = vadd.f32 %v1802, %v1809
    %v1812 = vadd.f32 %v1803, %v1809
    %v1813 = vadd.f32 %v1804, %v1809
    %v1814 = vadd.f32 %v1805, %v1809
    %v1815 = vlaneseq
    %v1816 = vshrl.u32 %v1815, 7
    %v1817 = vsub.s32 2, %v1816
    %v1818 = vrot.slane %v181, %v1817
    %v1820 = vsel %vm186, %v1810, 0
    %v1823 = vsel %vm186, %v1811, 0
    %v1826 = vsel %vm186, %v1812, 0
    %v1829 = vsel %vm186, %v1813, 0
    %v1832 = vsel %vm186, %v1814, 0
    %1834 = vmatprep.subr.mxu0 0.0
    %1835 = vmatpush1.msra.mxu0 %v166
    %1836 = vmatprep.subr.mxu0 0.0
    %1837 = vmatpush1.msra.mxu0 %v168
    %1838 = vmatprep.subr.mxu0 0.0
    %1839 = vmatpush1.msra.mxu0 %v170
    %1840 = vmatprep.subr.mxu0 0.0
    %1841 = vmatpush1.msra.mxu0 %v172
    %1842 = vmatprep.subr.mxu0 0.0
    %1843 = vmatpush1.msra.mxu0 0.0
    %1844 = vmatprep.subr.mxu0 0.0
    %1845 = vmatpush1.msra.mxu0 0.0
    %1846 = vmatprep.subr.mxu0 0.0
    %1847 = vmatpush1.msra.mxu0 0.0
    %1848 = vmatprep.subr.mxu0 0.0
    %1849 = vmatpush1.msra.mxu0 0.0
    %1850 = vmatprep.subr.mxu0 0.0
    %1851 = vmatpush1.msra.mxu0 0.0
    %1852 = vmatprep.subr.mxu0 0.0
    %1853 = vmatpush1.msra.mxu0 0.0
    %1854 = vmatprep.subr.mxu0 0.0
    %1855 = vmatpush1.msra.mxu0 0.0
    %1856 = vmatprep.subr.mxu0 0.0
    %1857 = vmatpush1.msra.mxu0 0.0
    %1858 = vmatprep.subr.mxu0 0.0
    %1859 = vmatpush1.msra.mxu0 0.0
    %1860 = vmatprep.subr.mxu0 0.0
    %1861 = vmatpush1.msra.mxu0 0.0
    %1862 = vmatprep.subr.mxu0 0.0
    %1863 = vmatpush1.msra.mxu0 0.0
    %1864 = vmatprep.subr.mxu0 0.0
    %1865 = vmatpush1.msra.mxu0 0.0
    %1866 = vmatprep.subr.mxu0 0.0
    %1867 = vmatpush1.msra.mxu0 0.0
    %1868 = vmatprep.subr.mxu0 0.0
    %1869 = vmatpush1.msra.mxu0 0.0
    %1870 = vmatprep.subr.mxu0 0.0
    %1871 = vmatpush1.msra.mxu0 0.0
    %1872 = vmatprep.subr.mxu0 0.0
    %1873 = vmatpush1.msra.mxu0 0.0
    %1874 = vmatprep.subr.mxu0 0.0
    %1875 = vmatpush1.msra.mxu0 0.0
    %1876 = vmatprep.subr.mxu0 0.0
    %1877 = vmatpush1.msra.mxu0 0.0
    %1878 = vmatprep.subr.mxu0 0.0
    %1879 = vmatpush1.msra.mxu0 0.0
    %1880 = vmatprep.subr.mxu0 0.0
    %1881 = vmatpush1.msra.mxu0 0.0
    %1882 = vmatprep.subr.mxu0 0.0
    %1883 = vmatpush1.msra.mxu0 0.0
    %1884 = vmatprep.subr.mxu0 0.0
    %1885 = vmatpush1.msra.mxu0 0.0
    %1886 = vmatprep.subr.mxu0 0.0
    %1887 = vmatpush1.msra.mxu0 0.0
    %1888 = vmatprep.subr.mxu0 0.0
    %1889 = vmatpush1.msra.mxu0 0.0
    %1890 = vmatprep.subr.mxu0 0.0
    %1891 = vmatpush1.msra.mxu0 0.0
    %1892 = vmatprep.subr.mxu0 0.0
    %1893 = vmatpush1.msra.mxu0 0.0
    %1894 = vmatprep.subr.mxu0 0.0
    %1895 = vmatpush1.msra.mxu0 0.0
    %1896 = vmatprep.subr.mxu0 0.0
    %1897 = vmatpush1.msra.mxu0 0.0
    %1898 = vmatprep.mubr.f32.mxu0 0.0
    %1899 = vmatmul.mubr.f32.gmra.mrb[0].mxu0 %v1820
    %v1900 = vpop.f32.mrb[0].mxu0
    %v1901 = vadd.f32 %v1818, %v1900
    %v1902 = vpop.f32.mrb[0].mxu0
    %1903 = vmatprep.mubr.f32.mxu0 0.0
    %1904 = vmatmul.mubr.f32.gmra.mrb[0].mxu0 %v1823
    %v1905 = vpop.f32.mrb[0].mxu0
    %v1906 = vadd.f32 %v1818, %v1905
    %v1907 = vpop.f32.mrb[0].mxu0
    %1908 = vmatprep.mubr.f32.mxu0 0.0
    %1909 = vmatmul.mubr.f32.gmra.mrb[0].mxu0 %v1826
    %v1910 = vpop.f32.mrb[0].mxu0
    %v1911 = vadd.f32 %v1818, %v1910
    %v1912 = vpop.f32.mrb[0].mxu0
    %1913 = vmatprep.mubr.f32.mxu0 0.0
    %1914 = vmatmul.mubr.f32.gmra.mrb[0].mxu0 %v1829
    %v1915 = vpop.f32.mrb[0].mxu0
    %v1916 = vadd.f32 %v1818, %v1915
    %v1917 = vpop.f32.mrb[0].mxu0
    %1918 = vmatprep.mubr.f32.mxu0 0.0
    %1919 = vmatmul.mubr.f32.gmra.mrb[0].mxu0 %v1832
    %v1920 = vpop.f32.mrb[0].mxu0
    %v1921 = vadd.f32 %v1818, %v1920
    %v1922 = vpop.f32.mrb[0].mxu0
    %1923 = vdwg.mxu0
    %v1924 = vmul.f32 %v1901, %v1901
    %v1925 = vmul.f32 %v1906, %v1906
    %v1926 = vmul.f32 %v1911, %v1911
    %v1927 = vmul.f32 %v1916, %v1916
    %v1928 = vmul.f32 %v1921, %v1921
    %v1929 = vmul.f32 %v1901, %v1924
    %v1930 = vmul.f32 %v1906, %v1925
    %v1931 = vmul.f32 %v1911, %v1926
    %v1932 = vmul.f32 %v1916, %v1927
    %v1933 = vmul.f32 %v1921, %v1928
    %v1934 = vmul.f32 %v1929, 0.044715
    %v1935 = vmul.f32 %v1930, 0.044715
    %v1936 = vmul.f32 %v1931, 0.044715
    %v1937 = vmul.f32 %v1932, 0.044715
    %v1938 = vmul.f32 %v1933, 0.044715
    %v1939 = vadd.f32 %v1901, %v1934
    %v1940 = vadd.f32 %v1906, %v1935
    %v1941 = vadd.f32 %v1911, %v1936
    %v1942 = vadd.f32 %v1916, %v1937
    %v1943 = vadd.f32 %v1921, %v1938
    %v1944 = vmul.f32 %v1939, 0.7978846
    %v1945 = vmul.f32 %v1940, 0.7978846
    %v1946 = vmul.f32 %v1941, 0.7978846
    %v1947 = vmul.f32 %v1942, 0.7978846
    %v1948 = vmul.f32 %v1943, 0.7978846
    %v1949 = vtanh.pop %v1944
    %v1950 = vtanh.pop %v1945
    %v1951 = vtanh.pop %v1946
    %v1952 = vtanh.pop %v1947
    %v1953 = vtanh.pop %v1948
    %v1954 = vadd.f32 %v1949, 1.0
    %v1955 = vadd.f32 %v1950, 1.0
    %v1956 = vadd.f32 %v1951, 1.0
    %v1957 = vadd.f32 %v1952, 1.0
    %v1958 = vadd.f32 %v1953, 1.0
    %v1959 = vmul.f32 %v1954, 0.5
    %v1960 = vmul.f32 %v1955, 0.5
    %v1961 = vmul.f32 %v1956, 0.5
    %v1962 = vmul.f32 %v1957, 0.5
    %v1963 = vmul.f32 %v1958, 0.5
    %v1964 = vmul.f32 %v1901, %v1959
    %v1965 = vmul.f32 %v1906, %v1960
    %v1966 = vmul.f32 %v1911, %v1961
    %v1967 = vmul.f32 %v1916, %v1962
    %v1968 = vmul.f32 %v1921, %v1963
    %v1969 = vlaneseq
    %v1970 = vshrl.u32 %v1969, 7
    %v1971 = vsub.s32 3, %v1970
    %v1972 = vrot.slane %v181, %v1971
    %vm1973 = vcmask 523264
    %v1975 = vsel %vm1973, %v1964, 0
    %v1978 = vsel %vm1973, %v1965, 0
    %v1981 = vsel %vm1973, %v1966, 0
    %v1984 = vsel %vm1973, %v1967, 0
    %v1987 = vsel %vm1973, %v1968, 0
    %1989 = vmatprep.subr.mxu0 0.0
    %1990 = vmatpush1.msra.mxu0 %v173
    %1991 = vmatprep.subr.mxu0 0.0
    %1992 = vmatpush1.msra.mxu0 %v174
    %1993 = vmatprep.subr.mxu0 0.0
    %1994 = vmatpush1.msra.mxu0 %v175
    %1995 = vmatprep.subr.mxu0 0.0
    %1996 = vmatpush1.msra.mxu0 %v176
    %1997 = vmatprep.subr.mxu0 0.0
    %1998 = vmatpush1.msra.mxu0 %v177
    %1999 = vmatprep.subr.mxu0 0.0
    %2000 = vmatpush1.msra.mxu0 %v178
    %2001 = vmatprep.subr.mxu0 0.0
    %2002 = vmatpush1.msra.mxu0 %v179
    %2003 = vmatprep.subr.mxu0 0.0
    %2004 = vmatpush1.msra.mxu0 %v180
    %2005 = vmatprep.subr.mxu0 0.0
    %2006 = vmatpush1.msra.mxu0 0.0
    %2007 = vmatprep.subr.mxu0 0.0
    %2008 = vmatpush1.msra.mxu0 0.0
    %2009 = vmatprep.subr.mxu0 0.0
    %2010 = vmatpush1.msra.mxu0 0.0
    %2011 = vmatprep.subr.mxu0 0.0
    %2012 = vmatpush1.msra.mxu0 0.0
    %2013 = vmatprep.subr.mxu0 0.0
    %2014 = vmatpush1.msra.mxu0 0.0
    %2015 = vmatprep.subr.mxu0 0.0
    %2016 = vmatpush1.msra.mxu0 0.0
    %2017 = vmatprep.subr.mxu0 0.0
    %2018 = vmatpush1.msra.mxu0 0.0
    %2019 = vmatprep.subr.mxu0 0.0
    %2020 = vmatpush1.msra.mxu0 0.0
    %2021 = vmatprep.subr.mxu0 0.0
    %2022 = vmatpush1.msra.mxu0 0.0
    %2023 = vmatprep.subr.mxu0 0.0
    %2024 = vmatpush1.msra.mxu0 0.0
    %2025 = vmatprep.subr.mxu0 0.0
    %2026 = vmatpush1.msra.mxu0 0.0
    %2027 = vmatprep.subr.mxu0 0.0
    %2028 = vmatpush1.msra.mxu0 0.0
    %2029 = vmatprep.subr.mxu0 0.0
    %2030 = vmatpush1.msra.mxu0 0.0
    %2031 = vmatprep.subr.mxu0 0.0
    %2032 = vmatpush1.msra.mxu0 0.0
    %2033 = vmatprep.subr.mxu0 0.0
    %2034 = vmatpush1.msra.mxu0 0.0
    %2035 = vmatprep.subr.mxu0 0.0
    %2036 = vmatpush1.msra.mxu0 0.0
    %2037 = vmatprep.subr.mxu0 0.0
    %2038 = vmatpush1.msra.mxu0 0.0
    %2039 = vmatprep.subr.mxu0 0.0
    %2040 = vmatpush1.msra.mxu0 0.0
    %2041 = vmatprep.subr.mxu0 0.0
    %2042 = vmatpush1.msra.mxu0 0.0
    %2043 = vmatprep.subr.mxu0 0.0
    %2044 = vmatpush1.msra.mxu0 0.0
    %2045 = vmatprep.subr.mxu0 0.0
    %2046 = vmatpush1.msra.mxu0 0.0
    %2047 = vmatprep.subr.mxu0 0.0
    %2048 = vmatpush1.msra.mxu0 0.0
    %2049 = vmatprep.subr.mxu0 0.0
    %2050 = vmatpush1.msra.mxu0 0.0
    %2051 = vmatprep.subr.mxu0 0.0
    %2052 = vmatpush1.msra.mxu0 0.0
    %2053 = vmatprep.mubr.f32.mxu0 0.0
    %2054 = vmatmul.mubr.f32.gmra.mrb[0].mxu0 %v1975
    %v2055 = vpop.f32.mrb[0].mxu0
    %v2056 = vadd.f32 %v1972, %v2055
    %v2057 = vpop.f32.mrb[0].mxu0
    %2058 = vmatprep.mubr.f32.mxu0 0.0
    %2059 = vmatmul.mubr.f32.gmra.mrb[0].mxu0 %v1978
    %v2060 = vpop.f32.mrb[0].mxu0
    %v2061 = vadd.f32 %v1972, %v2060
    %v2062 = vpop.f32.mrb[0].mxu0
    %2063 = vmatprep.mubr.f32.mxu0 0.0
    %2064 = vmatmul.mubr.f32.gmra.mrb[0].mxu0 %v1981
    %v2065 = vpop.f32.mrb[0].mxu0
    %v2066 = vadd.f32 %v1972, %v2065
    %v2067 = vpop.f32.mrb[0].mxu0
    %2068 = vmatprep.mubr.f32.mxu0 0.0
    %2069 = vmatmul.mubr.f32.gmra.mrb[0].mxu0 %v1984
    %v2070 = vpop.f32.mrb[0].mxu0
    %v2071 = vadd.f32 %v1972, %v2070
    %v2072 = vpop.f32.mrb[0].mxu0
    %2073 = vmatprep.mubr.f32.mxu0 0.0
    %2074 = vmatmul.mubr.f32.gmra.mrb[0].mxu0 %v1987
    %v2075 = vpop.f32.mrb[0].mxu0
    %v2076 = vadd.f32 %v1972, %v2075
    %v2077 = vpop.f32.mrb[0].mxu0
    %2078 = vdwg.mxu0
    %v2079 = vadd.f32 %v1810, %v2056
    %v2080 = vadd.f32 %v1811, %v2061
    %v2081 = vadd.f32 %v1812, %v2066
    %v2082 = vadd.f32 %v1813, %v2071
    %v2083 = vadd.f32 %v1814, %v2076
    %v2084 = vsel %vm186, %v2079, 0.0
    %2085 = vadd.xlane.f32.xlu0 %v2084
    %v2086 = vpop.xlane.xlu0 %2085
    %v2087 = vsel %vm186, %v2080, 0.0
    %2088 = vadd.xlane.f32.xlu0 %v2087
    %v2089 = vpop.xlane.xlu0 %2088
    %v2090 = vsel %vm186, %v2081, 0.0
    %2091 = vadd.xlane.f32.xlu0 %v2090
    %v2092 = vpop.xlane.xlu0 %2091
    %v2093 = vsel %vm186, %v2082, 0.0
    %2094 = vadd.xlane.f32.xlu0 %v2093
    %v2095 = vpop.xlane.xlu0 %2094
    %v2096 = vsel %vm186, %v2083, 0.0
    %2097 = vadd.xlane.f32.xlu0 %v2096
    %v2098 = vpop.xlane.xlu0 %2097
    %v2099 = vmul.f32 %v2086, %v1746
    %v2100 = vmul.f32 %v2089, %v1746
    %v2101 = vmul.f32 %v2092, %v1746
    %v2102 = vmul.f32 %v2095, %v1746
    %v2103 = vmul.f32 %v2098, %v1746
    %v2104 = vsub.f32 %v2079, %v2099
    %v2105 = vsub.f32 %v2080, %v2100
    %v2106 = vsub.f32 %v2081, %v2101
    %v2107 = vsub.f32 %v2082, %v2102
    %v2108 = vsub.f32 %v2083, %v2103
    %v2109 = vmul.f32 %v2104, %v2104
    %v2110 = vmul.f32 %v2105, %v2105
    %v2111 = vmul.f32 %v2106, %v2106
    %v2112 = vmul.f32 %v2107, %v2107
    %v2113 = vmul.f32 %v2108, %v2108
    %v2114 = vsel %vm186, %v2109, 0.0
    %2115 = vadd.xlane.f32.xlu0 %v2114
    %v2116 = vpop.xlane.xlu0 %2115
    %v2117 = vsel %vm186, %v2110, 0.0
    %2118 = vadd.xlane.f32.xlu0 %v2117
    %v2119 = vpop.xlane.xlu0 %2118
    %v2120 = vsel %vm186, %v2111, 0.0
    %2121 = vadd.xlane.f32.xlu0 %v2120
    %v2122 = vpop.xlane.xlu0 %2121
    %v2123 = vsel %vm186, %v2112, 0.0
    %2124 = vadd.xlane.f32.xlu0 %v2123
    %v2125 = vpop.xlane.xlu0 %2124
    %v2126 = vsel %vm186, %v2113, 0.0
    %2127 = vadd.xlane.f32.xlu0 %v2126
    %v2128 = vpop.xlane.xlu0 %2127
    %v2129 = vmul.f32 %v2116, %v1746
    %v2130 = vmul.f32 %v2119, %v1746
    %v2131 = vmul.f32 %v2122, %v1746
    %v2132 = vmul.f32 %v2125, %v1746
    %v2133 = vmul.f32 %v2128, %v1746
    %v2134 = vadd.f32 %v2129, 1e-05
    %v2135 = vadd.f32 %v2130, 1e-05
    %v2136 = vadd.f32 %v2131, 1e-05
    %v2137 = vadd.f32 %v2132, 1e-05
    %v2138 = vadd.f32 %v2133, 1e-05
    %v2139 = vrsqrt.pop %v2134
    %v2140 = vrsqrt.pop %v2135
    %v2141 = vrsqrt.pop %v2136
    %v2142 = vrsqrt.pop %v2137
    %v2143 = vrsqrt.pop %v2138
    %v2144 = vmul.f32 %v2104, %v2139
    %v2145 = vmul.f32 %v2105, %v2140
    %v2146 = vmul.f32 %v2106, %v2141
    %v2147 = vmul.f32 %v2107, %v2142
    %v2148 = vmul.f32 %v2108, %v2143
    %v2149 = vlaneseq
    %v2150 = vshrl.u32 %v2149, 7
    %v2151 = vsub.s32 6, %v2150
    %v2152 = vrot.slane %v181, %v2151
    %v2153 = vmul.f32 %v2144, %v2152
    %v2154 = vmul.f32 %v2145, %v2152
    %v2155 = vmul.f32 %v2146, %v2152
    %v2156 = vmul.f32 %v2147, %v2152
    %v2157 = vmul.f32 %v2148, %v2152
    %v2158 = vlaneseq
    %v2159 = vshrl.u32 %v2158, 7
    %v2160 = vsub.s32 7, %v2159
    %v2161 = vrot.slane %v181, %v2160
    %v2162 = vadd.f32 %v2153, %v2161
    %v2163 = vadd.f32 %v2154, %v2161
    %v2164 = vadd.f32 %v2155, %v2161
    %v2165 = vadd.f32 %v2156, %v2161
    %v2166 = vadd.f32 %v2157, %v2161
    %s2167 = scalar_lea.vmem %s2, 64
    %v2168 = vld [vmem:[%s2167] sm:$0xff]
    %v2169 = vld [vmem:[%s2167 + $0x8] sm:$0xff]
    %v2170 = vld [vmem:[%s2167 + $0x10] sm:$0xff]
    %v2171 = vld [vmem:[%s2167 + $0x18] sm:$0xff]
    %v2172 = vld [vmem:[%s2167 + $0x20] sm:$0xff]
    %v2173 = vld [vmem:[%s2167 + $0x28] sm:$0xff]
    %v2174 = vld [vmem:[%s2167 + $0x30] sm:$0xff]
    %v2175 = vld [vmem:[%s2167 + $0x38] sm:$0xff]
    %s2176 = scalar_lea.vmem %s3, 64
    %v2177 = vld [vmem:[%s2176] sm:$0xff]
    %v2178 = vld [vmem:[%s2176 + $0x8] sm:$0xff]
    %v2179 = vld [vmem:[%s2176 + $0x10] sm:$0xff]
    %v2180 = vld [vmem:[%s2176 + $0x18] sm:$0xff]
    %v2181 = vld [vmem:[%s2176 + $0x20] sm:$0xff]
    %v2182 = vld [vmem:[%s2176 + $0x28] sm:$0xff]
    %v2183 = vld [vmem:[%s2176 + $0x30] sm:$0xff]
    %v2184 = vld [vmem:[%s2176 + $0x38] sm:$0xff]
    %s2185 = scalar_lea.vmem %s4, 8
    %v2186 = vld [vmem:[%s2185] sm:$0xff]
    %v2187 = vlaneseq
    %v2188 = vshrl.u32 %v2187, 7
    %v2189 = vsub.s32 0, %v2188
    %v2190 = vrot.slane %v2186, %v2189
    %v2192 = vsel %vm186, %v2162, 0
    %v2195 = vsel %vm186, %v2163, 0
    %v2198 = vsel %vm186, %v2164, 0
    %v2201 = vsel %vm186, %v2165, 0
    %v2204 = vsel %vm186, %v2166, 0
    %2206 = vmatprep.subr.mxu0 0.0
    %2207 = vmatpush1.msra.mxu0 %v2168
    %2208 = vmatprep.subr.mxu0 0.0
    %2209 = vmatpush1.msra.mxu0 %v2170
    %2210 = vmatprep.subr.mxu0 0.0
    %2211 = vmatpush1.msra.mxu0 %v2172
    %2212 = vmatprep.subr.mxu0 0.0
    %2213 = vmatpush1.msra.mxu0 %v2174
    %2214 = vmatprep.subr.mxu0 0.0
    %2215 = vmatpush1.msra.mxu0 0.0
    %2216 = vmatprep.subr.mxu0 0.0
    %2217 = vmatpush1.msra.mxu0 0.0
    %2218 = vmatprep.subr.mxu0 0.0
    %2219 = vmatpush1.msra.mxu0 0.0
    %2220 = vmatprep.subr.mxu0 0.0
    %2221 = vmatpush1.msra.mxu0 0.0
    %2222 = vmatprep.subr.mxu0 0.0
    %2223 = vmatpush1.msra.mxu0 0.0
    %2224 = vmatprep.subr.mxu0 0.0
    %2225 = vmatpush1.msra.mxu0 0.0
    %2226 = vmatprep.subr.mxu0 0.0
    %2227 = vmatpush1.msra.mxu0 0.0
    %2228 = vmatprep.subr.mxu0 0.0
    %2229 = vmatpush1.msra.mxu0 0.0
    %2230 = vmatprep.subr.mxu0 0.0
    %2231 = vmatpush1.msra.mxu0 0.0
    %2232 = vmatprep.subr.mxu0 0.0
    %2233 = vmatpush1.msra.mxu0 0.0
    %2234 = vmatprep.subr.mxu0 0.0
    %2235 = vmatpush1.msra.mxu0 0.0
    %2236 = vmatprep.subr.mxu0 0.0
    %2237 = vmatpush1.msra.mxu0 0.0
    %2238 = vmatprep.subr.mxu0 0.0
    %2239 = vmatpush1.msra.mxu0 0.0
    %2240 = vmatprep.subr.mxu0 0.0
    %2241 = vmatpush1.msra.mxu0 0.0
    %2242 = vmatprep.subr.mxu0 0.0
    %2243 = vmatpush1.msra.mxu0 0.0
    %2244 = vmatprep.subr.mxu0 0.0
    %2245 = vmatpush1.msra.mxu0 0.0
    %2246 = vmatprep.subr.mxu0 0.0
    %2247 = vmatpush1.msra.mxu0 0.0
    %2248 = vmatprep.subr.mxu0 0.0
    %2249 = vmatpush1.msra.mxu0 0.0
    %2250 = vmatprep.subr.mxu0 0.0
    %2251 = vmatpush1.msra.mxu0 0.0
    %2252 = vmatprep.subr.mxu0 0.0
    %2253 = vmatpush1.msra.mxu0 0.0
    %2254 = vmatprep.subr.mxu0 0.0
    %2255 = vmatpush1.msra.mxu0 0.0
    %2256 = vmatprep.subr.mxu0 0.0
    %2257 = vmatpush1.msra.mxu0 0.0
    %2258 = vmatprep.subr.mxu0 0.0
    %2259 = vmatpush1.msra.mxu0 0.0
    %2260 = vmatprep.subr.mxu0 0.0
    %2261 = vmatpush1.msra.mxu0 0.0
    %2262 = vmatprep.subr.mxu0 0.0
    %2263 = vmatpush1.msra.mxu0 0.0
    %2264 = vmatprep.subr.mxu0 0.0
    %2265 = vmatpush1.msra.mxu0 0.0
    %2266 = vmatprep.subr.mxu0 0.0
    %2267 = vmatpush1.msra.mxu0 0.0
    %2268 = vmatprep.subr.mxu0 0.0
    %2269 = vmatpush1.msra.mxu0 0.0
    %2270 = vmatprep.mubr.f32.mxu0 0.0
    %2271 = vmatmul.mubr.f32.gmra.mrb[0].mxu0 %v2192
    %v2272 = vpop.f32.mrb[0].mxu0
    %v2273 = vadd.f32 %v2190, %v2272
    %v2274 = vpop.f32.mrb[0].mxu0
    %2275 = vmatprep.mubr.f32.mxu0 0.0
    %2276 = vmatmul.mubr.f32.gmra.mrb[0].mxu0 %v2195
    %v2277 = vpop.f32.mrb[0].mxu0
    %v2278 = vadd.f32 %v2190, %v2277
    %v2279 = vpop.f32.mrb[0].mxu0
    %2280 = vmatprep.mubr.f32.mxu0 0.0
    %2281 = vmatmul.mubr.f32.gmra.mrb[0].mxu0 %v2198
    %v2282 = vpop.f32.mrb[0].mxu0
    %v2283 = vadd.f32 %v2190, %v2282
    %v2284 = vpop.f32.mrb[0].mxu0
    %2285 = vmatprep.mubr.f32.mxu0 0.0
    %2286 = vmatmul.mubr.f32.gmra.mrb[0].mxu0 %v2201
    %v2287 = vpop.f32.mrb[0].mxu0
    %v2288 = vadd.f32 %v2190, %v2287
    %v2289 = vpop.f32.mrb[0].mxu0
    %2290 = vmatprep.mubr.f32.mxu0 0.0
    %2291 = vmatmul.mubr.f32.gmra.mrb[0].mxu0 %v2204
    %v2292 = vpop.f32.mrb[0].mxu0
    %v2293 = vadd.f32 %v2190, %v2292
    %v2294 = vpop.f32.mrb[0].mxu0
    %2295 = vdwg.mxu0
    %2301 = vrot.lane.b32.xlu0 %v2273, 96
    %v2302 = vpop.permute.xlu0 %2301
    %2303 = vrot.lane.b32.xlu0 %v2278, 96
    %v2304 = vpop.permute.xlu0 %2303
    %2305 = vrot.lane.b32.xlu0 %v2283, 96
    %v2306 = vpop.permute.xlu0 %2305
    %2307 = vrot.lane.b32.xlu0 %v2288, 96
    %v2308 = vpop.permute.xlu0 %2307
    %2309 = vrot.lane.b32.xlu0 %v2293, 96
    %v2310 = vpop.permute.xlu0 %2309
    %v2311 = vsel %vm303, %v2273, 0
    %v2313 = vsel %vm303, %v2278, 0
    %v2315 = vsel %vm303, %v2283, 0
    %v2317 = vsel %vm303, %v2288, 0
    %v2319 = vsel %vm303, %v2293, 0
    %v2321 = vsel %vm303, %v2302, 0
    %v2323 = vsel %vm303, %v2304, 0
    %v2325 = vsel %vm303, %v2306, 0
    %v2327 = vsel %vm303, %v2308, 0
    %v2329 = vsel %vm303, %v2310, 0
    %2331 = vmatprep.subr.mxu0 0.0
    %2332 = vmatpush1.xpose.msra.mxu0 %v2321
    %2333 = vmatprep.subr.mxu0 0.0
    %2334 = vmatpush1.xpose.msra.mxu0 %v2323
    %2335 = vmatprep.subr.mxu0 0.0
    %2336 = vmatpush1.xpose.msra.mxu0 %v2325
    %2337 = vmatprep.subr.mxu0 0.0
    %2338 = vmatpush1.xpose.msra.mxu0 %v2327
    %2339 = vmatprep.subr.mxu0 0.0
    %2340 = vmatpush1.xpose.msra.mxu0 %v2329
    %2341 = vmatprep.subr.mxu0 0.0
    %2342 = vmatpush1.xpose.msra.mxu0 0.0
    %2343 = vmatprep.subr.mxu0 0.0
    %2344 = vmatpush1.xpose.msra.mxu0 0.0
    %2345 = vmatprep.subr.mxu0 0.0
    %2346 = vmatpush1.xpose.msra.mxu0 0.0
    %2347 = vmatprep.subr.mxu0 0.0
    %2348 = vmatpush1.xpose.msra.mxu0 0.0
    %2349 = vmatprep.subr.mxu0 0.0
    %2350 = vmatpush1.xpose.msra.mxu0 0.0
    %2351 = vmatprep.subr.mxu0 0.0
    %2352 = vmatpush1.xpose.msra.mxu0 0.0
    %2353 = vmatprep.subr.mxu0 0.0
    %2354 = vmatpush1.xpose.msra.mxu0 0.0
    %2355 = vmatprep.subr.mxu0 0.0
    %2356 = vmatpush1.xpose.msra.mxu0 0.0
    %2357 = vmatprep.subr.mxu0 0.0
    %2358 = vmatpush1.xpose.msra.mxu0 0.0
    %2359 = vmatprep.subr.mxu0 0.0
    %2360 = vmatpush1.xpose.msra.mxu0 0.0
    %2361 = vmatprep.subr.mxu0 0.0
    %2362 = vmatpush1.xpose.msra.mxu0 0.0
    %2363 = vmatprep.subr.mxu0 0.0
    %2364 = vmatpush1.xpose.msra.mxu0 0.0
    %2365 = vmatprep.subr.mxu0 0.0
    %2366 = vmatpush1.xpose.msra.mxu0 0.0
    %2367 = vmatprep.subr.mxu0 0.0
    %2368 = vmatpush1.xpose.msra.mxu0 0.0
    %2369 = vmatprep.subr.mxu0 0.0
    %2370 = vmatpush1.xpose.msra.mxu0 0.0
    %2371 = vmatprep.subr.mxu0 0.0
    %2372 = vmatpush1.xpose.msra.mxu0 0.0
    %2373 = vmatprep.subr.mxu0 0.0
    %2374 = vmatpush1.xpose.msra.mxu0 0.0
    %2375 = vmatprep.subr.mxu0 0.0
    %2376 = vmatpush1.xpose.msra.mxu0 0.0
    %2377 = vmatprep.subr.mxu0 0.0
    %2378 = vmatpush1.xpose.msra.mxu0 0.0
    %2379 = vmatprep.subr.mxu0 0.0
    %2380 = vmatpush1.xpose.msra.mxu0 0.0
    %2381 = vmatprep.subr.mxu0 0.0
    %2382 = vmatpush1.xpose.msra.mxu0 0.0
    %2383 = vmatprep.subr.mxu0 0.0
    %2384 = vmatpush1.xpose.msra.mxu0 0.0
    %2385 = vmatprep.subr.mxu0 0.0
    %2386 = vmatpush1.xpose.msra.mxu0 0.0
    %2387 = vmatprep.subr.mxu0 0.0
    %2388 = vmatpush1.xpose.msra.mxu0 0.0
    %2389 = vmatprep.subr.mxu0 0.0
    %2390 = vmatpush1.xpose.msra.mxu0 0.0
    %2391 = vmatprep.subr.mxu0 0.0
    %2392 = vmatpush1.xpose.msra.mxu0 0.0
    %2393 = vmatprep.subr.mxu0 0.0
    %2394 = vmatpush1.xpose.msra.mxu0 0.0
    %2395 = vmatprep.mubr.f32.mxu0 0.0
    %2396 = vmatmul.mubr.f32.gmra.mrb[0].mxu0 %v2311
    %v2397 = vpop.f32.mrb[0].mxu0
    %v2398 = vadd.f32 %v160, %v2397
    %v2399 = vpop.f32.mrb[0].mxu0
    %2400 = vmatprep.mubr.f32.mxu0 0.0
    %2401 = vmatmul.mubr.f32.gmra.mrb[0].mxu0 %v2313
    %v2402 = vpop.f32.mrb[0].mxu0
    %v2403 = vadd.f32 %v161, %v2402
    %v2404 = vpop.f32.mrb[0].mxu0
    %2405 = vmatprep.mubr.f32.mxu0 0.0
    %2406 = vmatmul.mubr.f32.gmra.mrb[0].mxu0 %v2315
    %v2407 = vpop.f32.mrb[0].mxu0
    %v2408 = vadd.f32 %v162, %v2407
    %v2409 = vpop.f32.mrb[0].mxu0
    %2410 = vmatprep.mubr.f32.mxu0 0.0
    %2411 = vmatmul.mubr.f32.gmra.mrb[0].mxu0 %v2317
    %v2412 = vpop.f32.mrb[0].mxu0
    %v2413 = vadd.f32 %v163, %v2412
    %v2414 = vpop.f32.mrb[0].mxu0
    %2415 = vmatprep.mubr.f32.mxu0 0.0
    %2416 = vmatmul.mubr.f32.gmra.mrb[0].mxu0 %v2319
    %v2417 = vpop.f32.mrb[0].mxu0
    %v2418 = vadd.f32 %v164, %v2417
    %v2419 = vpop.f32.mrb[0].mxu0
    %2420 = vdwg.mxu0
    %v2421 = vsel %vm414, %v2398, -inf
    %2422 = vmax.xlane.f32.xlu0 %v2421
    %v2423 = vpop.xlane.xlu0 %2422
    %v2424 = vsel %vm414, %v2403, -inf
    %2425 = vmax.xlane.f32.xlu0 %v2424
    %v2426 = vpop.xlane.xlu0 %2425
    %v2427 = vsel %vm414, %v2408, -inf
    %2428 = vmax.xlane.f32.xlu0 %v2427
    %v2429 = vpop.xlane.xlu0 %2428
    %v2430 = vsel %vm414, %v2413, -inf
    %2431 = vmax.xlane.f32.xlu0 %v2430
    %v2432 = vpop.xlane.xlu0 %2431
    %v2433 = vsel %vm414, %v2418, -inf
    %2434 = vmax.xlane.f32.xlu0 %v2433
    %v2435 = vpop.xlane.xlu0 %2434
    %v2436 = vsub.f32 %v2398, %v2423
    %v2437 = vsub.f32 %v2403, %v2426
    %v2438 = vsub.f32 %v2408, %v2429
    %v2439 = vsub.f32 %v2413, %v2432
    %v2440 = vsub.f32 %v2418, %v2435
    %v2441 = vmul.f32 %v2436, 1.442695
    %v2442 = vpow.pop %v2441
    %v2443 = vmul.f32 %v2437, 1.442695
    %v2444 = vpow.pop %v2443
    %v2445 = vmul.f32 %v2438, 1.442695
    %v2446 = vpow.pop %v2445
    %v2447 = vmul.f32 %v2439, 1.442695
    %v2448 = vpow.pop %v2447
    %v2449 = vmul.f32 %v2440, 1.442695
    %v2450 = vpow.pop %v2449
    %v2451 = vsel %vm414, %v2442, 0.0
    %2452 = vadd.xlane.f32.xlu0 %v2451
    %v2453 = vpop.xlane.xlu0 %2452
    %v2454 = vsel %vm414, %v2444, 0.0
    %2455 = vadd.xlane.f32.xlu0 %v2454
    %v2456 = vpop.xlane.xlu0 %2455
    %v2457 = vsel %vm414, %v2446, 0.0
    %2458 = vadd.xlane.f32.xlu0 %v2457
    %v2459 = vpop.xlane.xlu0 %2458
    %v2460 = vsel %vm414, %v2448, 0.0
    %2461 = vadd.xlane.f32.xlu0 %v2460
    %v2462 = vpop.xlane.xlu0 %2461
    %v2463 = vsel %vm414, %v2450, 0.0
    %2464 = vadd.xlane.f32.xlu0 %v2463
    %v2465 = vpop.xlane.xlu0 %2464
    %v2466 = vrcp.pop %v2453
    %v2467 = vmul.f32 1.0, %v2466
    %v2468 = vrcp.pop %v2456
    %v2469 = vmul.f32 1.0, %v2468
    %v2470 = vrcp.pop %v2459
    %v2471 = vmul.f32 1.0, %v2470
    %v2472 = vrcp.pop %v2462
    %v2473 = vmul.f32 1.0, %v2472
    %v2474 = vrcp.pop %v2465
    %v2475 = vmul.f32 1.0, %v2474
    %v2476 = vmul.f32 %v2442, %v2467
    %v2477 = vmul.f32 %v2444, %v2469
    %v2478 = vmul.f32 %v2446, %v2471
    %v2479 = vmul.f32 %v2448, %v2473
    %v2480 = vmul.f32 %v2450, %v2475
    %2481 = vrot.lane.b32.xlu0 %v2273, 64
    %v2482 = vpop.permute.xlu0 %2481
    %2483 = vrot.lane.b32.xlu0 %v2278, 64
    %v2484 = vpop.permute.xlu0 %2483
    %2485 = vrot.lane.b32.xlu0 %v2283, 64
    %v2486 = vpop.permute.xlu0 %2485
    %2487 = vrot.lane.b32.xlu0 %v2288, 64
    %v2488 = vpop.permute.xlu0 %2487
    %2489 = vrot.lane.b32.xlu0 %v2293, 64
    %v2490 = vpop.permute.xlu0 %2489
    %v2497 = vsel %vm414, %v2476, 0
    %v2500 = vsel %vm414, %v2477, 0
    %v2503 = vsel %vm414, %v2478, 0
    %v2506 = vsel %vm414, %v2479, 0
    %v2509 = vsel %vm414, %v2480, 0
    %2511 = vmatprep.subr.mxu0 0.0
    %2512 = vmatpush1.msra.mxu0 %v2482
    %2513 = vmatprep.subr.mxu0 0.0
    %2514 = vmatpush1.msra.mxu0 %v2484
    %2515 = vmatprep.subr.mxu0 0.0
    %2516 = vmatpush1.msra.mxu0 %v2486
    %2517 = vmatprep.subr.mxu0 0.0
    %2518 = vmatpush1.msra.mxu0 %v2488
    %2519 = vmatprep.subr.mxu0 0.0
    %2520 = vmatpush1.msra.mxu0 %v2490
    %2521 = vmatprep.subr.mxu0 0.0
    %2522 = vmatpush1.msra.mxu0 0.0
    %2523 = vmatprep.subr.mxu0 0.0
    %2524 = vmatpush1.msra.mxu0 0.0
    %2525 = vmatprep.subr.mxu0 0.0
    %2526 = vmatpush1.msra.mxu0 0.0
    %2527 = vmatprep.subr.mxu0 0.0
    %2528 = vmatpush1.msra.mxu0 0.0
    %2529 = vmatprep.subr.mxu0 0.0
    %2530 = vmatpush1.msra.mxu0 0.0
    %2531 = vmatprep.subr.mxu0 0.0
    %2532 = vmatpush1.msra.mxu0 0.0
    %2533 = vmatprep.subr.mxu0 0.0
    %2534 = vmatpush1.msra.mxu0 0.0
    %2535 = vmatprep.subr.mxu0 0.0
    %2536 = vmatpush1.msra.mxu0 0.0
    %2537 = vmatprep.subr.mxu0 0.0
    %2538 = vmatpush1.msra.mxu0 0.0
    %2539 = vmatprep.subr.mxu0 0.0
    %2540 = vmatpush1.msra.mxu0 0.0
    %2541 = vmatprep.subr.mxu0 0.0
    %2542 = vmatpush1.msra.mxu0 0.0
    %2543 = vmatprep.subr.mxu0 0.0
    %2544 = vmatpush1.msra.mxu0 0.0
    %2545 = vmatprep.subr.mxu0 0.0
    %2546 = vmatpush1.msra.mxu0 0.0
    %2547 = vmatprep.subr.mxu0 0.0
    %2548 = vmatpush1.msra.mxu0 0.0
    %2549 = vmatprep.subr.mxu0 0.0
    %2550 = vmatpush1.msra.mxu0 0.0
    %2551 = vmatprep.subr.mxu0 0.0
    %2552 = vmatpush1.msra.mxu0 0.0
    %2553 = vmatprep.subr.mxu0 0.0
    %2554 = vmatpush1.msra.mxu0 0.0
    %2555 = vmatprep.subr.mxu0 0.0
    %2556 = vmatpush1.msra.mxu0 0.0
    %2557 = vmatprep.subr.mxu0 0.0
    %2558 = vmatpush1.msra.mxu0 0.0
    %2559 = vmatprep.subr.mxu0 0.0
    %2560 = vmatpush1.msra.mxu0 0.0
    %2561 = vmatprep.subr.mxu0 0.0
    %2562 = vmatpush1.msra.mxu0 0.0
    %2563 = vmatprep.subr.mxu0 0.0
    %2564 = vmatpush1.msra.mxu0 0.0
    %2565 = vmatprep.subr.mxu0 0.0
    %2566 = vmatpush1.msra.mxu0 0.0
    %2567 = vmatprep.subr.mxu0 0.0
    %2568 = vmatpush1.msra.mxu0 0.0
    %2569 = vmatprep.subr.mxu0 0.0
    %2570 = vmatpush1.msra.mxu0 0.0
    %2571 = vmatprep.subr.mxu0 0.0
    %2572 = vmatpush1.msra.mxu0 0.0
    %2573 = vmatprep.subr.mxu0 0.0
    %2574 = vmatpush1.msra.mxu0 0.0
    %2575 = vmatprep.mubr.f32.mxu0 0.0
    %2576 = vmatmul.mubr.f32.gmra.mrb[0].mxu0 %v2497
    %v2577 = vpop.f32.mrb[0].mxu0
    %v2578 = vadd.f32 0.0, %v2577
    %v2579 = vpop.f32.mrb[0].mxu0
    %2580 = vmatprep.mubr.f32.mxu0 0.0
    %2581 = vmatmul.mubr.f32.gmra.mrb[0].mxu0 %v2500
    %v2582 = vpop.f32.mrb[0].mxu0
    %v2583 = vadd.f32 0.0, %v2582
    %v2584 = vpop.f32.mrb[0].mxu0
    %2585 = vmatprep.mubr.f32.mxu0 0.0
    %2586 = vmatmul.mubr.f32.gmra.mrb[0].mxu0 %v2503
    %v2587 = vpop.f32.mrb[0].mxu0
    %v2588 = vadd.f32 0.0, %v2587
    %v2589 = vpop.f32.mrb[0].mxu0
    %2590 = vmatprep.mubr.f32.mxu0 0.0
    %2591 = vmatmul.mubr.f32.gmra.mrb[0].mxu0 %v2506
    %v2592 = vpop.f32.mrb[0].mxu0
    %v2593 = vadd.f32 0.0, %v2592
    %v2594 = vpop.f32.mrb[0].mxu0
    %2595 = vmatprep.mubr.f32.mxu0 0.0
    %2596 = vmatmul.mubr.f32.gmra.mrb[0].mxu0 %v2509
    %v2597 = vpop.f32.mrb[0].mxu0
    %v2598 = vadd.f32 0.0, %v2597
    %v2599 = vpop.f32.mrb[0].mxu0
    %2600 = vdwg.mxu0
    %2601 = vrot.lane.b32.xlu0 %v2273, 120
    %v2602 = vpop.permute.xlu0 %2601
    %2603 = vrot.lane.b32.xlu0 %v2278, 120
    %v2604 = vpop.permute.xlu0 %2603
    %2605 = vrot.lane.b32.xlu0 %v2283, 120
    %v2606 = vpop.permute.xlu0 %2605
    %2607 = vrot.lane.b32.xlu0 %v2288, 120
    %v2608 = vpop.permute.xlu0 %2607
    %2609 = vrot.lane.b32.xlu0 %v2293, 120
    %v2610 = vpop.permute.xlu0 %2609
    %2611 = vrot.lane.b32.xlu0 %v2273, 88
    %v2612 = vpop.permute.xlu0 %2611
    %2613 = vrot.lane.b32.xlu0 %v2278, 88
    %v2614 = vpop.permute.xlu0 %2613
    %2615 = vrot.lane.b32.xlu0 %v2283, 88
    %v2616 = vpop.permute.xlu0 %2615
    %2617 = vrot.lane.b32.xlu0 %v2288, 88
    %v2618 = vpop.permute.xlu0 %2617
    %2619 = vrot.lane.b32.xlu0 %v2293, 88
    %v2620 = vpop.permute.xlu0 %2619
    %v2621 = vsel %vm303, %v2602, 0
    %v2623 = vsel %vm303, %v2604, 0
    %v2625 = vsel %vm303, %v2606, 0
    %v2627 = vsel %vm303, %v2608, 0
    %v2629 = vsel %vm303, %v2610, 0
    %v2631 = vsel %vm303, %v2612, 0
    %v2633 = vsel %vm303, %v2614, 0
    %v2635 = vsel %vm303, %v2616, 0
    %v2637 = vsel %vm303, %v2618, 0
    %v2639 = vsel %vm303, %v2620, 0
    %2641 = vmatprep.subr.mxu0 0.0
    %2642 = vmatpush1.xpose.msra.mxu0 %v2631
    %2643 = vmatprep.subr.mxu0 0.0
    %2644 = vmatpush1.xpose.msra.mxu0 %v2633
    %2645 = vmatprep.subr.mxu0 0.0
    %2646 = vmatpush1.xpose.msra.mxu0 %v2635
    %2647 = vmatprep.subr.mxu0 0.0
    %2648 = vmatpush1.xpose.msra.mxu0 %v2637
    %2649 = vmatprep.subr.mxu0 0.0
    %2650 = vmatpush1.xpose.msra.mxu0 %v2639
    %2651 = vmatprep.subr.mxu0 0.0
    %2652 = vmatpush1.xpose.msra.mxu0 0.0
    %2653 = vmatprep.subr.mxu0 0.0
    %2654 = vmatpush1.xpose.msra.mxu0 0.0
    %2655 = vmatprep.subr.mxu0 0.0
    %2656 = vmatpush1.xpose.msra.mxu0 0.0
    %2657 = vmatprep.subr.mxu0 0.0
    %2658 = vmatpush1.xpose.msra.mxu0 0.0
    %2659 = vmatprep.subr.mxu0 0.0
    %2660 = vmatpush1.xpose.msra.mxu0 0.0
    %2661 = vmatprep.subr.mxu0 0.0
    %2662 = vmatpush1.xpose.msra.mxu0 0.0
    %2663 = vmatprep.subr.mxu0 0.0
    %2664 = vmatpush1.xpose.msra.mxu0 0.0
    %2665 = vmatprep.subr.mxu0 0.0
    %2666 = vmatpush1.xpose.msra.mxu0 0.0
    %2667 = vmatprep.subr.mxu0 0.0
    %2668 = vmatpush1.xpose.msra.mxu0 0.0
    %2669 = vmatprep.subr.mxu0 0.0
    %2670 = vmatpush1.xpose.msra.mxu0 0.0
    %2671 = vmatprep.subr.mxu0 0.0
    %2672 = vmatpush1.xpose.msra.mxu0 0.0
    %2673 = vmatprep.subr.mxu0 0.0
    %2674 = vmatpush1.xpose.msra.mxu0 0.0
    %2675 = vmatprep.subr.mxu0 0.0
    %2676 = vmatpush1.xpose.msra.mxu0 0.0
    %2677 = vmatprep.subr.mxu0 0.0
    %2678 = vmatpush1.xpose.msra.mxu0 0.0
    %2679 = vmatprep.subr.mxu0 0.0
    %2680 = vmatpush1.xpose.msra.mxu0 0.0
    %2681 = vmatprep.subr.mxu0 0.0
    %2682 = vmatpush1.xpose.msra.mxu0 0.0
    %2683 = vmatprep.subr.mxu0 0.0
    %2684 = vmatpush1.xpose.msra.mxu0 0.0
    %2685 = vmatprep.subr.mxu0 0.0
    %2686 = vmatpush1.xpose.msra.mxu0 0.0
    %2687 = vmatprep.subr.mxu0 0.0
    %2688 = vmatpush1.xpose.msra.mxu0 0.0
    %2689 = vmatprep.subr.mxu0 0.0
    %2690 = vmatpush1.xpose.msra.mxu0 0.0
    %2691 = vmatprep.subr.mxu0 0.0
    %2692 = vmatpush1.xpose.msra.mxu0 0.0
    %2693 = vmatprep.subr.mxu0 0.0
    %2694 = vmatpush1.xpose.msra.mxu0 0.0
    %2695 = vmatprep.subr.mxu0 0.0
    %2696 = vmatpush1.xpose.msra.mxu0 0.0
    %2697 = vmatprep.subr.mxu0 0.0
    %2698 = vmatpush1.xpose.msra.mxu0 0.0
    %2699 = vmatprep.subr.mxu0 0.0
    %2700 = vmatpush1.xpose.msra.mxu0 0.0
    %2701 = vmatprep.subr.mxu0 0.0
    %2702 = vmatpush1.xpose.msra.mxu0 0.0
    %2703 = vmatprep.subr.mxu0 0.0
    %2704 = vmatpush1.xpose.msra.mxu0 0.0
    %2705 = vmatprep.mubr.f32.mxu0 0.0
    %2706 = vmatmul.mubr.f32.gmra.mrb[0].mxu0 %v2621
    %v2707 = vpop.f32.mrb[0].mxu0
    %v2708 = vadd.f32 %v160, %v2707
    %v2709 = vpop.f32.mrb[0].mxu0
    %2710 = vmatprep.mubr.f32.mxu0 0.0
    %2711 = vmatmul.mubr.f32.gmra.mrb[0].mxu0 %v2623
    %v2712 = vpop.f32.mrb[0].mxu0
    %v2713 = vadd.f32 %v161, %v2712
    %v2714 = vpop.f32.mrb[0].mxu0
    %2715 = vmatprep.mubr.f32.mxu0 0.0
    %2716 = vmatmul.mubr.f32.gmra.mrb[0].mxu0 %v2625
    %v2717 = vpop.f32.mrb[0].mxu0
    %v2718 = vadd.f32 %v162, %v2717
    %v2719 = vpop.f32.mrb[0].mxu0
    %2720 = vmatprep.mubr.f32.mxu0 0.0
    %2721 = vmatmul.mubr.f32.gmra.mrb[0].mxu0 %v2627
    %v2722 = vpop.f32.mrb[0].mxu0
    %v2723 = vadd.f32 %v163, %v2722
    %v2724 = vpop.f32.mrb[0].mxu0
    %2725 = vmatprep.mubr.f32.mxu0 0.0
    %2726 = vmatmul.mubr.f32.gmra.mrb[0].mxu0 %v2629
    %v2727 = vpop.f32.mrb[0].mxu0
    %v2728 = vadd.f32 %v164, %v2727
    %v2729 = vpop.f32.mrb[0].mxu0
    %2730 = vdwg.mxu0
    %v2731 = vsel %vm414, %v2708, -inf
    %2732 = vmax.xlane.f32.xlu0 %v2731
    %v2733 = vpop.xlane.xlu0 %2732
    %v2734 = vsel %vm414, %v2713, -inf
    %2735 = vmax.xlane.f32.xlu0 %v2734
    %v2736 = vpop.xlane.xlu0 %2735
    %v2737 = vsel %vm414, %v2718, -inf
    %2738 = vmax.xlane.f32.xlu0 %v2737
    %v2739 = vpop.xlane.xlu0 %2738
    %v2740 = vsel %vm414, %v2723, -inf
    %2741 = vmax.xlane.f32.xlu0 %v2740
    %v2742 = vpop.xlane.xlu0 %2741
    %v2743 = vsel %vm414, %v2728, -inf
    %2744 = vmax.xlane.f32.xlu0 %v2743
    %v2745 = vpop.xlane.xlu0 %2744
    %v2746 = vsub.f32 %v2708, %v2733
    %v2747 = vsub.f32 %v2713, %v2736
    %v2748 = vsub.f32 %v2718, %v2739
    %v2749 = vsub.f32 %v2723, %v2742
    %v2750 = vsub.f32 %v2728, %v2745
    %v2751 = vmul.f32 %v2746, 1.442695
    %v2752 = vpow.pop %v2751
    %v2753 = vmul.f32 %v2747, 1.442695
    %v2754 = vpow.pop %v2753
    %v2755 = vmul.f32 %v2748, 1.442695
    %v2756 = vpow.pop %v2755
    %v2757 = vmul.f32 %v2749, 1.442695
    %v2758 = vpow.pop %v2757
    %v2759 = vmul.f32 %v2750, 1.442695
    %v2760 = vpow.pop %v2759
    %v2761 = vsel %vm414, %v2752, 0.0
    %2762 = vadd.xlane.f32.xlu0 %v2761
    %v2763 = vpop.xlane.xlu0 %2762
    %v2764 = vsel %vm414, %v2754, 0.0
    %2765 = vadd.xlane.f32.xlu0 %v2764
    %v2766 = vpop.xlane.xlu0 %2765
    %v2767 = vsel %vm414, %v2756, 0.0
    %2768 = vadd.xlane.f32.xlu0 %v2767
    %v2769 = vpop.xlane.xlu0 %2768
    %v2770 = vsel %vm414, %v2758, 0.0
    %2771 = vadd.xlane.f32.xlu0 %v2770
    %v2772 = vpop.xlane.xlu0 %2771
    %v2773 = vsel %vm414, %v2760, 0.0
    %2774 = vadd.xlane.f32.xlu0 %v2773
    %v2775 = vpop.xlane.xlu0 %2774
    %v2776 = vrcp.pop %v2763
    %v2777 = vmul.f32 1.0, %v2776
    %v2778 = vrcp.pop %v2766
    %v2779 = vmul.f32 1.0, %v2778
    %v2780 = vrcp.pop %v2769
    %v2781 = vmul.f32 1.0, %v2780
    %v2782 = vrcp.pop %v2772
    %v2783 = vmul.f32 1.0, %v2782
    %v2784 = vrcp.pop %v2775
    %v2785 = vmul.f32 1.0, %v2784
    %v2786 = vmul.f32 %v2752, %v2777
    %v2787 = vmul.f32 %v2754, %v2779
    %v2788 = vmul.f32 %v2756, %v2781
    %v2789 = vmul.f32 %v2758, %v2783
    %v2790 = vmul.f32 %v2760, %v2785
    %2791 = vrot.lane.b32.xlu0 %v2273, 56
    %v2792 = vpop.permute.xlu0 %2791
    %2793 = vrot.lane.b32.xlu0 %v2278, 56
    %v2794 = vpop.permute.xlu0 %2793
    %2795 = vrot.lane.b32.xlu0 %v2283, 56
    %v2796 = vpop.permute.xlu0 %2795
    %2797 = vrot.lane.b32.xlu0 %v2288, 56
    %v2798 = vpop.permute.xlu0 %2797
    %2799 = vrot.lane.b32.xlu0 %v2293, 56
    %v2800 = vpop.permute.xlu0 %2799
    %v2807 = vsel %vm414, %v2786, 0
    %v2810 = vsel %vm414, %v2787, 0
    %v2813 = vsel %vm414, %v2788, 0
    %v2816 = vsel %vm414, %v2789, 0
    %v2819 = vsel %vm414, %v2790, 0
    %2821 = vmatprep.subr.mxu0 0.0
    %2822 = vmatpush1.msra.mxu0 %v2792
    %2823 = vmatprep.subr.mxu0 0.0
    %2824 = vmatpush1.msra.mxu0 %v2794
    %2825 = vmatprep.subr.mxu0 0.0
    %2826 = vmatpush1.msra.mxu0 %v2796
    %2827 = vmatprep.subr.mxu0 0.0
    %2828 = vmatpush1.msra.mxu0 %v2798
    %2829 = vmatprep.subr.mxu0 0.0
    %2830 = vmatpush1.msra.mxu0 %v2800
    %2831 = vmatprep.subr.mxu0 0.0
    %2832 = vmatpush1.msra.mxu0 0.0
    %2833 = vmatprep.subr.mxu0 0.0
    %2834 = vmatpush1.msra.mxu0 0.0
    %2835 = vmatprep.subr.mxu0 0.0
    %2836 = vmatpush1.msra.mxu0 0.0
    %2837 = vmatprep.subr.mxu0 0.0
    %2838 = vmatpush1.msra.mxu0 0.0
    %2839 = vmatprep.subr.mxu0 0.0
    %2840 = vmatpush1.msra.mxu0 0.0
    %2841 = vmatprep.subr.mxu0 0.0
    %2842 = vmatpush1.msra.mxu0 0.0
    %2843 = vmatprep.subr.mxu0 0.0
    %2844 = vmatpush1.msra.mxu0 0.0
    %2845 = vmatprep.subr.mxu0 0.0
    %2846 = vmatpush1.msra.mxu0 0.0
    %2847 = vmatprep.subr.mxu0 0.0
    %2848 = vmatpush1.msra.mxu0 0.0
    %2849 = vmatprep.subr.mxu0 0.0
    %2850 = vmatpush1.msra.mxu0 0.0
    %2851 = vmatprep.subr.mxu0 0.0
    %2852 = vmatpush1.msra.mxu0 0.0
    %2853 = vmatprep.subr.mxu0 0.0
    %2854 = vmatpush1.msra.mxu0 0.0
    %2855 = vmatprep.subr.mxu0 0.0
    %2856 = vmatpush1.msra.mxu0 0.0
    %2857 = vmatprep.subr.mxu0 0.0
    %2858 = vmatpush1.msra.mxu0 0.0
    %2859 = vmatprep.subr.mxu0 0.0
    %2860 = vmatpush1.msra.mxu0 0.0
    %2861 = vmatprep.subr.mxu0 0.0
    %2862 = vmatpush1.msra.mxu0 0.0
    %2863 = vmatprep.subr.mxu0 0.0
    %2864 = vmatpush1.msra.mxu0 0.0
    %2865 = vmatprep.subr.mxu0 0.0
    %2866 = vmatpush1.msra.mxu0 0.0
    %2867 = vmatprep.subr.mxu0 0.0
    %2868 = vmatpush1.msra.mxu0 0.0
    %2869 = vmatprep.subr.mxu0 0.0
    %2870 = vmatpush1.msra.mxu0 0.0
    %2871 = vmatprep.subr.mxu0 0.0
    %2872 = vmatpush1.msra.mxu0 0.0
    %2873 = vmatprep.subr.mxu0 0.0
    %2874 = vmatpush1.msra.mxu0 0.0
    %2875 = vmatprep.subr.mxu0 0.0
    %2876 = vmatpush1.msra.mxu0 0.0
    %2877 = vmatprep.subr.mxu0 0.0
    %2878 = vmatpush1.msra.mxu0 0.0
    %2879 = vmatprep.subr.mxu0 0.0
    %2880 = vmatpush1.msra.mxu0 0.0
    %2881 = vmatprep.subr.mxu0 0.0
    %2882 = vmatpush1.msra.mxu0 0.0
    %2883 = vmatprep.subr.mxu0 0.0
    %2884 = vmatpush1.msra.mxu0 0.0
    %2885 = vmatprep.mubr.f32.mxu0 0.0
    %2886 = vmatmul.mubr.f32.gmra.mrb[0].mxu0 %v2807
    %v2887 = vpop.f32.mrb[0].mxu0
    %v2888 = vadd.f32 0.0, %v2887
    %v2889 = vpop.f32.mrb[0].mxu0
    %2890 = vmatprep.mubr.f32.mxu0 0.0
    %2891 = vmatmul.mubr.f32.gmra.mrb[0].mxu0 %v2810
    %v2892 = vpop.f32.mrb[0].mxu0
    %v2893 = vadd.f32 0.0, %v2892
    %v2894 = vpop.f32.mrb[0].mxu0
    %2895 = vmatprep.mubr.f32.mxu0 0.0
    %2896 = vmatmul.mubr.f32.gmra.mrb[0].mxu0 %v2813
    %v2897 = vpop.f32.mrb[0].mxu0
    %v2898 = vadd.f32 0.0, %v2897
    %v2899 = vpop.f32.mrb[0].mxu0
    %2900 = vmatprep.mubr.f32.mxu0 0.0
    %2901 = vmatmul.mubr.f32.gmra.mrb[0].mxu0 %v2816
    %v2902 = vpop.f32.mrb[0].mxu0
    %v2903 = vadd.f32 0.0, %v2902
    %v2904 = vpop.f32.mrb[0].mxu0
    %2905 = vmatprep.mubr.f32.mxu0 0.0
    %2906 = vmatmul.mubr.f32.gmra.mrb[0].mxu0 %v2819
    %v2907 = vpop.f32.mrb[0].mxu0
    %v2908 = vadd.f32 0.0, %v2907
    %v2909 = vpop.f32.mrb[0].mxu0
    %2910 = vdwg.mxu0
    %2911 = vrot.lane.b32.xlu0 %v2273, 112
    %v2912 = vpop.permute.xlu0 %2911
    %2913 = vrot.lane.b32.xlu0 %v2278, 112
    %v2914 = vpop.permute.xlu0 %2913
    %2915 = vrot.lane.b32.xlu0 %v2283, 112
    %v2916 = vpop.permute.xlu0 %2915
    %2917 = vrot.lane.b32.xlu0 %v2288, 112
    %v2918 = vpop.permute.xlu0 %2917
    %2919 = vrot.lane.b32.xlu0 %v2293, 112
    %v2920 = vpop.permute.xlu0 %2919
    %2921 = vrot.lane.b32.xlu0 %v2273, 80
    %v2922 = vpop.permute.xlu0 %2921
    %2923 = vrot.lane.b32.xlu0 %v2278, 80
    %v2924 = vpop.permute.xlu0 %2923
    %2925 = vrot.lane.b32.xlu0 %v2283, 80
    %v2926 = vpop.permute.xlu0 %2925
    %2927 = vrot.lane.b32.xlu0 %v2288, 80
    %v2928 = vpop.permute.xlu0 %2927
    %2929 = vrot.lane.b32.xlu0 %v2293, 80
    %v2930 = vpop.permute.xlu0 %2929
    %v2931 = vsel %vm303, %v2912, 0
    %v2933 = vsel %vm303, %v2914, 0
    %v2935 = vsel %vm303, %v2916, 0
    %v2937 = vsel %vm303, %v2918, 0
    %v2939 = vsel %vm303, %v2920, 0
    %v2941 = vsel %vm303, %v2922, 0
    %v2943 = vsel %vm303, %v2924, 0
    %v2945 = vsel %vm303, %v2926, 0
    %v2947 = vsel %vm303, %v2928, 0
    %v2949 = vsel %vm303, %v2930, 0
    %2951 = vmatprep.subr.mxu0 0.0
    %2952 = vmatpush1.xpose.msra.mxu0 %v2941
    %2953 = vmatprep.subr.mxu0 0.0
    %2954 = vmatpush1.xpose.msra.mxu0 %v2943
    %2955 = vmatprep.subr.mxu0 0.0
    %2956 = vmatpush1.xpose.msra.mxu0 %v2945
    %2957 = vmatprep.subr.mxu0 0.0
    %2958 = vmatpush1.xpose.msra.mxu0 %v2947
    %2959 = vmatprep.subr.mxu0 0.0
    %2960 = vmatpush1.xpose.msra.mxu0 %v2949
    %2961 = vmatprep.subr.mxu0 0.0
    %2962 = vmatpush1.xpose.msra.mxu0 0.0
    %2963 = vmatprep.subr.mxu0 0.0
    %2964 = vmatpush1.xpose.msra.mxu0 0.0
    %2965 = vmatprep.subr.mxu0 0.0
    %2966 = vmatpush1.xpose.msra.mxu0 0.0
    %2967 = vmatprep.subr.mxu0 0.0
    %2968 = vmatpush1.xpose.msra.mxu0 0.0
    %2969 = vmatprep.subr.mxu0 0.0
    %2970 = vmatpush1.xpose.msra.mxu0 0.0
    %2971 = vmatprep.subr.mxu0 0.0
    %2972 = vmatpush1.xpose.msra.mxu0 0.0
    %2973 = vmatprep.subr.mxu0 0.0
    %2974 = vmatpush1.xpose.msra.mxu0 0.0
    %2975 = vmatprep.subr.mxu0 0.0
    %2976 = vmatpush1.xpose.msra.mxu0 0.0
    %2977 = vmatprep.subr.mxu0 0.0
    %2978 = vmatpush1.xpose.msra.mxu0 0.0
    %2979 = vmatprep.subr.mxu0 0.0
    %2980 = vmatpush1.xpose.msra.mxu0 0.0
    %2981 = vmatprep.subr.mxu0 0.0
    %2982 = vmatpush1.xpose.msra.mxu0 0.0
    %2983 = vmatprep.subr.mxu0 0.0
    %2984 = vmatpush1.xpose.msra.mxu0 0.0
    %2985 = vmatprep.subr.mxu0 0.0
    %2986 = vmatpush1.xpose.msra.mxu0 0.0
    %2987 = vmatprep.subr.mxu0 0.0
    %2988 = vmatpush1.xpose.msra.mxu0 0.0
    %2989 = vmatprep.subr.mxu0 0.0
    %2990 = vmatpush1.xpose.msra.mxu0 0.0
    %2991 = vmatprep.subr.mxu0 0.0
    %2992 = vmatpush1.xpose.msra.mxu0 0.0
    %2993 = vmatprep.subr.mxu0 0.0
    %2994 = vmatpush1.xpose.msra.mxu0 0.0
    %2995 = vmatprep.subr.mxu0 0.0
    %2996 = vmatpush1.xpose.msra.mxu0 0.0
    %2997 = vmatprep.subr.mxu0 0.0
    %2998 = vmatpush1.xpose.msra.mxu0 0.0
    %2999 = vmatprep.subr.mxu0 0.0
    %3000 = vmatpush1.xpose.msra.mxu0 0.0
    %3001 = vmatprep.subr.mxu0 0.0
    %3002 = vmatpush1.xpose.msra.mxu0 0.0
    %3003 = vmatprep.subr.mxu0 0.0
    %3004 = vmatpush1.xpose.msra.mxu0 0.0
    %3005 = vmatprep.subr.mxu0 0.0
    %3006 = vmatpush1.xpose.msra.mxu0 0.0
    %3007 = vmatprep.subr.mxu0 0.0
    %3008 = vmatpush1.xpose.msra.mxu0 0.0
    %3009 = vmatprep.subr.mxu0 0.0
    %3010 = vmatpush1.xpose.msra.mxu0 0.0
    %3011 = vmatprep.subr.mxu0 0.0
    %3012 = vmatpush1.xpose.msra.mxu0 0.0
    %3013 = vmatprep.subr.mxu0 0.0
    %3014 = vmatpush1.xpose.msra.mxu0 0.0
    %3015 = vmatprep.mubr.f32.mxu0 0.0
    %3016 = vmatmul.mubr.f32.gmra.mrb[0].mxu0 %v2931
    %v3017 = vpop.f32.mrb[0].mxu0
    %v3018 = vadd.f32 %v160, %v3017
    %v3019 = vpop.f32.mrb[0].mxu0
    %3020 = vmatprep.mubr.f32.mxu0 0.0
    %3021 = vmatmul.mubr.f32.gmra.mrb[0].mxu0 %v2933
    %v3022 = vpop.f32.mrb[0].mxu0
    %v3023 = vadd.f32 %v161, %v3022
    %v3024 = vpop.f32.mrb[0].mxu0
    %3025 = vmatprep.mubr.f32.mxu0 0.0
    %3026 = vmatmul.mubr.f32.gmra.mrb[0].mxu0 %v2935
    %v3027 = vpop.f32.mrb[0].mxu0
    %v3028 = vadd.f32 %v162, %v3027
    %v3029 = vpop.f32.mrb[0].mxu0
    %3030 = vmatprep.mubr.f32.mxu0 0.0
    %3031 = vmatmul.mubr.f32.gmra.mrb[0].mxu0 %v2937
    %v3032 = vpop.f32.mrb[0].mxu0
    %v3033 = vadd.f32 %v163, %v3032
    %v3034 = vpop.f32.mrb[0].mxu0
    %3035 = vmatprep.mubr.f32.mxu0 0.0
    %3036 = vmatmul.mubr.f32.gmra.mrb[0].mxu0 %v2939
    %v3037 = vpop.f32.mrb[0].mxu0
    %v3038 = vadd.f32 %v164, %v3037
    %v3039 = vpop.f32.mrb[0].mxu0
    %3040 = vdwg.mxu0
    %v3041 = vsel %vm414, %v3018, -inf
    %3042 = vmax.xlane.f32.xlu0 %v3041
    %v3043 = vpop.xlane.xlu0 %3042
    %v3044 = vsel %vm414, %v3023, -inf
    %3045 = vmax.xlane.f32.xlu0 %v3044
    %v3046 = vpop.xlane.xlu0 %3045
    %v3047 = vsel %vm414, %v3028, -inf
    %3048 = vmax.xlane.f32.xlu0 %v3047
    %v3049 = vpop.xlane.xlu0 %3048
    %v3050 = vsel %vm414, %v3033, -inf
    %3051 = vmax.xlane.f32.xlu0 %v3050
    %v3052 = vpop.xlane.xlu0 %3051
    %v3053 = vsel %vm414, %v3038, -inf
    %3054 = vmax.xlane.f32.xlu0 %v3053
    %v3055 = vpop.xlane.xlu0 %3054
    %v3056 = vsub.f32 %v3018, %v3043
    %v3057 = vsub.f32 %v3023, %v3046
    %v3058 = vsub.f32 %v3028, %v3049
    %v3059 = vsub.f32 %v3033, %v3052
    %v3060 = vsub.f32 %v3038, %v3055
    %v3061 = vmul.f32 %v3056, 1.442695
    %v3062 = vpow.pop %v3061
    %v3063 = vmul.f32 %v3057, 1.442695
    %v3064 = vpow.pop %v3063
    %v3065 = vmul.f32 %v3058, 1.442695
    %v3066 = vpow.pop %v3065
    %v3067 = vmul.f32 %v3059, 1.442695
    %v3068 = vpow.pop %v3067
    %v3069 = vmul.f32 %v3060, 1.442695
    %v3070 = vpow.pop %v3069
    %v3071 = vsel %vm414, %v3062, 0.0
    %3072 = vadd.xlane.f32.xlu0 %v3071
    %v3073 = vpop.xlane.xlu0 %3072
    %v3074 = vsel %vm414, %v3064, 0.0
    %3075 = vadd.xlane.f32.xlu0 %v3074
    %v3076 = vpop.xlane.xlu0 %3075
    %v3077 = vsel %vm414, %v3066, 0.0
    %3078 = vadd.xlane.f32.xlu0 %v3077
    %v3079 = vpop.xlane.xlu0 %3078
    %v3080 = vsel %vm414, %v3068, 0.0
    %3081 = vadd.xlane.f32.xlu0 %v3080
    %v3082 = vpop.xlane.xlu0 %3081
    %v3083 = vsel %vm414, %v3070, 0.0
    %3084 = vadd.xlane.f32.xlu0 %v3083
    %v3085 = vpop.xlane.xlu0 %3084
    %v3086 = vrcp.pop %v3073
    %v3087 = vmul.f32 1.0, %v3086
    %v3088 = vrcp.pop %v3076
    %v3089 = vmul.f32 1.0, %v3088
    %v3090 = vrcp.pop %v3079
    %v3091 = vmul.f32 1.0, %v3090
    %v3092 = vrcp.pop %v3082
    %v3093 = vmul.f32 1.0, %v3092
    %v3094 = vrcp.pop %v3085
    %v3095 = vmul.f32 1.0, %v3094
    %v3096 = vmul.f32 %v3062, %v3087
    %v3097 = vmul.f32 %v3064, %v3089
    %v3098 = vmul.f32 %v3066, %v3091
    %v3099 = vmul.f32 %v3068, %v3093
    %v3100 = vmul.f32 %v3070, %v3095
    %3101 = vrot.lane.b32.xlu0 %v2273, 48
    %v3102 = vpop.permute.xlu0 %3101
    %3103 = vrot.lane.b32.xlu0 %v2278, 48
    %v3104 = vpop.permute.xlu0 %3103
    %3105 = vrot.lane.b32.xlu0 %v2283, 48
    %v3106 = vpop.permute.xlu0 %3105
    %3107 = vrot.lane.b32.xlu0 %v2288, 48
    %v3108 = vpop.permute.xlu0 %3107
    %3109 = vrot.lane.b32.xlu0 %v2293, 48
    %v3110 = vpop.permute.xlu0 %3109
    %v3117 = vsel %vm414, %v3096, 0
    %v3120 = vsel %vm414, %v3097, 0
    %v3123 = vsel %vm414, %v3098, 0
    %v3126 = vsel %vm414, %v3099, 0
    %v3129 = vsel %vm414, %v3100, 0
    %3131 = vmatprep.subr.mxu0 0.0
    %3132 = vmatpush1.msra.mxu0 %v3102
    %3133 = vmatprep.subr.mxu0 0.0
    %3134 = vmatpush1.msra.mxu0 %v3104
    %3135 = vmatprep.subr.mxu0 0.0
    %3136 = vmatpush1.msra.mxu0 %v3106
    %3137 = vmatprep.subr.mxu0 0.0
    %3138 = vmatpush1.msra.mxu0 %v3108
    %3139 = vmatprep.subr.mxu0 0.0
    %3140 = vmatpush1.msra.mxu0 %v3110
    %3141 = vmatprep.subr.mxu0 0.0
    %3142 = vmatpush1.msra.mxu0 0.0
    %3143 = vmatprep.subr.mxu0 0.0
    %3144 = vmatpush1.msra.mxu0 0.0
    %3145 = vmatprep.subr.mxu0 0.0
    %3146 = vmatpush1.msra.mxu0 0.0
    %3147 = vmatprep.subr.mxu0 0.0
    %3148 = vmatpush1.msra.mxu0 0.0
    %3149 = vmatprep.subr.mxu0 0.0
    %3150 = vmatpush1.msra.mxu0 0.0
    %3151 = vmatprep.subr.mxu0 0.0
    %3152 = vmatpush1.msra.mxu0 0.0
    %3153 = vmatprep.subr.mxu0 0.0
    %3154 = vmatpush1.msra.mxu0 0.0
    %3155 = vmatprep.subr.mxu0 0.0
    %3156 = vmatpush1.msra.mxu0 0.0
    %3157 = vmatprep.subr.mxu0 0.0
    %3158 = vmatpush1.msra.mxu0 0.0
    %3159 = vmatprep.subr.mxu0 0.0
    %3160 = vmatpush1.msra.mxu0 0.0
    %3161 = vmatprep.subr.mxu0 0.0
    %3162 = vmatpush1.msra.mxu0 0.0
    %3163 = vmatprep.subr.mxu0 0.0
    %3164 = vmatpush1.msra.mxu0 0.0
    %3165 = vmatprep.subr.mxu0 0.0
    %3166 = vmatpush1.msra.mxu0 0.0
    %3167 = vmatprep.subr.mxu0 0.0
    %3168 = vmatpush1.msra.mxu0 0.0
    %3169 = vmatprep.subr.mxu0 0.0
    %3170 = vmatpush1.msra.mxu0 0.0
    %3171 = vmatprep.subr.mxu0 0.0
    %3172 = vmatpush1.msra.mxu0 0.0
    %3173 = vmatprep.subr.mxu0 0.0
    %3174 = vmatpush1.msra.mxu0 0.0
    %3175 = vmatprep.subr.mxu0 0.0
    %3176 = vmatpush1.msra.mxu0 0.0
    %3177 = vmatprep.subr.mxu0 0.0
    %3178 = vmatpush1.msra.mxu0 0.0
    %3179 = vmatprep.subr.mxu0 0.0
    %3180 = vmatpush1.msra.mxu0 0.0
    %3181 = vmatprep.subr.mxu0 0.0
    %3182 = vmatpush1.msra.mxu0 0.0
    %3183 = vmatprep.subr.mxu0 0.0
    %3184 = vmatpush1.msra.mxu0 0.0
    %3185 = vmatprep.subr.mxu0 0.0
    %3186 = vmatpush1.msra.mxu0 0.0
    %3187 = vmatprep.subr.mxu0 0.0
    %3188 = vmatpush1.msra.mxu0 0.0
    %3189 = vmatprep.subr.mxu0 0.0
    %3190 = vmatpush1.msra.mxu0 0.0
    %3191 = vmatprep.subr.mxu0 0.0
    %3192 = vmatpush1.msra.mxu0 0.0
    %3193 = vmatprep.subr.mxu0 0.0
    %3194 = vmatpush1.msra.mxu0 0.0
    %3195 = vmatprep.mubr.f32.mxu0 0.0
    %3196 = vmatmul.mubr.f32.gmra.mrb[0].mxu0 %v3117
    %v3197 = vpop.f32.mrb[0].mxu0
    %v3198 = vadd.f32 0.0, %v3197
    %v3199 = vpop.f32.mrb[0].mxu0
    %3200 = vmatprep.mubr.f32.mxu0 0.0
    %3201 = vmatmul.mubr.f32.gmra.mrb[0].mxu0 %v3120
    %v3202 = vpop.f32.mrb[0].mxu0
    %v3203 = vadd.f32 0.0, %v3202
    %v3204 = vpop.f32.mrb[0].mxu0
    %3205 = vmatprep.mubr.f32.mxu0 0.0
    %3206 = vmatmul.mubr.f32.gmra.mrb[0].mxu0 %v3123
    %v3207 = vpop.f32.mrb[0].mxu0
    %v3208 = vadd.f32 0.0, %v3207
    %v3209 = vpop.f32.mrb[0].mxu0
    %3210 = vmatprep.mubr.f32.mxu0 0.0
    %3211 = vmatmul.mubr.f32.gmra.mrb[0].mxu0 %v3126
    %v3212 = vpop.f32.mrb[0].mxu0
    %v3213 = vadd.f32 0.0, %v3212
    %v3214 = vpop.f32.mrb[0].mxu0
    %3215 = vmatprep.mubr.f32.mxu0 0.0
    %3216 = vmatmul.mubr.f32.gmra.mrb[0].mxu0 %v3129
    %v3217 = vpop.f32.mrb[0].mxu0
    %v3218 = vadd.f32 0.0, %v3217
    %v3219 = vpop.f32.mrb[0].mxu0
    %3220 = vdwg.mxu0
    %3221 = vrot.lane.b32.xlu0 %v2273, 104
    %v3222 = vpop.permute.xlu0 %3221
    %3223 = vrot.lane.b32.xlu0 %v2278, 104
    %v3224 = vpop.permute.xlu0 %3223
    %3225 = vrot.lane.b32.xlu0 %v2283, 104
    %v3226 = vpop.permute.xlu0 %3225
    %3227 = vrot.lane.b32.xlu0 %v2288, 104
    %v3228 = vpop.permute.xlu0 %3227
    %3229 = vrot.lane.b32.xlu0 %v2293, 104
    %v3230 = vpop.permute.xlu0 %3229
    %3231 = vrot.lane.b32.xlu0 %v2273, 72
    %v3232 = vpop.permute.xlu0 %3231
    %3233 = vrot.lane.b32.xlu0 %v2278, 72
    %v3234 = vpop.permute.xlu0 %3233
    %3235 = vrot.lane.b32.xlu0 %v2283, 72
    %v3236 = vpop.permute.xlu0 %3235
    %3237 = vrot.lane.b32.xlu0 %v2288, 72
    %v3238 = vpop.permute.xlu0 %3237
    %3239 = vrot.lane.b32.xlu0 %v2293, 72
    %v3240 = vpop.permute.xlu0 %3239
    %v3241 = vsel %vm303, %v3222, 0
    %v3243 = vsel %vm303, %v3224, 0
    %v3245 = vsel %vm303, %v3226, 0
    %v3247 = vsel %vm303, %v3228, 0
    %v3249 = vsel %vm303, %v3230, 0
    %v3251 = vsel %vm303, %v3232, 0
    %v3253 = vsel %vm303, %v3234, 0
    %v3255 = vsel %vm303, %v3236, 0
    %v3257 = vsel %vm303, %v3238, 0
    %v3259 = vsel %vm303, %v3240, 0
    %3261 = vmatprep.subr.mxu0 0.0
    %3262 = vmatpush1.xpose.msra.mxu0 %v3251
    %3263 = vmatprep.subr.mxu0 0.0
    %3264 = vmatpush1.xpose.msra.mxu0 %v3253
    %3265 = vmatprep.subr.mxu0 0.0
    %3266 = vmatpush1.xpose.msra.mxu0 %v3255
    %3267 = vmatprep.subr.mxu0 0.0
    %3268 = vmatpush1.xpose.msra.mxu0 %v3257
    %3269 = vmatprep.subr.mxu0 0.0
    %3270 = vmatpush1.xpose.msra.mxu0 %v3259
    %3271 = vmatprep.subr.mxu0 0.0
    %3272 = vmatpush1.xpose.msra.mxu0 0.0
    %3273 = vmatprep.subr.mxu0 0.0
    %3274 = vmatpush1.xpose.msra.mxu0 0.0
    %3275 = vmatprep.subr.mxu0 0.0
    %3276 = vmatpush1.xpose.msra.mxu0 0.0
    %3277 = vmatprep.subr.mxu0 0.0
    %3278 = vmatpush1.xpose.msra.mxu0 0.0
    %3279 = vmatprep.subr.mxu0 0.0
    %3280 = vmatpush1.xpose.msra.mxu0 0.0
    %3281 = vmatprep.subr.mxu0 0.0
    %3282 = vmatpush1.xpose.msra.mxu0 0.0
    %3283 = vmatprep.subr.mxu0 0.0
    %3284 = vmatpush1.xpose.msra.mxu0 0.0
    %3285 = vmatprep.subr.mxu0 0.0
    %3286 = vmatpush1.xpose.msra.mxu0 0.0
    %3287 = vmatprep.subr.mxu0 0.0
    %3288 = vmatpush1.xpose.msra.mxu0 0.0
    %3289 = vmatprep.subr.mxu0 0.0
    %3290 = vmatpush1.xpose.msra.mxu0 0.0
    %3291 = vmatprep.subr.mxu0 0.0
    %3292 = vmatpush1.xpose.msra.mxu0 0.0
    %3293 = vmatprep.subr.mxu0 0.0
    %3294 = vmatpush1.xpose.msra.mxu0 0.0
    %3295 = vmatprep.subr.mxu0 0.0
    %3296 = vmatpush1.xpose.msra.mxu0 0.0
    %3297 = vmatprep.subr.mxu0 0.0
    %3298 = vmatpush1.xpose.msra.mxu0 0.0
    %3299 = vmatprep.subr.mxu0 0.0
    %3300 = vmatpush1.xpose.msra.mxu0 0.0
    %3301 = vmatprep.subr.mxu0 0.0
    %3302 = vmatpush1.xpose.msra.mxu0 0.0
    %3303 = vmatprep.subr.mxu0 0.0
    %3304 = vmatpush1.xpose.msra.mxu0 0.0
    %3305 = vmatprep.subr.mxu0 0.0
    %3306 = vmatpush1.xpose.msra.mxu0 0.0
    %3307 = vmatprep.subr.mxu0 0.0
    %3308 = vmatpush1.xpose.msra.mxu0 0.0
    %3309 = vmatprep.subr.mxu0 0.0
    %3310 = vmatpush1.xpose.msra.mxu0 0.0
    %3311 = vmatprep.subr.mxu0 0.0
    %3312 = vmatpush1.xpose.msra.mxu0 0.0
    %3313 = vmatprep.subr.mxu0 0.0
    %3314 = vmatpush1.xpose.msra.mxu0 0.0
    %3315 = vmatprep.subr.mxu0 0.0
    %3316 = vmatpush1.xpose.msra.mxu0 0.0
    %3317 = vmatprep.subr.mxu0 0.0
    %3318 = vmatpush1.xpose.msra.mxu0 0.0
    %3319 = vmatprep.subr.mxu0 0.0
    %3320 = vmatpush1.xpose.msra.mxu0 0.0
    %3321 = vmatprep.subr.mxu0 0.0
    %3322 = vmatpush1.xpose.msra.mxu0 0.0
    %3323 = vmatprep.subr.mxu0 0.0
    %3324 = vmatpush1.xpose.msra.mxu0 0.0
    %3325 = vmatprep.mubr.f32.mxu0 0.0
    %3326 = vmatmul.mubr.f32.gmra.mrb[0].mxu0 %v3241
    %v3327 = vpop.f32.mrb[0].mxu0
    %v3328 = vadd.f32 %v160, %v3327
    %v3329 = vpop.f32.mrb[0].mxu0
    %3330 = vmatprep.mubr.f32.mxu0 0.0
    %3331 = vmatmul.mubr.f32.gmra.mrb[0].mxu0 %v3243
    %v3332 = vpop.f32.mrb[0].mxu0
    %v3333 = vadd.f32 %v161, %v3332
    %v3334 = vpop.f32.mrb[0].mxu0
    %3335 = vmatprep.mubr.f32.mxu0 0.0
    %3336 = vmatmul.mubr.f32.gmra.mrb[0].mxu0 %v3245
    %v3337 = vpop.f32.mrb[0].mxu0
    %v3338 = vadd.f32 %v162, %v3337
    %v3339 = vpop.f32.mrb[0].mxu0
    %3340 = vmatprep.mubr.f32.mxu0 0.0
    %3341 = vmatmul.mubr.f32.gmra.mrb[0].mxu0 %v3247
    %v3342 = vpop.f32.mrb[0].mxu0
    %v3343 = vadd.f32 %v163, %v3342
    %v3344 = vpop.f32.mrb[0].mxu0
    %3345 = vmatprep.mubr.f32.mxu0 0.0
    %3346 = vmatmul.mubr.f32.gmra.mrb[0].mxu0 %v3249
    %v3347 = vpop.f32.mrb[0].mxu0
    %v3348 = vadd.f32 %v164, %v3347
    %v3349 = vpop.f32.mrb[0].mxu0
    %3350 = vdwg.mxu0
    %v3351 = vsel %vm414, %v3328, -inf
    %3352 = vmax.xlane.f32.xlu0 %v3351
    %v3353 = vpop.xlane.xlu0 %3352
    %v3354 = vsel %vm414, %v3333, -inf
    %3355 = vmax.xlane.f32.xlu0 %v3354
    %v3356 = vpop.xlane.xlu0 %3355
    %v3357 = vsel %vm414, %v3338, -inf
    %3358 = vmax.xlane.f32.xlu0 %v3357
    %v3359 = vpop.xlane.xlu0 %3358
    %v3360 = vsel %vm414, %v3343, -inf
    %3361 = vmax.xlane.f32.xlu0 %v3360
    %v3362 = vpop.xlane.xlu0 %3361
    %v3363 = vsel %vm414, %v3348, -inf
    %3364 = vmax.xlane.f32.xlu0 %v3363
    %v3365 = vpop.xlane.xlu0 %3364
    %v3366 = vsub.f32 %v3328, %v3353
    %v3367 = vsub.f32 %v3333, %v3356
    %v3368 = vsub.f32 %v3338, %v3359
    %v3369 = vsub.f32 %v3343, %v3362
    %v3370 = vsub.f32 %v3348, %v3365
    %v3371 = vmul.f32 %v3366, 1.442695
    %v3372 = vpow.pop %v3371
    %v3373 = vmul.f32 %v3367, 1.442695
    %v3374 = vpow.pop %v3373
    %v3375 = vmul.f32 %v3368, 1.442695
    %v3376 = vpow.pop %v3375
    %v3377 = vmul.f32 %v3369, 1.442695
    %v3378 = vpow.pop %v3377
    %v3379 = vmul.f32 %v3370, 1.442695
    %v3380 = vpow.pop %v3379
    %v3381 = vsel %vm414, %v3372, 0.0
    %3382 = vadd.xlane.f32.xlu0 %v3381
    %v3383 = vpop.xlane.xlu0 %3382
    %v3384 = vsel %vm414, %v3374, 0.0
    %3385 = vadd.xlane.f32.xlu0 %v3384
    %v3386 = vpop.xlane.xlu0 %3385
    %v3387 = vsel %vm414, %v3376, 0.0
    %3388 = vadd.xlane.f32.xlu0 %v3387
    %v3389 = vpop.xlane.xlu0 %3388
    %v3390 = vsel %vm414, %v3378, 0.0
    %3391 = vadd.xlane.f32.xlu0 %v3390
    %v3392 = vpop.xlane.xlu0 %3391
    %v3393 = vsel %vm414, %v3380, 0.0
    %3394 = vadd.xlane.f32.xlu0 %v3393
    %v3395 = vpop.xlane.xlu0 %3394
    %v3396 = vrcp.pop %v3383
    %v3397 = vmul.f32 1.0, %v3396
    %v3398 = vrcp.pop %v3386
    %v3399 = vmul.f32 1.0, %v3398
    %v3400 = vrcp.pop %v3389
    %v3401 = vmul.f32 1.0, %v3400
    %v3402 = vrcp.pop %v3392
    %v3403 = vmul.f32 1.0, %v3402
    %v3404 = vrcp.pop %v3395
    %v3405 = vmul.f32 1.0, %v3404
    %v3406 = vmul.f32 %v3372, %v3397
    %v3407 = vmul.f32 %v3374, %v3399
    %v3408 = vmul.f32 %v3376, %v3401
    %v3409 = vmul.f32 %v3378, %v3403
    %v3410 = vmul.f32 %v3380, %v3405
    %3411 = vrot.lane.b32.xlu0 %v2273, 40
    %v3412 = vpop.permute.xlu0 %3411
    %3413 = vrot.lane.b32.xlu0 %v2278, 40
    %v3414 = vpop.permute.xlu0 %3413
    %3415 = vrot.lane.b32.xlu0 %v2283, 40
    %v3416 = vpop.permute.xlu0 %3415
    %3417 = vrot.lane.b32.xlu0 %v2288, 40
    %v3418 = vpop.permute.xlu0 %3417
    %3419 = vrot.lane.b32.xlu0 %v2293, 40
    %v3420 = vpop.permute.xlu0 %3419
    %v3427 = vsel %vm414, %v3406, 0
    %v3430 = vsel %vm414, %v3407, 0
    %v3433 = vsel %vm414, %v3408, 0
    %v3436 = vsel %vm414, %v3409, 0
    %v3439 = vsel %vm414, %v3410, 0
    %3441 = vmatprep.subr.mxu0 0.0
    %3442 = vmatpush1.msra.mxu0 %v3412
    %3443 = vmatprep.subr.mxu0 0.0
    %3444 = vmatpush1.msra.mxu0 %v3414
    %3445 = vmatprep.subr.mxu0 0.0
    %3446 = vmatpush1.msra.mxu0 %v3416
    %3447 = vmatprep.subr.mxu0 0.0
    %3448 = vmatpush1.msra.mxu0 %v3418
    %3449 = vmatprep.subr.mxu0 0.0
    %3450 = vmatpush1.msra.mxu0 %v3420
    %3451 = vmatprep.subr.mxu0 0.0
    %3452 = vmatpush1.msra.mxu0 0.0
    %3453 = vmatprep.subr.mxu0 0.0
    %3454 = vmatpush1.msra.mxu0 0.0
    %3455 = vmatprep.subr.mxu0 0.0
    %3456 = vmatpush1.msra.mxu0 0.0
    %3457 = vmatprep.subr.mxu0 0.0
    %3458 = vmatpush1.msra.mxu0 0.0
    %3459 = vmatprep.subr.mxu0 0.0
    %3460 = vmatpush1.msra.mxu0 0.0
    %3461 = vmatprep.subr.mxu0 0.0
    %3462 = vmatpush1.msra.mxu0 0.0
    %3463 = vmatprep.subr.mxu0 0.0
    %3464 = vmatpush1.msra.mxu0 0.0
    %3465 = vmatprep.subr.mxu0 0.0
    %3466 = vmatpush1.msra.mxu0 0.0
    %3467 = vmatprep.subr.mxu0 0.0
    %3468 = vmatpush1.msra.mxu0 0.0
    %3469 = vmatprep.subr.mxu0 0.0
    %3470 = vmatpush1.msra.mxu0 0.0
    %3471 = vmatprep.subr.mxu0 0.0
    %3472 = vmatpush1.msra.mxu0 0.0
    %3473 = vmatprep.subr.mxu0 0.0
    %3474 = vmatpush1.msra.mxu0 0.0
    %3475 = vmatprep.subr.mxu0 0.0
    %3476 = vmatpush1.msra.mxu0 0.0
    %3477 = vmatprep.subr.mxu0 0.0
    %3478 = vmatpush1.msra.mxu0 0.0
    %3479 = vmatprep.subr.mxu0 0.0
    %3480 = vmatpush1.msra.mxu0 0.0
    %3481 = vmatprep.subr.mxu0 0.0
    %3482 = vmatpush1.msra.mxu0 0.0
    %3483 = vmatprep.subr.mxu0 0.0
    %3484 = vmatpush1.msra.mxu0 0.0
    %3485 = vmatprep.subr.mxu0 0.0
    %3486 = vmatpush1.msra.mxu0 0.0
    %3487 = vmatprep.subr.mxu0 0.0
    %3488 = vmatpush1.msra.mxu0 0.0
    %3489 = vmatprep.subr.mxu0 0.0
    %3490 = vmatpush1.msra.mxu0 0.0
    %3491 = vmatprep.subr.mxu0 0.0
    %3492 = vmatpush1.msra.mxu0 0.0
    %3493 = vmatprep.subr.mxu0 0.0
    %3494 = vmatpush1.msra.mxu0 0.0
    %3495 = vmatprep.subr.mxu0 0.0
    %3496 = vmatpush1.msra.mxu0 0.0
    %3497 = vmatprep.subr.mxu0 0.0
    %3498 = vmatpush1.msra.mxu0 0.0
    %3499 = vmatprep.subr.mxu0 0.0
    %3500 = vmatpush1.msra.mxu0 0.0
    %3501 = vmatprep.subr.mxu0 0.0
    %3502 = vmatpush1.msra.mxu0 0.0
    %3503 = vmatprep.subr.mxu0 0.0
    %3504 = vmatpush1.msra.mxu0 0.0
    %3505 = vmatprep.mubr.f32.mxu0 0.0
    %3506 = vmatmul.mubr.f32.gmra.mrb[0].mxu0 %v3427
    %v3507 = vpop.f32.mrb[0].mxu0
    %v3508 = vadd.f32 0.0, %v3507
    %v3509 = vpop.f32.mrb[0].mxu0
    %3510 = vmatprep.mubr.f32.mxu0 0.0
    %3511 = vmatmul.mubr.f32.gmra.mrb[0].mxu0 %v3430
    %v3512 = vpop.f32.mrb[0].mxu0
    %v3513 = vadd.f32 0.0, %v3512
    %v3514 = vpop.f32.mrb[0].mxu0
    %3515 = vmatprep.mubr.f32.mxu0 0.0
    %3516 = vmatmul.mubr.f32.gmra.mrb[0].mxu0 %v3433
    %v3517 = vpop.f32.mrb[0].mxu0
    %v3518 = vadd.f32 0.0, %v3517
    %v3519 = vpop.f32.mrb[0].mxu0
    %3520 = vmatprep.mubr.f32.mxu0 0.0
    %3521 = vmatmul.mubr.f32.gmra.mrb[0].mxu0 %v3436
    %v3522 = vpop.f32.mrb[0].mxu0
    %v3523 = vadd.f32 0.0, %v3522
    %v3524 = vpop.f32.mrb[0].mxu0
    %3525 = vmatprep.mubr.f32.mxu0 0.0
    %3526 = vmatmul.mubr.f32.gmra.mrb[0].mxu0 %v3439
    %v3527 = vpop.f32.mrb[0].mxu0
    %v3528 = vadd.f32 0.0, %v3527
    %v3529 = vpop.f32.mrb[0].mxu0
    %3530 = vdwg.mxu0
    %3536 = vrot.lane.b32.xlu0 %v2888, 8
    %v3537 = vpop.permute.xlu0 %3536
    %3538 = vrot.lane.b32.xlu0 %v2893, 8
    %v3539 = vpop.permute.xlu0 %3538
    %3540 = vrot.lane.b32.xlu0 %v2898, 8
    %v3541 = vpop.permute.xlu0 %3540
    %3542 = vrot.lane.b32.xlu0 %v2903, 8
    %v3543 = vpop.permute.xlu0 %3542
    %3544 = vrot.lane.b32.xlu0 %v2908, 8
    %v3545 = vpop.permute.xlu0 %3544
    %3556 = vrot.lane.b32.xlu0 %v3198, 16
    %v3557 = vpop.permute.xlu0 %3556
    %3558 = vrot.lane.b32.xlu0 %v3203, 16
    %v3559 = vpop.permute.xlu0 %3558
    %3560 = vrot.lane.b32.xlu0 %v3208, 16
    %v3561 = vpop.permute.xlu0 %3560
    %3562 = vrot.lane.b32.xlu0 %v3213, 16
    %v3563 = vpop.permute.xlu0 %3562
    %3564 = vrot.lane.b32.xlu0 %v3218, 16
    %v3565 = vpop.permute.xlu0 %3564
    %3576 = vrot.lane.b32.xlu0 %v3508, 24
    %v3577 = vpop.permute.xlu0 %3576
    %3578 = vrot.lane.b32.xlu0 %v3513, 24
    %v3579 = vpop.permute.xlu0 %3578
    %3580 = vrot.lane.b32.xlu0 %v3518, 24
    %v3581 = vpop.permute.xlu0 %3580
    %3582 = vrot.lane.b32.xlu0 %v3523, 24
    %v3583 = vpop.permute.xlu0 %3582
    %3584 = vrot.lane.b32.xlu0 %v3528, 24
    %v3585 = vpop.permute.xlu0 %3584
    %v3591 = vsel %vm303, %v2578, %v3537
    %v3592 = vsel %vm303, %v2583, %v3539
    %v3593 = vsel %vm303, %v2588, %v3541
    %v3594 = vsel %vm303, %v2593, %v3543
    %v3595 = vsel %vm303, %v2598, %v3545
    %v3596 = vsel %vm25, %v3591, %v3557
    %v3597 = vsel %vm25, %v3592, %v3559
    %v3598 = vsel %vm25, %v3593, %v3561
    %v3599 = vsel %vm25, %v3594, %v3563
    %v3600 = vsel %vm25, %v3595, %v3565
    %v3601 = vsel %vm1595, %v3596, %v3577
    %v3602 = vsel %vm1595, %v3597, %v3579
    %v3603 = vsel %vm1595, %v3598, %v3581
    %v3604 = vsel %vm1595, %v3599, %v3583
    %v3605 = vsel %vm1595, %v3600, %v3585
    %v3606 = vlaneseq
    %v3607 = vshrl.u32 %v3606, 7
    %v3608 = vsub.s32 1, %v3607
    %v3609 = vrot.slane %v2186, %v3608
    %3614 = vrot.lane.b32.xlu0 %v2168, 32
    %v3615 = vpop.permute.xlu0 %3614
    %3616 = vrot.lane.b32.xlu0 %v2170, 32
    %v3617 = vpop.permute.xlu0 %3616
    %3618 = vrot.lane.b32.xlu0 %v2172, 32
    %v3619 = vpop.permute.xlu0 %3618
    %3620 = vrot.lane.b32.xlu0 %v2174, 32
    %v3621 = vpop.permute.xlu0 %3620
    %v3627 = vsel %vm186, %v3601, 0
    %v3630 = vsel %vm186, %v3602, 0
    %v3633 = vsel %vm186, %v3603, 0
    %v3636 = vsel %vm186, %v3604, 0
    %v3639 = vsel %vm186, %v3605, 0
    %3641 = vmatprep.subr.mxu0 0.0
    %3642 = vmatpush1.msra.mxu0 %v3615
    %3643 = vmatprep.subr.mxu0 0.0
    %3644 = vmatpush1.msra.mxu0 %v3617
    %3645 = vmatprep.subr.mxu0 0.0
    %3646 = vmatpush1.msra.mxu0 %v3619
    %3647 = vmatprep.subr.mxu0 0.0
    %3648 = vmatpush1.msra.mxu0 %v3621
    %3649 = vmatprep.subr.mxu0 0.0
    %3650 = vmatpush1.msra.mxu0 0.0
    %3651 = vmatprep.subr.mxu0 0.0
    %3652 = vmatpush1.msra.mxu0 0.0
    %3653 = vmatprep.subr.mxu0 0.0
    %3654 = vmatpush1.msra.mxu0 0.0
    %3655 = vmatprep.subr.mxu0 0.0
    %3656 = vmatpush1.msra.mxu0 0.0
    %3657 = vmatprep.subr.mxu0 0.0
    %3658 = vmatpush1.msra.mxu0 0.0
    %3659 = vmatprep.subr.mxu0 0.0
    %3660 = vmatpush1.msra.mxu0 0.0
    %3661 = vmatprep.subr.mxu0 0.0
    %3662 = vmatpush1.msra.mxu0 0.0
    %3663 = vmatprep.subr.mxu0 0.0
    %3664 = vmatpush1.msra.mxu0 0.0
    %3665 = vmatprep.subr.mxu0 0.0
    %3666 = vmatpush1.msra.mxu0 0.0
    %3667 = vmatprep.subr.mxu0 0.0
    %3668 = vmatpush1.msra.mxu0 0.0
    %3669 = vmatprep.subr.mxu0 0.0
    %3670 = vmatpush1.msra.mxu0 0.0
    %3671 = vmatprep.subr.mxu0 0.0
    %3672 = vmatpush1.msra.mxu0 0.0
    %3673 = vmatprep.subr.mxu0 0.0
    %3674 = vmatpush1.msra.mxu0 0.0
    %3675 = vmatprep.subr.mxu0 0.0
    %3676 = vmatpush1.msra.mxu0 0.0
    %3677 = vmatprep.subr.mxu0 0.0
    %3678 = vmatpush1.msra.mxu0 0.0
    %3679 = vmatprep.subr.mxu0 0.0
    %3680 = vmatpush1.msra.mxu0 0.0
    %3681 = vmatprep.subr.mxu0 0.0
    %3682 = vmatpush1.msra.mxu0 0.0
    %3683 = vmatprep.subr.mxu0 0.0
    %3684 = vmatpush1.msra.mxu0 0.0
    %3685 = vmatprep.subr.mxu0 0.0
    %3686 = vmatpush1.msra.mxu0 0.0
    %3687 = vmatprep.subr.mxu0 0.0
    %3688 = vmatpush1.msra.mxu0 0.0
    %3689 = vmatprep.subr.mxu0 0.0
    %3690 = vmatpush1.msra.mxu0 0.0
    %3691 = vmatprep.subr.mxu0 0.0
    %3692 = vmatpush1.msra.mxu0 0.0
    %3693 = vmatprep.subr.mxu0 0.0
    %3694 = vmatpush1.msra.mxu0 0.0
    %3695 = vmatprep.subr.mxu0 0.0
    %3696 = vmatpush1.msra.mxu0 0.0
    %3697 = vmatprep.subr.mxu0 0.0
    %3698 = vmatpush1.msra.mxu0 0.0
    %3699 = vmatprep.subr.mxu0 0.0
    %3700 = vmatpush1.msra.mxu0 0.0
    %3701 = vmatprep.subr.mxu0 0.0
    %3702 = vmatpush1.msra.mxu0 0.0
    %3703 = vmatprep.subr.mxu0 0.0
    %3704 = vmatpush1.msra.mxu0 0.0
    %3705 = vmatprep.mubr.f32.mxu0 0.0
    %3706 = vmatmul.mubr.f32.gmra.mrb[0].mxu0 %v3627
    %v3707 = vpop.f32.mrb[0].mxu0
    %v3708 = vadd.f32 %v3609, %v3707
    %v3709 = vpop.f32.mrb[0].mxu0
    %3710 = vmatprep.mubr.f32.mxu0 0.0
    %3711 = vmatmul.mubr.f32.gmra.mrb[0].mxu0 %v3630
    %v3712 = vpop.f32.mrb[0].mxu0
    %v3713 = vadd.f32 %v3609, %v3712
    %v3714 = vpop.f32.mrb[0].mxu0
    %3715 = vmatprep.mubr.f32.mxu0 0.0
    %3716 = vmatmul.mubr.f32.gmra.mrb[0].mxu0 %v3633
    %v3717 = vpop.f32.mrb[0].mxu0
    %v3718 = vadd.f32 %v3609, %v3717
    %v3719 = vpop.f32.mrb[0].mxu0
    %3720 = vmatprep.mubr.f32.mxu0 0.0
    %3721 = vmatmul.mubr.f32.gmra.mrb[0].mxu0 %v3636
    %v3722 = vpop.f32.mrb[0].mxu0
    %v3723 = vadd.f32 %v3609, %v3722
    %v3724 = vpop.f32.mrb[0].mxu0
    %3725 = vmatprep.mubr.f32.mxu0 0.0
    %3726 = vmatmul.mubr.f32.gmra.mrb[0].mxu0 %v3639
    %v3727 = vpop.f32.mrb[0].mxu0
    %v3728 = vadd.f32 %v3609, %v3727
    %v3729 = vpop.f32.mrb[0].mxu0
    %3730 = vdwg.mxu0
    %v3731 = vadd.f32 %v2162, %v3708
    %v3732 = vadd.f32 %v2163, %v3713
    %v3733 = vadd.f32 %v2164, %v3718
    %v3734 = vadd.f32 %v2165, %v3723
    %v3735 = vadd.f32 %v2166, %v3728
    %v3736 = vsel %vm186, %v3731, 0.0
    %3737 = vadd.xlane.f32.xlu0 %v3736
    %v3738 = vpop.xlane.xlu0 %3737
    %v3739 = vsel %vm186, %v3732, 0.0
    %3740 = vadd.xlane.f32.xlu0 %v3739
    %v3741 = vpop.xlane.xlu0 %3740
    %v3742 = vsel %vm186, %v3733, 0.0
    %3743 = vadd.xlane.f32.xlu0 %v3742
    %v3744 = vpop.xlane.xlu0 %3743
    %v3745 = vsel %vm186, %v3734, 0.0
    %3746 = vadd.xlane.f32.xlu0 %v3745
    %v3747 = vpop.xlane.xlu0 %3746
    %v3748 = vsel %vm186, %v3735, 0.0
    %3749 = vadd.xlane.f32.xlu0 %v3748
    %v3750 = vpop.xlane.xlu0 %3749
    %v3751 = vmul.f32 %v3738, %v1746
    %v3752 = vmul.f32 %v3741, %v1746
    %v3753 = vmul.f32 %v3744, %v1746
    %v3754 = vmul.f32 %v3747, %v1746
    %v3755 = vmul.f32 %v3750, %v1746
    %v3756 = vsub.f32 %v3731, %v3751
    %v3757 = vsub.f32 %v3732, %v3752
    %v3758 = vsub.f32 %v3733, %v3753
    %v3759 = vsub.f32 %v3734, %v3754
    %v3760 = vsub.f32 %v3735, %v3755
    %v3761 = vmul.f32 %v3756, %v3756
    %v3762 = vmul.f32 %v3757, %v3757
    %v3763 = vmul.f32 %v3758, %v3758
    %v3764 = vmul.f32 %v3759, %v3759
    %v3765 = vmul.f32 %v3760, %v3760
    %v3766 = vsel %vm186, %v3761, 0.0
    %3767 = vadd.xlane.f32.xlu0 %v3766
    %v3768 = vpop.xlane.xlu0 %3767
    %v3769 = vsel %vm186, %v3762, 0.0
    %3770 = vadd.xlane.f32.xlu0 %v3769
    %v3771 = vpop.xlane.xlu0 %3770
    %v3772 = vsel %vm186, %v3763, 0.0
    %3773 = vadd.xlane.f32.xlu0 %v3772
    %v3774 = vpop.xlane.xlu0 %3773
    %v3775 = vsel %vm186, %v3764, 0.0
    %3776 = vadd.xlane.f32.xlu0 %v3775
    %v3777 = vpop.xlane.xlu0 %3776
    %v3778 = vsel %vm186, %v3765, 0.0
    %3779 = vadd.xlane.f32.xlu0 %v3778
    %v3780 = vpop.xlane.xlu0 %3779
    %v3781 = vmul.f32 %v3768, %v1746
    %v3782 = vmul.f32 %v3771, %v1746
    %v3783 = vmul.f32 %v3774, %v1746
    %v3784 = vmul.f32 %v3777, %v1746
    %v3785 = vmul.f32 %v3780, %v1746
    %v3786 = vadd.f32 %v3781, 1e-05
    %v3787 = vadd.f32 %v3782, 1e-05
    %v3788 = vadd.f32 %v3783, 1e-05
    %v3789 = vadd.f32 %v3784, 1e-05
    %v3790 = vadd.f32 %v3785, 1e-05
    %v3791 = vrsqrt.pop %v3786
    %v3792 = vrsqrt.pop %v3787
    %v3793 = vrsqrt.pop %v3788
    %v3794 = vrsqrt.pop %v3789
    %v3795 = vrsqrt.pop %v3790
    %v3796 = vmul.f32 %v3756, %v3791
    %v3797 = vmul.f32 %v3757, %v3792
    %v3798 = vmul.f32 %v3758, %v3793
    %v3799 = vmul.f32 %v3759, %v3794
    %v3800 = vmul.f32 %v3760, %v3795
    %v3801 = vlaneseq
    %v3802 = vshrl.u32 %v3801, 7
    %v3803 = vsub.s32 4, %v3802
    %v3804 = vrot.slane %v2186, %v3803
    %v3805 = vmul.f32 %v3796, %v3804
    %v3806 = vmul.f32 %v3797, %v3804
    %v3807 = vmul.f32 %v3798, %v3804
    %v3808 = vmul.f32 %v3799, %v3804
    %v3809 = vmul.f32 %v3800, %v3804
    %v3810 = vlaneseq
    %v3811 = vshrl.u32 %v3810, 7
    %v3812 = vsub.s32 5, %v3811
    %v3813 = vrot.slane %v2186, %v3812
    %v3814 = vadd.f32 %v3805, %v3813
    %v3815 = vadd.f32 %v3806, %v3813
    %v3816 = vadd.f32 %v3807, %v3813
    %v3817 = vadd.f32 %v3808, %v3813
    %v3818 = vadd.f32 %v3809, %v3813
    %v3819 = vlaneseq
    %v3820 = vshrl.u32 %v3819, 7
    %v3821 = vsub.s32 2, %v3820
    %v3822 = vrot.slane %v2186, %v3821
    %v3824 = vsel %vm186, %v3814, 0
    %v3827 = vsel %vm186, %v3815, 0
    %v3830 = vsel %vm186, %v3816, 0
    %v3833 = vsel %vm186, %v3817, 0
    %v3836 = vsel %vm186, %v3818, 0
    %3838 = vmatprep.subr.mxu0 0.0
    %3839 = vmatpush1.msra.mxu0 %v2169
    %3840 = vmatprep.subr.mxu0 0.0
    %3841 = vmatpush1.msra.mxu0 %v2171
    %3842 = vmatprep.subr.mxu0 0.0
    %3843 = vmatpush1.msra.mxu0 %v2173
    %3844 = vmatprep.subr.mxu0 0.0
    %3845 = vmatpush1.msra.mxu0 %v2175
    %3846 = vmatprep.subr.mxu0 0.0
    %3847 = vmatpush1.msra.mxu0 0.0
    %3848 = vmatprep.subr.mxu0 0.0
    %3849 = vmatpush1.msra.mxu0 0.0
    %3850 = vmatprep.subr.mxu0 0.0
    %3851 = vmatpush1.msra.mxu0 0.0
    %3852 = vmatprep.subr.mxu0 0.0
    %3853 = vmatpush1.msra.mxu0 0.0
    %3854 = vmatprep.subr.mxu0 0.0
    %3855 = vmatpush1.msra.mxu0 0.0
    %3856 = vmatprep.subr.mxu0 0.0
    %3857 = vmatpush1.msra.mxu0 0.0
    %3858 = vmatprep.subr.mxu0 0.0
    %3859 = vmatpush1.msra.mxu0 0.0
    %3860 = vmatprep.subr.mxu0 0.0
    %3861 = vmatpush1.msra.mxu0 0.0
    %3862 = vmatprep.subr.mxu0 0.0
    %3863 = vmatpush1.msra.mxu0 0.0
    %3864 = vmatprep.subr.mxu0 0.0
    %3865 = vmatpush1.msra.mxu0 0.0
    %3866 = vmatprep.subr.mxu0 0.0
    %3867 = vmatpush1.msra.mxu0 0.0
    %3868 = vmatprep.subr.mxu0 0.0
    %3869 = vmatpush1.msra.mxu0 0.0
    %3870 = vmatprep.subr.mxu0 0.0
    %3871 = vmatpush1.msra.mxu0 0.0
    %3872 = vmatprep.subr.mxu0 0.0
    %3873 = vmatpush1.msra.mxu0 0.0
    %3874 = vmatprep.subr.mxu0 0.0
    %3875 = vmatpush1.msra.mxu0 0.0
    %3876 = vmatprep.subr.mxu0 0.0
    %3877 = vmatpush1.msra.mxu0 0.0
    %3878 = vmatprep.subr.mxu0 0.0
    %3879 = vmatpush1.msra.mxu0 0.0
    %3880 = vmatprep.subr.mxu0 0.0
    %3881 = vmatpush1.msra.mxu0 0.0
    %3882 = vmatprep.subr.mxu0 0.0
    %3883 = vmatpush1.msra.mxu0 0.0
    %3884 = vmatprep.subr.mxu0 0.0
    %3885 = vmatpush1.msra.mxu0 0.0
    %3886 = vmatprep.subr.mxu0 0.0
    %3887 = vmatpush1.msra.mxu0 0.0
    %3888 = vmatprep.subr.mxu0 0.0
    %3889 = vmatpush1.msra.mxu0 0.0
    %3890 = vmatprep.subr.mxu0 0.0
    %3891 = vmatpush1.msra.mxu0 0.0
    %3892 = vmatprep.subr.mxu0 0.0
    %3893 = vmatpush1.msra.mxu0 0.0
    %3894 = vmatprep.subr.mxu0 0.0
    %3895 = vmatpush1.msra.mxu0 0.0
    %3896 = vmatprep.subr.mxu0 0.0
    %3897 = vmatpush1.msra.mxu0 0.0
    %3898 = vmatprep.subr.mxu0 0.0
    %3899 = vmatpush1.msra.mxu0 0.0
    %3900 = vmatprep.subr.mxu0 0.0
    %3901 = vmatpush1.msra.mxu0 0.0
    %3902 = vmatprep.mubr.f32.mxu0 0.0
    %3903 = vmatmul.mubr.f32.gmra.mrb[0].mxu0 %v3824
    %v3904 = vpop.f32.mrb[0].mxu0
    %v3905 = vadd.f32 %v3822, %v3904
    %v3906 = vpop.f32.mrb[0].mxu0
    %3907 = vmatprep.mubr.f32.mxu0 0.0
    %3908 = vmatmul.mubr.f32.gmra.mrb[0].mxu0 %v3827
    %v3909 = vpop.f32.mrb[0].mxu0
    %v3910 = vadd.f32 %v3822, %v3909
    %v3911 = vpop.f32.mrb[0].mxu0
    %3912 = vmatprep.mubr.f32.mxu0 0.0
    %3913 = vmatmul.mubr.f32.gmra.mrb[0].mxu0 %v3830
    %v3914 = vpop.f32.mrb[0].mxu0
    %v3915 = vadd.f32 %v3822, %v3914
    %v3916 = vpop.f32.mrb[0].mxu0
    %3917 = vmatprep.mubr.f32.mxu0 0.0
    %3918 = vmatmul.mubr.f32.gmra.mrb[0].mxu0 %v3833
    %v3919 = vpop.f32.mrb[0].mxu0
    %v3920 = vadd.f32 %v3822, %v3919
    %v3921 = vpop.f32.mrb[0].mxu0
    %3922 = vmatprep.mubr.f32.mxu0 0.0
    %3923 = vmatmul.mubr.f32.gmra.mrb[0].mxu0 %v3836
    %v3924 = vpop.f32.mrb[0].mxu0
    %v3925 = vadd.f32 %v3822, %v3924
    %v3926 = vpop.f32.mrb[0].mxu0
    %3927 = vdwg.mxu0
    %v3928 = vmul.f32 %v3905, %v3905
    %v3929 = vmul.f32 %v3910, %v3910
    %v3930 = vmul.f32 %v3915, %v3915
    %v3931 = vmul.f32 %v3920, %v3920
    %v3932 = vmul.f32 %v3925, %v3925
    %v3933 = vmul.f32 %v3905, %v3928
    %v3934 = vmul.f32 %v3910, %v3929
    %v3935 = vmul.f32 %v3915, %v3930
    %v3936 = vmul.f32 %v3920, %v3931
    %v3937 = vmul.f32 %v3925, %v3932
    %v3938 = vmul.f32 %v3933, 0.044715
    %v3939 = vmul.f32 %v3934, 0.044715
    %v3940 = vmul.f32 %v3935, 0.044715
    %v3941 = vmul.f32 %v3936, 0.044715
    %v3942 = vmul.f32 %v3937, 0.044715
    %v3943 = vadd.f32 %v3905, %v3938
    %v3944 = vadd.f32 %v3910, %v3939
    %v3945 = vadd.f32 %v3915, %v3940
    %v3946 = vadd.f32 %v3920, %v3941
    %v3947 = vadd.f32 %v3925, %v3942
    %v3948 = vmul.f32 %v3943, 0.7978846
    %v3949 = vmul.f32 %v3944, 0.7978846
    %v3950 = vmul.f32 %v3945, 0.7978846
    %v3951 = vmul.f32 %v3946, 0.7978846
    %v3952 = vmul.f32 %v3947, 0.7978846
    %v3953 = vtanh.pop %v3948
    %v3954 = vtanh.pop %v3949
    %v3955 = vtanh.pop %v3950
    %v3956 = vtanh.pop %v3951
    %v3957 = vtanh.pop %v3952
    %v3958 = vadd.f32 %v3953, 1.0
    %v3959 = vadd.f32 %v3954, 1.0
    %v3960 = vadd.f32 %v3955, 1.0
    %v3961 = vadd.f32 %v3956, 1.0
    %v3962 = vadd.f32 %v3957, 1.0
    %v3963 = vmul.f32 %v3958, 0.5
    %v3964 = vmul.f32 %v3959, 0.5
    %v3965 = vmul.f32 %v3960, 0.5
    %v3966 = vmul.f32 %v3961, 0.5
    %v3967 = vmul.f32 %v3962, 0.5
    %v3968 = vmul.f32 %v3905, %v3963
    %v3969 = vmul.f32 %v3910, %v3964
    %v3970 = vmul.f32 %v3915, %v3965
    %v3971 = vmul.f32 %v3920, %v3966
    %v3972 = vmul.f32 %v3925, %v3967
    %v3973 = vlaneseq
    %v3974 = vshrl.u32 %v3973, 7
    %v3975 = vsub.s32 3, %v3974
    %v3976 = vrot.slane %v2186, %v3975
    %v3978 = vsel %vm1973, %v3968, 0
    %v3981 = vsel %vm1973, %v3969, 0
    %v3984 = vsel %vm1973, %v3970, 0
    %v3987 = vsel %vm1973, %v3971, 0
    %v3990 = vsel %vm1973, %v3972, 0
    %3992 = vmatprep.subr.mxu0 0.0
    %3993 = vmatpush1.msra.mxu0 %v2177
    %3994 = vmatprep.subr.mxu0 0.0
    %3995 = vmatpush1.msra.mxu0 %v2178
    %3996 = vmatprep.subr.mxu0 0.0
    %3997 = vmatpush1.msra.mxu0 %v2179
    %3998 = vmatprep.subr.mxu0 0.0
    %3999 = vmatpush1.msra.mxu0 %v2180
    %4000 = vmatprep.subr.mxu0 0.0
    %4001 = vmatpush1.msra.mxu0 %v2181
    %4002 = vmatprep.subr.mxu0 0.0
    %4003 = vmatpush1.msra.mxu0 %v2182
    %4004 = vmatprep.subr.mxu0 0.0
    %4005 = vmatpush1.msra.mxu0 %v2183
    %4006 = vmatprep.subr.mxu0 0.0
    %4007 = vmatpush1.msra.mxu0 %v2184
    %4008 = vmatprep.subr.mxu0 0.0
    %4009 = vmatpush1.msra.mxu0 0.0
    %4010 = vmatprep.subr.mxu0 0.0
    %4011 = vmatpush1.msra.mxu0 0.0
    %4012 = vmatprep.subr.mxu0 0.0
    %4013 = vmatpush1.msra.mxu0 0.0
    %4014 = vmatprep.subr.mxu0 0.0
    %4015 = vmatpush1.msra.mxu0 0.0
    %4016 = vmatprep.subr.mxu0 0.0
    %4017 = vmatpush1.msra.mxu0 0.0
    %4018 = vmatprep.subr.mxu0 0.0
    %4019 = vmatpush1.msra.mxu0 0.0
    %4020 = vmatprep.subr.mxu0 0.0
    %4021 = vmatpush1.msra.mxu0 0.0
    %4022 = vmatprep.subr.mxu0 0.0
    %4023 = vmatpush1.msra.mxu0 0.0
    %4024 = vmatprep.subr.mxu0 0.0
    %4025 = vmatpush1.msra.mxu0 0.0
    %4026 = vmatprep.subr.mxu0 0.0
    %4027 = vmatpush1.msra.mxu0 0.0
    %4028 = vmatprep.subr.mxu0 0.0
    %4029 = vmatpush1.msra.mxu0 0.0
    %4030 = vmatprep.subr.mxu0 0.0
    %4031 = vmatpush1.msra.mxu0 0.0
    %4032 = vmatprep.subr.mxu0 0.0
    %4033 = vmatpush1.msra.mxu0 0.0
    %4034 = vmatprep.subr.mxu0 0.0
    %4035 = vmatpush1.msra.mxu0 0.0
    %4036 = vmatprep.subr.mxu0 0.0
    %4037 = vmatpush1.msra.mxu0 0.0
    %4038 = vmatprep.subr.mxu0 0.0
    %4039 = vmatpush1.msra.mxu0 0.0
    %4040 = vmatprep.subr.mxu0 0.0
    %4041 = vmatpush1.msra.mxu0 0.0
    %4042 = vmatprep.subr.mxu0 0.0
    %4043 = vmatpush1.msra.mxu0 0.0
    %4044 = vmatprep.subr.mxu0 0.0
    %4045 = vmatpush1.msra.mxu0 0.0
    %4046 = vmatprep.subr.mxu0 0.0
    %4047 = vmatpush1.msra.mxu0 0.0
    %4048 = vmatprep.subr.mxu0 0.0
    %4049 = vmatpush1.msra.mxu0 0.0
    %4050 = vmatprep.subr.mxu0 0.0
    %4051 = vmatpush1.msra.mxu0 0.0
    %4052 = vmatprep.subr.mxu0 0.0
    %4053 = vmatpush1.msra.mxu0 0.0
    %4054 = vmatprep.subr.mxu0 0.0
    %4055 = vmatpush1.msra.mxu0 0.0
    %4056 = vmatprep.mubr.f32.mxu0 0.0
    %4057 = vmatmul.mubr.f32.gmra.mrb[0].mxu0 %v3978
    %v4058 = vpop.f32.mrb[0].mxu0
    %v4059 = vadd.f32 %v3976, %v4058
    %v4060 = vpop.f32.mrb[0].mxu0
    %4061 = vmatprep.mubr.f32.mxu0 0.0
    %4062 = vmatmul.mubr.f32.gmra.mrb[0].mxu0 %v3981
    %v4063 = vpop.f32.mrb[0].mxu0
    %v4064 = vadd.f32 %v3976, %v4063
    %v4065 = vpop.f32.mrb[0].mxu0
    %4066 = vmatprep.mubr.f32.mxu0 0.0
    %4067 = vmatmul.mubr.f32.gmra.mrb[0].mxu0 %v3984
    %v4068 = vpop.f32.mrb[0].mxu0
    %v4069 = vadd.f32 %v3976, %v4068
    %v4070 = vpop.f32.mrb[0].mxu0
    %4071 = vmatprep.mubr.f32.mxu0 0.0
    %4072 = vmatmul.mubr.f32.gmra.mrb[0].mxu0 %v3987
    %v4073 = vpop.f32.mrb[0].mxu0
    %v4074 = vadd.f32 %v3976, %v4073
    %v4075 = vpop.f32.mrb[0].mxu0
    %4076 = vmatprep.mubr.f32.mxu0 0.0
    %4077 = vmatmul.mubr.f32.gmra.mrb[0].mxu0 %v3990
    %v4078 = vpop.f32.mrb[0].mxu0
    %v4079 = vadd.f32 %v3976, %v4078
    %v4080 = vpop.f32.mrb[0].mxu0
    %4081 = vdwg.mxu0
    %v4082 = vadd.f32 %v3814, %v4059
    %v4083 = vadd.f32 %v3815, %v4064
    %v4084 = vadd.f32 %v3816, %v4069
    %v4085 = vadd.f32 %v3817, %v4074
    %v4086 = vadd.f32 %v3818, %v4079
    %v4087 = vsel %vm186, %v4082, 0.0
    %4088 = vadd.xlane.f32.xlu0 %v4087
    %v4089 = vpop.xlane.xlu0 %4088
    %v4090 = vsel %vm186, %v4083, 0.0
    %4091 = vadd.xlane.f32.xlu0 %v4090
    %v4092 = vpop.xlane.xlu0 %4091
    %v4093 = vsel %vm186, %v4084, 0.0
    %4094 = vadd.xlane.f32.xlu0 %v4093
    %v4095 = vpop.xlane.xlu0 %4094
    %v4096 = vsel %vm186, %v4085, 0.0
    %4097 = vadd.xlane.f32.xlu0 %v4096
    %v4098 = vpop.xlane.xlu0 %4097
    %v4099 = vsel %vm186, %v4086, 0.0
    %4100 = vadd.xlane.f32.xlu0 %v4099
    %v4101 = vpop.xlane.xlu0 %4100
    %v4102 = vmul.f32 %v4089, %v1746
    %v4103 = vmul.f32 %v4092, %v1746
    %v4104 = vmul.f32 %v4095, %v1746
    %v4105 = vmul.f32 %v4098, %v1746
    %v4106 = vmul.f32 %v4101, %v1746
    %v4107 = vsub.f32 %v4082, %v4102
    %v4108 = vsub.f32 %v4083, %v4103
    %v4109 = vsub.f32 %v4084, %v4104
    %v4110 = vsub.f32 %v4085, %v4105
    %v4111 = vsub.f32 %v4086, %v4106
    %v4112 = vmul.f32 %v4107, %v4107
    %v4113 = vmul.f32 %v4108, %v4108
    %v4114 = vmul.f32 %v4109, %v4109
    %v4115 = vmul.f32 %v4110, %v4110
    %v4116 = vmul.f32 %v4111, %v4111
    %v4117 = vsel %vm186, %v4112, 0.0
    %4118 = vadd.xlane.f32.xlu0 %v4117
    %v4119 = vpop.xlane.xlu0 %4118
    %v4120 = vsel %vm186, %v4113, 0.0
    %4121 = vadd.xlane.f32.xlu0 %v4120
    %v4122 = vpop.xlane.xlu0 %4121
    %v4123 = vsel %vm186, %v4114, 0.0
    %4124 = vadd.xlane.f32.xlu0 %v4123
    %v4125 = vpop.xlane.xlu0 %4124
    %v4126 = vsel %vm186, %v4115, 0.0
    %4127 = vadd.xlane.f32.xlu0 %v4126
    %v4128 = vpop.xlane.xlu0 %4127
    %v4129 = vsel %vm186, %v4116, 0.0
    %4130 = vadd.xlane.f32.xlu0 %v4129
    %v4131 = vpop.xlane.xlu0 %4130
    %v4132 = vmul.f32 %v4119, %v1746
    %v4133 = vmul.f32 %v4122, %v1746
    %v4134 = vmul.f32 %v4125, %v1746
    %v4135 = vmul.f32 %v4128, %v1746
    %v4136 = vmul.f32 %v4131, %v1746
    %v4137 = vadd.f32 %v4132, 1e-05
    %v4138 = vadd.f32 %v4133, 1e-05
    %v4139 = vadd.f32 %v4134, 1e-05
    %v4140 = vadd.f32 %v4135, 1e-05
    %v4141 = vadd.f32 %v4136, 1e-05
    %v4142 = vrsqrt.pop %v4137
    %v4143 = vrsqrt.pop %v4138
    %v4144 = vrsqrt.pop %v4139
    %v4145 = vrsqrt.pop %v4140
    %v4146 = vrsqrt.pop %v4141
    %v4147 = vmul.f32 %v4107, %v4142
    %v4148 = vmul.f32 %v4108, %v4143
    %v4149 = vmul.f32 %v4109, %v4144
    %v4150 = vmul.f32 %v4110, %v4145
    %v4151 = vmul.f32 %v4111, %v4146
    %v4152 = vlaneseq
    %v4153 = vshrl.u32 %v4152, 7
    %v4154 = vsub.s32 6, %v4153
    %v4155 = vrot.slane %v2186, %v4154
    %v4156 = vmul.f32 %v4147, %v4155
    %v4157 = vmul.f32 %v4148, %v4155
    %v4158 = vmul.f32 %v4149, %v4155
    %v4159 = vmul.f32 %v4150, %v4155
    %v4160 = vmul.f32 %v4151, %v4155
    %v4161 = vlaneseq
    %v4162 = vshrl.u32 %v4161, 7
    %v4163 = vsub.s32 7, %v4162
    %v4164 = vrot.slane %v2186, %v4163
    %v4165 = vadd.f32 %v4156, %v4164
    %v4166 = vadd.f32 %v4157, %v4164
    %v4167 = vadd.f32 %v4158, %v4164
    %v4168 = vadd.f32 %v4159, %v4164
    %v4169 = vadd.f32 %v4160, %v4164
    %v4170 = vld [vmem:[%s5 + $0xa1] sm:$0x1]
    %v4171 = vld [vmem:[%s5 + $0xa2] sm:$0x1]
    %v4172 = vsel %vm186, %v4165, 0.0
    %4173 = vadd.xlane.f32.xlu0 %v4172
    %v4174 = vpop.xlane.xlu0 %4173
    %v4175 = vsel %vm186, %v4166, 0.0
    %4176 = vadd.xlane.f32.xlu0 %v4175
    %v4177 = vpop.xlane.xlu0 %4176
    %v4178 = vsel %vm186, %v4167, 0.0
    %4179 = vadd.xlane.f32.xlu0 %v4178
    %v4180 = vpop.xlane.xlu0 %4179
    %v4181 = vsel %vm186, %v4168, 0.0
    %4182 = vadd.xlane.f32.xlu0 %v4181
    %v4183 = vpop.xlane.xlu0 %4182
    %v4184 = vsel %vm186, %v4169, 0.0
    %4185 = vadd.xlane.f32.xlu0 %v4184
    %v4186 = vpop.xlane.xlu0 %4185
    %v4187 = vmul.f32 %v4174, %v1746
    %v4188 = vmul.f32 %v4177, %v1746
    %v4189 = vmul.f32 %v4180, %v1746
    %v4190 = vmul.f32 %v4183, %v1746
    %v4191 = vmul.f32 %v4186, %v1746
    %v4192 = vsub.f32 %v4165, %v4187
    %v4193 = vsub.f32 %v4166, %v4188
    %v4194 = vsub.f32 %v4167, %v4189
    %v4195 = vsub.f32 %v4168, %v4190
    %v4196 = vsub.f32 %v4169, %v4191
    %v4197 = vmul.f32 %v4192, %v4192
    %v4198 = vmul.f32 %v4193, %v4193
    %v4199 = vmul.f32 %v4194, %v4194
    %v4200 = vmul.f32 %v4195, %v4195
    %v4201 = vmul.f32 %v4196, %v4196
    %v4202 = vsel %vm186, %v4197, 0.0
    %4203 = vadd.xlane.f32.xlu0 %v4202
    %v4204 = vpop.xlane.xlu0 %4203
    %v4205 = vsel %vm186, %v4198, 0.0
    %4206 = vadd.xlane.f32.xlu0 %v4205
    %v4207 = vpop.xlane.xlu0 %4206
    %v4208 = vsel %vm186, %v4199, 0.0
    %4209 = vadd.xlane.f32.xlu0 %v4208
    %v4210 = vpop.xlane.xlu0 %4209
    %v4211 = vsel %vm186, %v4200, 0.0
    %4212 = vadd.xlane.f32.xlu0 %v4211
    %v4213 = vpop.xlane.xlu0 %4212
    %v4214 = vsel %vm186, %v4201, 0.0
    %4215 = vadd.xlane.f32.xlu0 %v4214
    %v4216 = vpop.xlane.xlu0 %4215
    %v4217 = vmul.f32 %v4204, %v1746
    %v4218 = vmul.f32 %v4207, %v1746
    %v4219 = vmul.f32 %v4210, %v1746
    %v4220 = vmul.f32 %v4213, %v1746
    %v4221 = vmul.f32 %v4216, %v1746
    %v4222 = vadd.f32 %v4217, 1e-05
    %v4223 = vadd.f32 %v4218, 1e-05
    %v4224 = vadd.f32 %v4219, 1e-05
    %v4225 = vadd.f32 %v4220, 1e-05
    %v4226 = vadd.f32 %v4221, 1e-05
    %v4227 = vrsqrt.pop %v4222
    %v4228 = vrsqrt.pop %v4223
    %v4229 = vrsqrt.pop %v4224
    %v4230 = vrsqrt.pop %v4225
    %v4231 = vrsqrt.pop %v4226
    %v4232 = vmul.f32 %v4192, %v4227
    %v4233 = vmul.f32 %v4193, %v4228
    %v4234 = vmul.f32 %v4194, %v4229
    %v4235 = vmul.f32 %v4195, %v4230
    %v4236 = vmul.f32 %v4196, %v4231
    %v4237 = vlaneseq
    %v4238 = vshrl.u32 %v4237, 7
    %v4239 = vsub.s32 0, %v4238
    %v4240 = vrot.slane %v4170, %v4239
    %v4241 = vmul.f32 %v4232, %v4240
    %v4242 = vmul.f32 %v4233, %v4240
    %v4243 = vmul.f32 %v4234, %v4240
    %v4244 = vmul.f32 %v4235, %v4240
    %v4245 = vmul.f32 %v4236, %v4240
    %v4246 = vlaneseq
    %v4247 = vshrl.u32 %v4246, 7
    %v4248 = vsub.s32 0, %v4247
    %v4249 = vrot.slane %v4171, %v4248
    %v4250 = vadd.f32 %v4241, %v4249
    %v4251 = vadd.f32 %v4242, %v4249
    %v4252 = vadd.f32 %v4243, %v4249
    %v4253 = vadd.f32 %v4244, %v4249
    %v4254 = vadd.f32 %v4245, %v4249
    %4256 = vrot.lane.b32.xlu0 %v4251, 32
    %v4257 = vpop.permute.xlu0 %4256
    %4260 = vrot.lane.b32.xlu0 %v4252, 64
    %v4261 = vpop.permute.xlu0 %4260
    %4264 = vrot.lane.b32.xlu0 %v4253, 96
    %v4265 = vpop.permute.xlu0 %4264
    %v4267 = vsel %vm186, %v4250, %v4257
    %v4268 = vsel %vm1973, %v4267, %v4261
    %vm4269 = vcmask 785408
    %v4270 = vsel %vm4269, %v4268, %v4265
    %v4271 = vld [vmem:[%s5] sm:$0xff]
    %v4272 = vld [vmem:[%s5 + $0x8] sm:$0xff]
    %v4273 = vld [vmem:[%s5 + $0x10] sm:$0xff]
    %v4274 = vld [vmem:[%s5 + $0x18] sm:$0xff]
    %v4275 = vld [vmem:[%s5 + $0x20] sm:$0xff]
    %v4276 = vld [vmem:[%s5 + $0x28] sm:$0xff]
    %v4277 = vld [vmem:[%s5 + $0x30] sm:$0xff]
    %v4278 = vld [vmem:[%s5 + $0x38] sm:$0xff]
    %v4279 = vld [vmem:[%s5 + $0x40] sm:$0xff]
    %v4280 = vld [vmem:[%s5 + $0x48] sm:$0xff]
    %v4281 = vld [vmem:[%s5 + $0x50] sm:$0xff]
    %v4282 = vld [vmem:[%s5 + $0x58] sm:$0xff]
    %v4283 = vld [vmem:[%s5 + $0x60] sm:$0xff]
    %v4284 = vld [vmem:[%s5 + $0x68] sm:$0xff]
    %v4285 = vld [vmem:[%s5 + $0x70] sm:$0xff]
    %v4286 = vld [vmem:[%s5 + $0x78] sm:$0xff]
    %v4287 = vld [vmem:[%s5 + $0x80] sm:$0xff]
    %v4288 = vld [vmem:[%s5 + $0x88] sm:$0xff]
    %v4289 = vld [vmem:[%s5 + $0x90] sm:$0xff]
    %v4290 = vld [vmem:[%s5 + $0x98] sm:$0xff]
    %v4291 = vld [vmem:[%s5 + $0xa0] sm:$0x1]
    %v4292 = vlaneseq
    %v4293 = vshrl.u32 %v4292, 7
    %v4294 = vsub.s32 0, %v4293
    %v4295 = vrot.slane %v4291, %v4294
    %v4297 = vsel %vm186, %v4254, 0
    %4299 = vmatprep.subr.mxu0 0.0
    %4300 = vmatpush1.msra.mxu0 %v4271
    %4301 = vmatprep.subr.mxu0 0.0
    %4302 = vmatpush1.msra.mxu0 %v4272
    %4303 = vmatprep.subr.mxu0 0.0
    %4304 = vmatpush1.msra.mxu0 %v4273
    %4305 = vmatprep.subr.mxu0 0.0
    %4306 = vmatpush1.msra.mxu0 %v4274
    %4307 = vmatprep.subr.mxu0 0.0
    %4308 = vmatpush1.msra.mxu0 %v4275
    %4309 = vmatprep.subr.mxu0 0.0
    %4310 = vmatpush1.msra.mxu0 %v4276
    %4311 = vmatprep.subr.mxu0 0.0
    %4312 = vmatpush1.msra.mxu0 %v4277
    %4313 = vmatprep.subr.mxu0 0.0
    %4314 = vmatpush1.msra.mxu0 %v4278
    %4315 = vmatprep.subr.mxu0 0.0
    %4316 = vmatpush1.msra.mxu0 %v4279
    %4317 = vmatprep.subr.mxu0 0.0
    %4318 = vmatpush1.msra.mxu0 %v4280
    %4319 = vmatprep.subr.mxu0 0.0
    %4320 = vmatpush1.msra.mxu0 %v4281
    %4321 = vmatprep.subr.mxu0 0.0
    %4322 = vmatpush1.msra.mxu0 %v4282
    %4323 = vmatprep.subr.mxu0 0.0
    %4324 = vmatpush1.msra.mxu0 %v4283
    %4325 = vmatprep.subr.mxu0 0.0
    %4326 = vmatpush1.msra.mxu0 %v4284
    %4327 = vmatprep.subr.mxu0 0.0
    %4328 = vmatpush1.msra.mxu0 %v4285
    %4329 = vmatprep.subr.mxu0 0.0
    %4330 = vmatpush1.msra.mxu0 %v4286
    %4331 = vmatprep.subr.mxu0 0.0
    %4332 = vmatpush1.msra.mxu0 %v4287
    %4333 = vmatprep.subr.mxu0 0.0
    %4334 = vmatpush1.msra.mxu0 %v4288
    %4335 = vmatprep.subr.mxu0 0.0
    %4336 = vmatpush1.msra.mxu0 %v4289
    %4337 = vmatprep.subr.mxu0 0.0
    %4338 = vmatpush1.msra.mxu0 %v4290
    %4339 = vmatprep.subr.mxu0 0.0
    %4340 = vmatpush1.msra.mxu0 0.0
    %4341 = vmatprep.subr.mxu0 0.0
    %4342 = vmatpush1.msra.mxu0 0.0
    %4343 = vmatprep.subr.mxu0 0.0
    %4344 = vmatpush1.msra.mxu0 0.0
    %4345 = vmatprep.subr.mxu0 0.0
    %4346 = vmatpush1.msra.mxu0 0.0
    %4347 = vmatprep.subr.mxu0 0.0
    %4348 = vmatpush1.msra.mxu0 0.0
    %4349 = vmatprep.subr.mxu0 0.0
    %4350 = vmatpush1.msra.mxu0 0.0
    %4351 = vmatprep.subr.mxu0 0.0
    %4352 = vmatpush1.msra.mxu0 0.0
    %4353 = vmatprep.subr.mxu0 0.0
    %4354 = vmatpush1.msra.mxu0 0.0
    %4355 = vmatprep.subr.mxu0 0.0
    %4356 = vmatpush1.msra.mxu0 0.0
    %4357 = vmatprep.subr.mxu0 0.0
    %4358 = vmatpush1.msra.mxu0 0.0
    %4359 = vmatprep.subr.mxu0 0.0
    %4360 = vmatpush1.msra.mxu0 0.0
    %4361 = vmatprep.subr.mxu0 0.0
    %4362 = vmatpush1.msra.mxu0 0.0
    %4363 = vmatprep.mubr.f32.mxu0 %v4297
    %4364 = vmatmul.mubr.f32.gmra.mrb[0].mxu0 %v4270
    %v4365 = vpop.f32.mrb[0].mxu0
    %v4366 = vadd.f32 %v4295, %v4365
    %v4367 = vpop.f32.mrb[0].mxu0
    %4368 = vdwg.mxu0
    %v4369 = vmul.f32 %v37, %v38
    %v4370 = vmul.f32 %v4366, %v4369
    %v4371 = vadd.f32 %v4370, %v30
    %4372 = vst.msk [vmem:[#allocation2] sm:$0xff] %vm303, %v4371
    // Predicated region
    $region26: #{model_forward.1} parent=1 // pred_check
      _
    $region27: #{model_forward.1} parent=1 // pred_check_branch
      %4374 = sbr.rel (0) target = $region29
    $region28: #{model_forward.1} parent=1 // pred_region
      %s4376 = ssub.s32 128, 128
      %4377 = vsyncadd [#allocation3], %s4376
      %s4379 = sshll.u32 [#allocation2], 4
      %s4380 = int_to_ptr.vmem [resolvable:$true] %s4379
      %4382 = dma.vmem_to_hbm [thread:$0]  %s4380, 128, %s6, [#allocation3]
    $region29: #{model_forward.1} parent=1 // pred_fallthru
      _
    // Predicated region
    $region30: #{model_forward.1} parent=1 // pred_check
      _
    $region31: #{model_forward.1} parent=1 // pred_check_branch
      %4384 = sbr.rel (0) target = $region33
    $region32: #{model_forward.1} parent=1 // pred_region
      %4385 = dma.done [#allocation3], 128
    $region33: #{model_forward.1} parent=1 // pred_fallthru
      _
    %4386 = vsyncpa [#allocation3], 1

</llo_original>
